<compile_context>
chip_gen: v7x
topology: tpu7x:2x2x1
jax: 0.10.0
libtpu: 0.0.40
codegen_flags: <defaults>
</compile_context>

<pallas_src>
import functools

import jax
import jax.numpy as jnp
from jax import lax
from jax.experimental import pallas as pl
from jax.experimental.pallas import tpu as pltpu


def _round_up(x, m):
    return (x + m - 1) // m * m


def _sublanes(dtype):
    """Sublane multiple of the (sublane, 128) vreg tile for this dtype (8 f32, 16 bf16)."""
    return 8 * (4 // jnp.dtype(dtype).itemsize)


def _padded_bytes(shape, dtype):
    """VMEM footprint of an array once the trailing dims are padded to the tile grid."""
    shape = list(shape)
    if len(shape) >= 1:
        shape[-1] = _round_up(shape[-1], 128)
    if len(shape) >= 2:
        shape[-2] = _round_up(shape[-2], _sublanes(dtype))
    n = 1
    for d in shape:
        n *= int(d)
    return n * jnp.dtype(dtype).itemsize


def _vmem_budget():
    """(per-step working-set budget, vmem_limit_bytes) derived from the actual chip."""
    try:
        cap = int(getattr(pltpu.get_tpu_info(), "vmem_capacity_bytes", 128 << 20))
    except Exception:            # no TPU info at trace time: assume the tightest (v7x, 64 MiB/TC)
        cap = 64 << 20
    vmem_limit = min(int(cap * 0.75), 100 << 20)   # ~48 MiB on v7x, ~96 MiB on v5e/v6e
    budget = min(int(cap * 0.40), 48 << 20)        # ~25 MiB on v7x, ~48 MiB on v5e/v6e
    return budget, vmem_limit


def _step_vmem_bytes(TH, Wo_p, C_in, Kc, C_out_p, dtype, out_dtype):
    """Per-grid-step VMEM working set: double-buffered blocks + scratch + f32 temporaries."""
    Wp1 = Wo_p + 1
    M = TH * Wo_p
    total = 0
    total += 2 * _padded_bytes((4, TH, Wp1, C_in), dtype)        # x block (2 pipeline buffers)
    total += 2 * _padded_bytes((4, Wp1, C_in), dtype)            # halo block
    total += 2 * _padded_bytes((Kc, C_out_p), dtype)             # weights (constant index, still 2 bufs)
    total += 2 * _padded_bytes((1, C_out_p), jnp.float32)        # bias
    total += 2 * _padded_bytes((M, C_out_p), out_dtype)          # output block
    total += _padded_bytes((4, TH + 1, Wp1, C_in), dtype)        # halo'd window scratch
    total += 2 * _padded_bytes((4 * M, Kc), dtype)               # im2col scratch + its loaded value
    total += _padded_bytes((4 * M, C_out_p), jnp.float32)        # f32 matmul accumulator
    total += 2 * _padded_bytes((M, C_out_p), jnp.float32)        # pooled / bias+relu temporaries
    return total


def _pick_row_tile(Ho, Wo_p, C_in, Kc, C_out_p, dtype, out_dtype, budget_bytes):
    """Largest divisor of Ho whose honest per-step working set fits the VMEM budget."""
    best = None
    for th in range(1, Ho + 1):
        if Ho % th:
            continue
        if _step_vmem_bytes(th, Wo_p, C_in, Kc, C_out_p, dtype, out_dtype) <= budget_bytes:
            best = th
    if best is None:
        need = _step_vmem_bytes(1, Wo_p, C_in, Kc, C_out_p, dtype, out_dtype)
        raise ValueError(
            f"ConvBlock tile does not fit VMEM even at TH=1 "
            f"(needs {need} bytes, budget {budget_bytes} bytes).")
    return best


def _conv_block_kernel(x_ref, h_ref, w_ref, b_ref, o_ref, win_ref, lhs_ref, *,
                       TH, Wo_p, C_in, Kc, C_out_p):
    """One (batch, row-tile) grid step.

    x_ref:   (4, TH, Wo_p+1, C_in)    pool-phase planes, plane rows [t*TH, t*TH+TH)
    h_ref:   (4, Wo_p+1, C_in)        halo plane-row t*TH+TH
    w_ref:   (9*C_in, C_out_p)        3x3 taps flattened along K, BN scale folded in
    b_ref:   (1, C_out_p)             folded conv bias + BN shift (applied after the max)
    o_ref:   (TH*Wo_p, C_out_p)       pooled output tile, lane-dense channels
    win_ref: (4, TH+1, Wo_p+1, C_in)  VMEM scratch: halo'd window
    lhs_ref: (4, TH, Wo_p, 9*C_in)    VMEM scratch: im2col lhs for the single MXU dot
    """
    M = TH * Wo_p

    # Assemble the halo'd window once: rows [0, TH) from the blocked input, row TH = halo.
    win_ref[:, :TH] = x_ref[...]
    win_ref[:, TH] = h_ref[...]

    # Group the 36 (pool-phase, tap) destinations by their 16 unique (plane, row-shift,
    # col-shift) source views, so every shifted slice/relayout is materialized once.
    dests = {}
    for dr in (0, 1):
        for dc in (0, 1):
            for kh in range(3):
                for kw in range(3):
                    pr, sr = (dr + kh) % 2, (dr + kh) // 2
                    pc, sc = (dc + kw) % 2, (dc + kw) // 2
                    key = (2 * pr + pc, sr, sc)
                    dests.setdefault(key, []).append((2 * dr + dc, 3 * kh + kw))

    for (p, sr, sc), uses in dests.items():
        src = win_ref[p, sr:sr + TH, sc:sc + Wo_p, :]          # (TH, Wo_p, C_in)
        for ph, t in uses:
            lhs_ref[ph, :, :, t * C_in:(t + 1) * C_in] = src

    # ONE MXU matmul: all 9 taps along K, all 4 pool phases stacked along M.
    lhs = lhs_ref[...].reshape(4 * M, Kc)
    acc = jnp.dot(lhs, w_ref[...], preferred_element_type=jnp.float32)

    # 2x2 max-pool = elementwise max over the 4 phase slabs (3 VPU maxes).
    pooled = jnp.max(acc.reshape(4, M, C_out_p), axis=0)

    # Bias + ReLU once, after the pool max (exact because relu(x + b) is monotone in x).
    o_ref[...] = jnp.maximum(pooled + b_ref[...], 0.0).astype(o_ref.dtype)


def conv_block_forward(x_nchw, w_oihw, b_conv, gamma, beta, run_mean, run_var,
                       eps=1e-5, *, dtype=jnp.float32, row_tile=None):
    """ConvBlock forward (eval-mode BN, no dropout). NCHW in / NCHW out."""
    N, C_in, H, W = x_nchw.shape
    C_out = w_oihw.shape[0]
    assert H % 2 == 0 and W % 2 == 0, "MaxPool2d(2,2) needs even H and W"
    Ho, Wo = H // 2, W // 2

    sub = _sublanes(dtype)
    Wo_p = _round_up(Wo, sub)              # pooled width padded so reshapes stay tile-aligned
    Wp1 = Wo_p + 1
    C_out_p = _round_up(C_out, 128)        # lane-dense output channels / full MXU columns
    Kc = 9 * C_in
    out_dtype = dtype                      # store the result in the compute dtype

    budget, vmem_limit = _vmem_budget()
    TH = row_tile if row_tile is not None else _pick_row_tile(
        Ho, Wo_p, C_in, Kc, C_out_p, dtype, out_dtype, budget)
    assert Ho % TH == 0
    n_tiles = Ho // TH
    M = TH * Wo_p

    # ---- wrapper glue (~2 HBM passes): pad(+cast), then one fused de-interleave ----
    # Zero-pad: +1 all around for the conv, plus extra zero columns so Wo pads to Wo_p.
    xp = jnp.pad(x_nchw.astype(dtype),
                 ((0, 0), (0, 0), (1, 1), (1, 1 + 2 * (Wo_p - Wo))))
    # NCHW -> (N, 4 pool phases, Ho+1, Wo_p+1, C): one reshape/transpose fuses the
    # NCHW->NHWC move with the 2x2 phase de-interleave (no per-phase stacks).
    xph = (xp.reshape(N, C_in, Ho + 1, 2, Wp1, 2)
             .transpose(0, 3, 5, 2, 4, 1)
             .reshape(N, 4, Ho + 1, Wp1, C_in))
    # Tiny halo side input: plane row t*TH + TH for every row tile (n_tiles rows / image).
    halo = jnp.moveaxis(xph[:, :, TH::TH], 2, 1)               # (N, n_tiles, 4, Wp1, C_in)

    # Fold BatchNorm (running stats) into the conv: per-channel scale into the weight
    # columns (may be negative -> must stay before the max); shift into one post-max bias.
    scale = gamma / jnp.sqrt(run_var + eps)
    bias = (b_conv - run_mean) * scale + beta
    w_k = jnp.transpose(w_oihw, (2, 3, 1, 0)).reshape(Kc, C_out) * scale[None, :]
    w_k = jnp.pad(w_k, ((0, 0), (0, C_out_p - C_out))).astype(dtype)
    bias = jnp.pad(bias, (0, C_out_p - C_out)).reshape(1, C_out_p).astype(jnp.float32)

    # Larger grid extent first so a 2-TC (v7x) megacore splits evenly; both axes parallel.
    if n_tiles > N:
        grid = (n_tiles, N)
        unpack = lambda i, j: (j, i)       # -> (batch, row_tile)
    else:
        grid = (N, n_tiles)
        unpack = lambda i, j: (i, j)

    def x_map(i, j):
        n, t = unpack(i, j)
        return (n, 0, t, 0, 0)

    def halo_map(i, j):
        n, t = unpack(i, j)
        return (n, t, 0, 0, 0)

    def w_map(i, j):
        return (0, 0)

    def b_map(i, j):
        return (0, 0)

    def o_map(i, j):
        n, t = unpack(i, j)
        return (n, t, 0, 0)

    kernel = functools.partial(_conv_block_kernel, TH=TH, Wo_p=Wo_p, C_in=C_in,
                               Kc=Kc, C_out_p=C_out_p)

    out = pl.pallas_call(
        kernel,
        out_shape=jax.ShapeDtypeStruct((N, n_tiles, M, C_out_p), out_dtype),
        grid_spec=pltpu.PrefetchScalarGridSpec(
            num_scalar_prefetch=0,
            grid=grid,
            in_specs=[
                pl.BlockSpec((None, 4, TH, Wp1, C_in), x_map),
                pl.BlockSpec((None, None, 4, Wp1, C_in), halo_map),
                pl.BlockSpec((Kc, C_out_p), w_map),
                pl.BlockSpec((1, C_out_p), b_map),
            ],
            out_specs=pl.BlockSpec((None, None, M, C_out_p), o_map),
            scratch_shapes=[
                pltpu.VMEM((4, TH + 1, Wp1, C_in), dtype),     # halo'd window
                pltpu.VMEM((4, TH, Wo_p, Kc), dtype),          # im2col lhs
            ],
        ),
        compiler_params=pltpu.CompilerParams(
            dimension_semantics=("parallel", "parallel"),
            vmem_limit_bytes=vmem_limit,
        ),
    )(xph, halo, w_k, bias)

    out = out.reshape(N, Ho, Wo_p, C_out_p)[:, :, :Wo, :C_out]
    return jnp.transpose(out, (0, 3, 1, 2))                    # back to NCHW


def reference_forward(x, w, b, gamma, beta, rm, rv, eps=1e-5):
    """Pure-JAX reference of ConvBlock.forward (eval-mode BN, no dropout)."""
    y = lax.conv_general_dilated(x, w, window_strides=(1, 1),
                                 padding=((1, 1), (1, 1)),
                                 dimension_numbers=("NCHW", "OIHW", "NCHW"))
    y = y + b[None, :, None, None]
    y = (y - rm[None, :, None, None]) * (
        gamma[None, :, None, None] / jnp.sqrt(rv[None, :, None, None] + eps)
    ) + beta[None, :, None, None]
    y = jnp.maximum(y, 0.0)
    N, C, H, W = y.shape
    return y.reshape(N, C, H // 2, 2, W // 2, 2).max(axis=(3, 5))


if __name__ == "__main__":
    key = jax.random.PRNGKey(0)
    k = jax.random.split(key, 7)
    N, C_in, C_out, H, W = 2, 4, 8, 16, 16

    x = jax.random.normal(k[0], (N, C_in, H, W), jnp.float32)
    w = jax.random.normal(k[1], (C_out, C_in, 3, 3), jnp.float32) / jnp.sqrt(9.0 * C_in)
    b = jax.random.normal(k[2], (C_out,), jnp.float32) * 0.1
    gamma = jax.random.uniform(k[3], (C_out,), jnp.float32, 0.5, 1.5)
    beta = jax.random.normal(k[4], (C_out,), jnp.float32) * 0.1
    rm = jax.random.normal(k[5], (C_out,), jnp.float32) * 0.1
    rv = jax.random.uniform(k[6], (C_out,), jnp.float32, 0.5, 1.5)

    ref = reference_forward(x, w, b, gamma, beta, rm, rv)

    # f32 path (tight tolerance).
    out = jax.block_until_ready(conv_block_forward(x, w, b, gamma, beta, rm, rv))
    assert out.shape == (N, C_out, H // 2, W // 2), out.shape
    err = float(jnp.max(jnp.abs(out - ref)))
    assert jnp.allclose(out, ref, atol=1e-4, rtol=1e-4), err

    # bf16 activation/weight/output path (halved HBM traffic, bf16 MXU); f32 accumulation.
    out_bf = jax.block_until_ready(
        conv_block_forward(x, w, b, gamma, beta, rm, rv, dtype=jnp.bfloat16))
    err_bf = float(jnp.max(jnp.abs(out_bf.astype(jnp.float32) - ref)))
    assert jnp.allclose(out_bf.astype(jnp.float32), ref, atol=2e-1, rtol=2e-1), err_bf

    print("KERNEL_OK")
</pallas_src>

<mosaic_0001>
module attributes {stable_mosaic.version = 11 : i64} {
  func.func @_conv_block_kernel(%arg0: i32, %arg1: i32, %arg2: memref<1x4x8x9x4xf32, #tpu.memory_space<vmem>>, %arg3: memref<1x1x4x9x4xf32, #tpu.memory_space<vmem>>, %arg4: memref<36x128xf32, #tpu.memory_space<vmem>>, %arg5: memref<1x128xf32, #tpu.memory_space<vmem>>, %arg6: memref<1x1x64x128xf32, #tpu.memory_space<vmem>>, %arg7: memref<4x9x9x4xf32, #tpu.memory_space<vmem>>, %arg8: memref<4x8x8x36xf32, #tpu.memory_space<vmem>>) attributes {dimension_semantics = [#tpu.dimension_semantics<parallel>, #tpu.dimension_semantics<parallel>], iteration_bounds = array<i64: 2, 1>, scalar_prefetch = 0 : i64, scratch_operands = 2 : i64, tpu.core_type = #tpu.core_type<tc>, window_params = [{transform_indices = @transform_0, window_bounds = array<i64: 1, 4, 8, 9, 4>}, {transform_indices = @transform_1, window_bounds = array<i64: 1, 1, 4, 9, 4>}, {pipeline_mode = #tpu.pipeline_mode<synchronous>, transform_indices = @transform_2, window_bounds = array<i64: 36, 128>}, {pipeline_mode = #tpu.pipeline_mode<synchronous>, transform_indices = @transform_3, window_bounds = array<i64: 1, 128>}, {transform_indices = @transform_4, window_bounds = array<i64: 1, 1, 64, 128>}]} {
    %c0 = arith.constant 0 : index
    %c0_0 = arith.constant 0 : index
    %c0_1 = arith.constant 0 : index
    %c0_2 = arith.constant 0 : index
    %c0_3 = arith.constant 0 : index
    %0 = vector.load %arg2[%c0, %c0_0, %c0_1, %c0_2, %c0_3] : memref<1x4x8x9x4xf32, #tpu.memory_space<vmem>>, vector<1x4x8x9x4xf32>
    %1 = vector.shape_cast %0 : vector<1x4x8x9x4xf32> to vector<4x8x9x4xf32>
    %c0_4 = arith.constant 0 : index
    %c0_5 = arith.constant 0 : index
    %c0_6 = arith.constant 0 : index
    %c0_7 = arith.constant 0 : index
    %2 = vector.load %arg7[%c0_4, %c0_5, %c0_6, %c0_7] : memref<4x9x9x4xf32, #tpu.memory_space<vmem>>, vector<4x8x9x4xf32>
    tpu.vector_store %arg7[%c0_4, %c0_5, %c0_6, %c0_7], %1 {strides = array<i32>} : memref<4x9x9x4xf32, #tpu.memory_space<vmem>>, vector<4x8x9x4xf32>,
    %c0_8 = arith.constant 0 : index
    %c0_9 = arith.constant 0 : index
    %c0_10 = arith.constant 0 : index
    %c0_11 = arith.constant 0 : index
    %c0_12 = arith.constant 0 : index
    %3 = vector.load %arg3[%c0_8, %c0_9, %c0_10, %c0_11, %c0_12] : memref<1x1x4x9x4xf32, #tpu.memory_space<vmem>>, vector<1x1x4x9x4xf32>
    %4 = vector.shape_cast %3 : vector<1x1x4x9x4xf32> to vector<4x9x4xf32>
    %c0_13 = arith.constant 0 : index
    %c8 = arith.constant 8 : index
    %c0_14 = arith.constant 0 : index
    %c0_15 = arith.constant 0 : index
    %5 = vector.load %arg7[%c0_13, %c8, %c0_14, %c0_15] : memref<4x9x9x4xf32, #tpu.memory_space<vmem>>, vector<4x1x9x4xf32>
    %6 = vector.shape_cast %5 : vector<4x1x9x4xf32> to vector<4x9x4xf32>
    %7 = vector.shape_cast %4 : vector<4x9x4xf32> to vector<4x1x9x4xf32>
    tpu.vector_store %arg7[%c0_13, %c8, %c0_14, %c0_15], %7 {strides = array<i32>} : memref<4x9x9x4xf32, #tpu.memory_space<vmem>>, vector<4x1x9x4xf32>,
    %c0_16 = arith.constant 0 : index
    %c0_17 = arith.constant 0 : index
    %c0_18 = arith.constant 0 : index
    %c0_19 = arith.constant 0 : index
    %8 = vector.load %arg7[%c0_16, %c0_17, %c0_18, %c0_19] : memref<4x9x9x4xf32, #tpu.memory_space<vmem>>, vector<1x8x8x4xf32>
    %9 = vector.shape_cast %8 : vector<1x8x8x4xf32> to vector<8x8x4xf32>
    %c0_20 = arith.constant 0 : index
    %c0_21 = arith.constant 0 : index
    %c0_22 = arith.constant 0 : index
    %c0_23 = arith.constant 0 : index
    %10 = vector.load %arg8[%c0_20, %c0_21, %c0_22, %c0_23] : memref<4x8x8x36xf32, #tpu.memory_space<vmem>>, vector<1x8x8x4xf32>
    %11 = vector.shape_cast %10 : vector<1x8x8x4xf32> to vector<8x8x4xf32>
    %12 = vector.shape_cast %9 : vector<8x8x4xf32> to vector<1x8x8x4xf32>
    tpu.vector_store %arg8[%c0_20, %c0_21, %c0_22, %c0_23], %12 {strides = array<i32>} : memref<4x8x8x36xf32, #tpu.memory_space<vmem>>, vector<1x8x8x4xf32>,
    %c1 = arith.constant 1 : index
    %c0_24 = arith.constant 0 : index
    %c0_25 = arith.constant 0 : index
    %c0_26 = arith.constant 0 : index
    %13 = vector.load %arg7[%c1, %c0_24, %c0_25, %c0_26] : memref<4x9x9x4xf32, #tpu.memory_space<vmem>>, vector<1x8x8x4xf32>
    %14 = vector.shape_cast %13 : vector<1x8x8x4xf32> to vector<8x8x4xf32>
    %c0_27 = arith.constant 0 : index
    %c0_28 = arith.constant 0 : index
    %c0_29 = arith.constant 0 : index
    %c4 = arith.constant 4 : index
    %15 = vector.load %arg8[%c0_27, %c0_28, %c0_29, %c4] : memref<4x8x8x36xf32, #tpu.memory_space<vmem>>, vector<1x8x8x4xf32>
    %16 = vector.shape_cast %15 : vector<1x8x8x4xf32> to vector<8x8x4xf32>
    %17 = vector.shape_cast %14 : vector<8x8x4xf32> to vector<1x8x8x4xf32>
    tpu.vector_store %arg8[%c0_27, %c0_28, %c0_29, %c4], %17 {strides = array<i32>} : memref<4x8x8x36xf32, #tpu.memory_space<vmem>>, vector<1x8x8x4xf32>,
    %c1_30 = arith.constant 1 : index
    %c0_31 = arith.constant 0 : index
    %c0_32 = arith.constant 0 : index
    %c0_33 = arith.constant 0 : index
    %18 = vector.load %arg8[%c1_30, %c0_31, %c0_32, %c0_33] : memref<4x8x8x36xf32, #tpu.memory_space<vmem>>, vector<1x8x8x4xf32>
    %19 = vector.shape_cast %18 : vector<1x8x8x4xf32> to vector<8x8x4xf32>
    %20 = vector.shape_cast %14 : vector<8x8x4xf32> to vector<1x8x8x4xf32>
    tpu.vector_store %arg8[%c1_30, %c0_31, %c0_32, %c0_33], %20 {strides = array<i32>} : memref<4x8x8x36xf32, #tpu.memory_space<vmem>>, vector<1x8x8x4xf32>,
    %c0_34 = arith.constant 0 : index
    %c0_35 = arith.constant 0 : index
    %c1_36 = arith.constant 1 : index
    %c0_37 = arith.constant 0 : index
    %21 = vector.load %arg7[%c0_34, %c0_35, %c1_36, %c0_37] : memref<4x9x9x4xf32, #tpu.memory_space<vmem>>, vector<1x8x8x4xf32>
    %22 = vector.shape_cast %21 : vector<1x8x8x4xf32> to vector<8x8x4xf32>
    %c0_38 = arith.constant 0 : index
    %c0_39 = arith.constant 0 : index
    %c0_40 = arith.constant 0 : index
    %c8_41 = arith.constant 8 : index
    %23 = vector.load %arg8[%c0_38, %c0_39, %c0_40, %c8_41] : memref<4x8x8x36xf32, #tpu.memory_space<vmem>>, vector<1x8x8x4xf32>
    %24 = vector.shape_cast %23 : vector<1x8x8x4xf32> to vector<8x8x4xf32>
    %25 = vector.shape_cast %22 : vector<8x8x4xf32> to vector<1x8x8x4xf32>
    tpu.vector_store %arg8[%c0_38, %c0_39, %c0_40, %c8_41], %25 {strides = array<i32>} : memref<4x8x8x36xf32, #tpu.memory_space<vmem>>, vector<1x8x8x4xf32>,
    %c1_42 = arith.constant 1 : index
    %c0_43 = arith.constant 0 : index
    %c0_44 = arith.constant 0 : index
    %c4_45 = arith.constant 4 : index
    %26 = vector.load %arg8[%c1_42, %c0_43, %c0_44, %c4_45] : memref<4x8x8x36xf32, #tpu.memory_space<vmem>>, vector<1x8x8x4xf32>
    %27 = vector.shape_cast %26 : vector<1x8x8x4xf32> to vector<8x8x4xf32>
    %28 = vector.shape_cast %22 : vector<8x8x4xf32> to vector<1x8x8x4xf32>
    tpu.vector_store %arg8[%c1_42, %c0_43, %c0_44, %c4_45], %28 {strides = array<i32>} : memref<4x8x8x36xf32, #tpu.memory_space<vmem>>, vector<1x8x8x4xf32>,
    %c2 = arith.constant 2 : index
    %c0_46 = arith.constant 0 : index
    %c0_47 = arith.constant 0 : index
    %c0_48 = arith.constant 0 : index
    %29 = vector.load %arg7[%c2, %c0_46, %c0_47, %c0_48] : memref<4x9x9x4xf32, #tpu.memory_space<vmem>>, vector<1x8x8x4xf32>
    %30 = vector.shape_cast %29 : vector<1x8x8x4xf32> to vector<8x8x4xf32>
    %c0_49 = arith.constant 0 : index
    %c0_50 = arith.constant 0 : index
    %c0_51 = arith.constant 0 : index
    %c12 = arith.constant 12 : index
    %31 = vector.load %arg8[%c0_49, %c0_50, %c0_51, %c12] : memref<4x8x8x36xf32, #tpu.memory_space<vmem>>, vector<1x8x8x4xf32>
    %32 = vector.shape_cast %31 : vector<1x8x8x4xf32> to vector<8x8x4xf32>
    %33 = vector.shape_cast %30 : vector<8x8x4xf32> to vector<1x8x8x4xf32>
    tpu.vector_store %arg8[%c0_49, %c0_50, %c0_51, %c12], %33 {strides = array<i32>} : memref<4x8x8x36xf32, #tpu.memory_space<vmem>>, vector<1x8x8x4xf32>,
    %c2_52 = arith.constant 2 : index
    %c0_53 = arith.constant 0 : index
    %c0_54 = arith.constant 0 : index
    %c0_55 = arith.constant 0 : index
    %34 = vector.load %arg8[%c2_52, %c0_53, %c0_54, %c0_55] : memref<4x8x8x36xf32, #tpu.memory_space<vmem>>, vector<1x8x8x4xf32>
    %35 = vector.shape_cast %34 : vector<1x8x8x4xf32> to vector<8x8x4xf32>
    %36 = vector.shape_cast %30 : vector<8x8x4xf32> to vector<1x8x8x4xf32>
    tpu.vector_store %arg8[%c2_52, %c0_53, %c0_54, %c0_55], %36 {strides = array<i32>} : memref<4x8x8x36xf32, #tpu.memory_space<vmem>>, vector<1x8x8x4xf32>,
    %c3 = arith.constant 3 : index
    %c0_56 = arith.constant 0 : index
    %c0_57 = arith.constant 0 : index
    %c0_58 = arith.constant 0 : index
    %37 = vector.load %arg7[%c3, %c0_56, %c0_57, %c0_58] : memref<4x9x9x4xf32, #tpu.memory_space<vmem>>, vector<1x8x8x4xf32>
    %38 = vector.shape_cast %37 : vector<1x8x8x4xf32> to vector<8x8x4xf32>
    %c0_59 = arith.constant 0 : index
    %c0_60 = arith.constant 0 : index
    %c0_61 = arith.constant 0 : index
    %c16 = arith.constant 16 : index
    %39 = vector.load %arg8[%c0_59, %c0_60, %c0_61, %c16] : memref<4x8x8x36xf32, #tpu.memory_space<vmem>>, vector<1x8x8x4xf32>
    %40 = vector.shape_cast %39 : vector<1x8x8x4xf32> to vector<8x8x4xf32>
    %41 = vector.shape_cast %38 : vector<8x8x4xf32> to vector<1x8x8x4xf32>
    tpu.vector_store %arg8[%c0_59, %c0_60, %c0_61, %c16], %41 {strides = array<i32>} : memref<4x8x8x36xf32, #tpu.memory_space<vmem>>, vector<1x8x8x4xf32>,
    %c1_62 = arith.constant 1 : index
    %c0_63 = arith.constant 0 : index
    %c0_64 = arith.constant 0 : index
    %c12_65 = arith.constant 12 : index
    %42 = vector.load %arg8[%c1_62, %c0_63, %c0_64, %c12_65] : memref<4x8x8x36xf32, #tpu.memory_space<vmem>>, vector<1x8x8x4xf32>
    %43 = vector.shape_cast %42 : vector<1x8x8x4xf32> to vector<8x8x4xf32>
    %44 = vector.shape_cast %38 : vector<8x8x4xf32> to vector<1x8x8x4xf32>
    tpu.vector_store %arg8[%c1_62, %c0_63, %c0_64, %c12_65], %44 {strides = array<i32>} : memref<4x8x8x36xf32, #tpu.memory_space<vmem>>, vector<1x8x8x4xf32>,
    %c2_66 = arith.constant 2 : index
    %c0_67 = arith.constant 0 : index
    %c0_68 = arith.constant 0 : index
    %c4_69 = arith.constant 4 : index
    %45 = vector.load %arg8[%c2_66, %c0_67, %c0_68, %c4_69] : memref<4x8x8x36xf32, #tpu.memory_space<vmem>>, vector<1x8x8x4xf32>
    %46 = vector.shape_cast %45 : vector<1x8x8x4xf32> to vector<8x8x4xf32>
    %47 = vector.shape_cast %38 : vector<8x8x4xf32> to vector<1x8x8x4xf32>
    tpu.vector_store %arg8[%c2_66, %c0_67, %c0_68, %c4_69], %47 {strides = array<i32>} : memref<4x8x8x36xf32, #tpu.memory_space<vmem>>, vector<1x8x8x4xf32>,
    %c3_70 = arith.constant 3 : index
    %c0_71 = arith.constant 0 : index
    %c0_72 = arith.constant 0 : index
    %c0_73 = arith.constant 0 : index
    %48 = vector.load %arg8[%c3_70, %c0_71, %c0_72, %c0_73] : memref<4x8x8x36xf32, #tpu.memory_space<vmem>>, vector<1x8x8x4xf32>
    %49 = vector.shape_cast %48 : vector<1x8x8x4xf32> to vector<8x8x4xf32>
    %50 = vector.shape_cast %38 : vector<8x8x4xf32> to vector<1x8x8x4xf32>
    tpu.vector_store %arg8[%c3_70, %c0_71, %c0_72, %c0_73], %50 {strides = array<i32>} : memref<4x8x8x36xf32, #tpu.memory_space<vmem>>, vector<1x8x8x4xf32>,
    %c2_74 = arith.constant 2 : index
    %c0_75 = arith.constant 0 : index
    %c1_76 = arith.constant 1 : index
    %c0_77 = arith.constant 0 : index
    %51 = vector.load %arg7[%c2_74, %c0_75, %c1_76, %c0_77] : memref<4x9x9x4xf32, #tpu.memory_space<vmem>>, vector<1x8x8x4xf32>
    %52 = vector.shape_cast %51 : vector<1x8x8x4xf32> to vector<8x8x4xf32>
    %c0_78 = arith.constant 0 : index
    %c0_79 = arith.constant 0 : index
    %c0_80 = arith.constant 0 : index
    %c20 = arith.constant 20 : index
    %53 = vector.load %arg8[%c0_78, %c0_79, %c0_80, %c20] : memref<4x8x8x36xf32, #tpu.memory_space<vmem>>, vector<1x8x8x4xf32>
    %54 = vector.shape_cast %53 : vector<1x8x8x4xf32> to vector<8x8x4xf32>
    %55 = vector.shape_cast %52 : vector<8x8x4xf32> to vector<1x8x8x4xf32>
    tpu.vector_store %arg8[%c0_78, %c0_79, %c0_80, %c20], %55 {strides = array<i32>} : memref<4x8x8x36xf32, #tpu.memory_space<vmem>>, vector<1x8x8x4xf32>,
    %c1_81 = arith.constant 1 : index
    %c0_82 = arith.constant 0 : index
    %c0_83 = arith.constant 0 : index
    %c16_84 = arith.constant 16 : index
    %56 = vector.load %arg8[%c1_81, %c0_82, %c0_83, %c16_84] : memref<4x8x8x36xf32, #tpu.memory_space<vmem>>, vector<1x8x8x4xf32>
    %57 = vector.shape_cast %56 : vector<1x8x8x4xf32> to vector<8x8x4xf32>
    %58 = vector.shape_cast %52 : vector<8x8x4xf32> to vector<1x8x8x4xf32>
    tpu.vector_store %arg8[%c1_81, %c0_82, %c0_83, %c16_84], %58 {strides = array<i32>} : memref<4x8x8x36xf32, #tpu.memory_space<vmem>>, vector<1x8x8x4xf32>,
    %c2_85 = arith.constant 2 : index
    %c0_86 = arith.constant 0 : index
    %c0_87 = arith.constant 0 : index
    %c8_88 = arith.constant 8 : index
    %59 = vector.load %arg8[%c2_85, %c0_86, %c0_87, %c8_88] : memref<4x8x8x36xf32, #tpu.memory_space<vmem>>, vector<1x8x8x4xf32>
    %60 = vector.shape_cast %59 : vector<1x8x8x4xf32> to vector<8x8x4xf32>
    %61 = vector.shape_cast %52 : vector<8x8x4xf32> to vector<1x8x8x4xf32>
    tpu.vector_store %arg8[%c2_85, %c0_86, %c0_87, %c8_88], %61 {strides = array<i32>} : memref<4x8x8x36xf32, #tpu.memory_space<vmem>>, vector<1x8x8x4xf32>,
    %c3_89 = arith.constant 3 : index
    %c0_90 = arith.constant 0 : index
    %c0_91 = arith.constant 0 : index
    %c4_92 = arith.constant 4 : index
    %62 = vector.load %arg8[%c3_89, %c0_90, %c0_91, %c4_92] : memref<4x8x8x36xf32, #tpu.memory_space<vmem>>, vector<1x8x8x4xf32>
    %63 = vector.shape_cast %62 : vector<1x8x8x4xf32> to vector<8x8x4xf32>
    %64 = vector.shape_cast %52 : vector<8x8x4xf32> to vector<1x8x8x4xf32>
    tpu.vector_store %arg8[%c3_89, %c0_90, %c0_91, %c4_92], %64 {strides = array<i32>} : memref<4x8x8x36xf32, #tpu.memory_space<vmem>>, vector<1x8x8x4xf32>,
    %c0_93 = arith.constant 0 : index
    %c1_94 = arith.constant 1 : index
    %c0_95 = arith.constant 0 : index
    %c0_96 = arith.constant 0 : index
    %65 = vector.load %arg7[%c0_93, %c1_94, %c0_95, %c0_96] : memref<4x9x9x4xf32, #tpu.memory_space<vmem>>, vector<1x8x8x4xf32>
    %66 = vector.shape_cast %65 : vector<1x8x8x4xf32> to vector<8x8x4xf32>
    %c0_97 = arith.constant 0 : index
    %c0_98 = arith.constant 0 : index
    %c0_99 = arith.constant 0 : index
    %c24 = arith.constant 24 : index
    %67 = vector.load %arg8[%c0_97, %c0_98, %c0_99, %c24] : memref<4x8x8x36xf32, #tpu.memory_space<vmem>>, vector<1x8x8x4xf32>
    %68 = vector.shape_cast %67 : vector<1x8x8x4xf32> to vector<8x8x4xf32>
    %69 = vector.shape_cast %66 : vector<8x8x4xf32> to vector<1x8x8x4xf32>
    tpu.vector_store %arg8[%c0_97, %c0_98, %c0_99, %c24], %69 {strides = array<i32>} : memref<4x8x8x36xf32, #tpu.memory_space<vmem>>, vector<1x8x8x4xf32>,
    %c2_100 = arith.constant 2 : index
    %c0_101 = arith.constant 0 : index
    %c0_102 = arith.constant 0 : index
    %c12_103 = arith.constant 12 : index
    %70 = vector.load %arg8[%c2_100, %c0_101, %c0_102, %c12_103] : memref<4x8x8x36xf32, #tpu.memory_space<vmem>>, vector<1x8x8x4xf32>
    %71 = vector.shape_cast %70 : vector<1x8x8x4xf32> to vector<8x8x4xf32>
    %72 = vector.shape_cast %66 : vector<8x8x4xf32> to vector<1x8x8x4xf32>
    tpu.vector_store %arg8[%c2_100, %c0_101, %c0_102, %c12_103], %72 {strides = array<i32>} : memref<4x8x8x36xf32, #tpu.memory_space<vmem>>, vector<1x8x8x4xf32>,
    %c1_104 = arith.constant 1 : index
    %c1_105 = arith.constant 1 : index
    %c0_106 = arith.constant 0 : index
    %c0_107 = arith.constant 0 : index
    %73 = vector.load %arg7[%c1_104, %c1_105, %c0_106, %c0_107] : memref<4x9x9x4xf32, #tpu.memory_space<vmem>>, vector<1x8x8x4xf32>
    %74 = vector.shape_cast %73 : vector<1x8x8x4xf32> to vector<8x8x4xf32>
    %c0_108 = arith.constant 0 : index
    %c0_109 = arith.constant 0 : index
    %c0_110 = arith.constant 0 : index
    %c28 = arith.constant 28 : index
    %75 = vector.load %arg8[%c0_108, %c0_109, %c0_110, %c28] : memref<4x8x8x36xf32, #tpu.memory_space<vmem>>, vector<1x8x8x4xf32>
    %76 = vector.shape_cast %75 : vector<1x8x8x4xf32> to vector<8x8x4xf32>
    %77 = vector.shape_cast %74 : vector<8x8x4xf32> to vector<1x8x8x4xf32>
    tpu.vector_store %arg8[%c0_108, %c0_109, %c0_110, %c28], %77 {strides = array<i32>} : memref<4x8x8x36xf32, #tpu.memory_space<vmem>>, vector<1x8x8x4xf32>,
    %c1_111 = arith.constant 1 : index
    %c0_112 = arith.constant 0 : index
    %c0_113 = arith.constant 0 : index
    %c24_114 = arith.constant 24 : index
    %78 = vector.load %arg8[%c1_111, %c0_112, %c0_113, %c24_114] : memref<4x8x8x36xf32, #tpu.memory_space<vmem>>, vector<1x8x8x4xf32>
    %79 = vector.shape_cast %78 : vector<1x8x8x4xf32> to vector<8x8x4xf32>
    %80 = vector.shape_cast %74 : vector<8x8x4xf32> to vector<1x8x8x4xf32>
    tpu.vector_store %arg8[%c1_111, %c0_112, %c0_113, %c24_114], %80 {strides = array<i32>} : memref<4x8x8x36xf32, #tpu.memory_space<vmem>>, vector<1x8x8x4xf32>,
    %c2_115 = arith.constant 2 : index
    %c0_116 = arith.constant 0 : index
    %c0_117 = arith.constant 0 : index
    %c16_118 = arith.constant 16 : index
    %81 = vector.load %arg8[%c2_115, %c0_116, %c0_117, %c16_118] : memref<4x8x8x36xf32, #tpu.memory_space<vmem>>, vector<1x8x8x4xf32>
    %82 = vector.shape_cast %81 : vector<1x8x8x4xf32> to vector<8x8x4xf32>
    %83 = vector.shape_cast %74 : vector<8x8x4xf32> to vector<1x8x8x4xf32>
    tpu.vector_store %arg8[%c2_115, %c0_116, %c0_117, %c16_118], %83 {strides = array<i32>} : memref<4x8x8x36xf32, #tpu.memory_space<vmem>>, vector<1x8x8x4xf32>,
    %c3_119 = arith.constant 3 : index
    %c0_120 = arith.constant 0 : index
    %c0_121 = arith.constant 0 : index
    %c12_122 = arith.constant 12 : index
    %84 = vector.load %arg8[%c3_119, %c0_120, %c0_121, %c12_122] : memref<4x8x8x36xf32, #tpu.memory_space<vmem>>, vector<1x8x8x4xf32>
    %85 = vector.shape_cast %84 : vector<1x8x8x4xf32> to vector<8x8x4xf32>
    %86 = vector.shape_cast %74 : vector<8x8x4xf32> to vector<1x8x8x4xf32>
    tpu.vector_store %arg8[%c3_119, %c0_120, %c0_121, %c12_122], %86 {strides = array<i32>} : memref<4x8x8x36xf32, #tpu.memory_space<vmem>>, vector<1x8x8x4xf32>,
    %c0_123 = arith.constant 0 : index
    %c1_124 = arith.constant 1 : index
    %c1_125 = arith.constant 1 : index
    %c0_126 = arith.constant 0 : index
    %87 = vector.load %arg7[%c0_123, %c1_124, %c1_125, %c0_126] : memref<4x9x9x4xf32, #tpu.memory_space<vmem>>, vector<1x8x8x4xf32>
    %88 = vector.shape_cast %87 : vector<1x8x8x4xf32> to vector<8x8x4xf32>
    %c0_127 = arith.constant 0 : index
    %c0_128 = arith.constant 0 : index
    %c0_129 = arith.constant 0 : index
    %c32 = arith.constant 32 : index
    %89 = vector.load %arg8[%c0_127, %c0_128, %c0_129, %c32] : memref<4x8x8x36xf32, #tpu.memory_space<vmem>>, vector<1x8x8x4xf32>
    %90 = vector.shape_cast %89 : vector<1x8x8x4xf32> to vector<8x8x4xf32>
    %91 = vector.shape_cast %88 : vector<8x8x4xf32> to vector<1x8x8x4xf32>
    tpu.vector_store %arg8[%c0_127, %c0_128, %c0_129, %c32], %91 {strides = array<i32>} : memref<4x8x8x36xf32, #tpu.memory_space<vmem>>, vector<1x8x8x4xf32>,
    %c1_130 = arith.constant 1 : index
    %c0_131 = arith.constant 0 : index
    %c0_132 = arith.constant 0 : index
    %c28_133 = arith.constant 28 : index
    %92 = vector.load %arg8[%c1_130, %c0_131, %c0_132, %c28_133] : memref<4x8x8x36xf32, #tpu.memory_space<vmem>>, vector<1x8x8x4xf32>
    %93 = vector.shape_cast %92 : vector<1x8x8x4xf32> to vector<8x8x4xf32>
    %94 = vector.shape_cast %88 : vector<8x8x4xf32> to vector<1x8x8x4xf32>
    tpu.vector_store %arg8[%c1_130, %c0_131, %c0_132, %c28_133], %94 {strides = array<i32>} : memref<4x8x8x36xf32, #tpu.memory_space<vmem>>, vector<1x8x8x4xf32>,
    %c2_134 = arith.constant 2 : index
    %c0_135 = arith.constant 0 : index
    %c0_136 = arith.constant 0 : index
    %c20_137 = arith.constant 20 : index
    %95 = vector.load %arg8[%c2_134, %c0_135, %c0_136, %c20_137] : memref<4x8x8x36xf32, #tpu.memory_space<vmem>>, vector<1x8x8x4xf32>
    %96 = vector.shape_cast %95 : vector<1x8x8x4xf32> to vector<8x8x4xf32>
    %97 = vector.shape_cast %88 : vector<8x8x4xf32> to vector<1x8x8x4xf32>
    tpu.vector_store %arg8[%c2_134, %c0_135, %c0_136, %c20_137], %97 {strides = array<i32>} : memref<4x8x8x36xf32, #tpu.memory_space<vmem>>, vector<1x8x8x4xf32>,
    %c3_138 = arith.constant 3 : index
    %c0_139 = arith.constant 0 : index
    %c0_140 = arith.constant 0 : index
    %c16_141 = arith.constant 16 : index
    %98 = vector.load %arg8[%c3_138, %c0_139, %c0_140, %c16_141] : memref<4x8x8x36xf32, #tpu.memory_space<vmem>>, vector<1x8x8x4xf32>
    %99 = vector.shape_cast %98 : vector<1x8x8x4xf32> to vector<8x8x4xf32>
    %100 = vector.shape_cast %88 : vector<8x8x4xf32> to vector<1x8x8x4xf32>
    tpu.vector_store %arg8[%c3_138, %c0_139, %c0_140, %c16_141], %100 {strides = array<i32>} : memref<4x8x8x36xf32, #tpu.memory_space<vmem>>, vector<1x8x8x4xf32>,
    %c1_142 = arith.constant 1 : index
    %c0_143 = arith.constant 0 : index
    %c1_144 = arith.constant 1 : index
    %c0_145 = arith.constant 0 : index
    %101 = vector.load %arg7[%c1_142, %c0_143, %c1_144, %c0_145] : memref<4x9x9x4xf32, #tpu.memory_space<vmem>>, vector<1x8x8x4xf32>
    %102 = vector.shape_cast %101 : vector<1x8x8x4xf32> to vector<8x8x4xf32>
    %c1_146 = arith.constant 1 : index
    %c0_147 = arith.constant 0 : index
    %c0_148 = arith.constant 0 : index
    %c8_149 = arith.constant 8 : index
    %103 = vector.load %arg8[%c1_146, %c0_147, %c0_148, %c8_149] : memref<4x8x8x36xf32, #tpu.memory_space<vmem>>, vector<1x8x8x4xf32>
    %104 = vector.shape_cast %103 : vector<1x8x8x4xf32> to vector<8x8x4xf32>
    %105 = vector.shape_cast %102 : vector<8x8x4xf32> to vector<1x8x8x4xf32>
    tpu.vector_store %arg8[%c1_146, %c0_147, %c0_148, %c8_149], %105 {strides = array<i32>} : memref<4x8x8x36xf32, #tpu.memory_space<vmem>>, vector<1x8x8x4xf32>,
    %c3_150 = arith.constant 3 : index
    %c0_151 = arith.constant 0 : index
    %c1_152 = arith.constant 1 : index
    %c0_153 = arith.constant 0 : index
    %106 = vector.load %arg7[%c3_150, %c0_151, %c1_152, %c0_153] : memref<4x9x9x4xf32, #tpu.memory_space<vmem>>, vector<1x8x8x4xf32>
    %107 = vector.shape_cast %106 : vector<1x8x8x4xf32> to vector<8x8x4xf32>
    %c1_154 = arith.constant 1 : index
    %c0_155 = arith.constant 0 : index
    %c0_156 = arith.constant 0 : index
    %c20_157 = arith.constant 20 : index
    %108 = vector.load %arg8[%c1_154, %c0_155, %c0_156, %c20_157] : memref<4x8x8x36xf32, #tpu.memory_space<vmem>>, vector<1x8x8x4xf32>
    %109 = vector.shape_cast %108 : vector<1x8x8x4xf32> to vector<8x8x4xf32>
    %110 = vector.shape_cast %107 : vector<8x8x4xf32> to vector<1x8x8x4xf32>
    tpu.vector_store %arg8[%c1_154, %c0_155, %c0_156, %c20_157], %110 {strides = array<i32>} : memref<4x8x8x36xf32, #tpu.memory_space<vmem>>, vector<1x8x8x4xf32>,
    %c3_158 = arith.constant 3 : index
    %c0_159 = arith.constant 0 : index
    %c0_160 = arith.constant 0 : index
    %c8_161 = arith.constant 8 : index
    %111 = vector.load %arg8[%c3_158, %c0_159, %c0_160, %c8_161] : memref<4x8x8x36xf32, #tpu.memory_space<vmem>>, vector<1x8x8x4xf32>
    %112 = vector.shape_cast %111 : vector<1x8x8x4xf32> to vector<8x8x4xf32>
    %113 = vector.shape_cast %107 : vector<8x8x4xf32> to vector<1x8x8x4xf32>
    tpu.vector_store %arg8[%c3_158, %c0_159, %c0_160, %c8_161], %113 {strides = array<i32>} : memref<4x8x8x36xf32, #tpu.memory_space<vmem>>, vector<1x8x8x4xf32>,
    %c1_162 = arith.constant 1 : index
    %c1_163 = arith.constant 1 : index
    %c1_164 = arith.constant 1 : index
    %c0_165 = arith.constant 0 : index
    %114 = vector.load %arg7[%c1_162, %c1_163, %c1_164, %c0_165] : memref<4x9x9x4xf32, #tpu.memory_space<vmem>>, vector<1x8x8x4xf32>
    %115 = vector.shape_cast %114 : vector<1x8x8x4xf32> to vector<8x8x4xf32>
    %c1_166 = arith.constant 1 : index
    %c0_167 = arith.constant 0 : index
    %c0_168 = arith.constant 0 : index
    %c32_169 = arith.constant 32 : index
    %116 = vector.load %arg8[%c1_166, %c0_167, %c0_168, %c32_169] : memref<4x8x8x36xf32, #tpu.memory_space<vmem>>, vector<1x8x8x4xf32>
    %117 = vector.shape_cast %116 : vector<1x8x8x4xf32> to vector<8x8x4xf32>
    %118 = vector.shape_cast %115 : vector<8x8x4xf32> to vector<1x8x8x4xf32>
    tpu.vector_store %arg8[%c1_166, %c0_167, %c0_168, %c32_169], %118 {strides = array<i32>} : memref<4x8x8x36xf32, #tpu.memory_space<vmem>>, vector<1x8x8x4xf32>,
    %c3_170 = arith.constant 3 : index
    %c0_171 = arith.constant 0 : index
    %c0_172 = arith.constant 0 : index
    %c20_173 = arith.constant 20 : index
    %119 = vector.load %arg8[%c3_170, %c0_171, %c0_172, %c20_173] : memref<4x8x8x36xf32, #tpu.memory_space<vmem>>, vector<1x8x8x4xf32>
    %120 = vector.shape_cast %119 : vector<1x8x8x4xf32> to vector<8x8x4xf32>
    %121 = vector.shape_cast %115 : vector<8x8x4xf32> to vector<1x8x8x4xf32>
    tpu.vector_store %arg8[%c3_170, %c0_171, %c0_172, %c20_173], %121 {strides = array<i32>} : memref<4x8x8x36xf32, #tpu.memory_space<vmem>>, vector<1x8x8x4xf32>,
    %c2_174 = arith.constant 2 : index
    %c1_175 = arith.constant 1 : index
    %c0_176 = arith.constant 0 : index
    %c0_177 = arith.constant 0 : index
    %122 = vector.load %arg7[%c2_174, %c1_175, %c0_176, %c0_177] : memref<4x9x9x4xf32, #tpu.memory_space<vmem>>, vector<1x8x8x4xf32>
    %123 = vector.shape_cast %122 : vector<1x8x8x4xf32> to vector<8x8x4xf32>
    %c2_178 = arith.constant 2 : index
    %c0_179 = arith.constant 0 : index
    %c0_180 = arith.constant 0 : index
    %c24_181 = arith.constant 24 : index
    %124 = vector.load %arg8[%c2_178, %c0_179, %c0_180, %c24_181] : memref<4x8x8x36xf32, #tpu.memory_space<vmem>>, vector<1x8x8x4xf32>
    %125 = vector.shape_cast %124 : vector<1x8x8x4xf32> to vector<8x8x4xf32>
    %126 = vector.shape_cast %123 : vector<8x8x4xf32> to vector<1x8x8x4xf32>
    tpu.vector_store %arg8[%c2_178, %c0_179, %c0_180, %c24_181], %126 {strides = array<i32>} : memref<4x8x8x36xf32, #tpu.memory_space<vmem>>, vector<1x8x8x4xf32>,
    %c3_182 = arith.constant 3 : index
    %c1_183 = arith.constant 1 : index
    %c0_184 = arith.constant 0 : index
    %c0_185 = arith.constant 0 : index
    %127 = vector.load %arg7[%c3_182, %c1_183, %c0_184, %c0_185] : memref<4x9x9x4xf32, #tpu.memory_space<vmem>>, vector<1x8x8x4xf32>
    %128 = vector.shape_cast %127 : vector<1x8x8x4xf32> to vector<8x8x4xf32>
    %c2_186 = arith.constant 2 : index
    %c0_187 = arith.constant 0 : index
    %c0_188 = arith.constant 0 : index
    %c28_189 = arith.constant 28 : index
    %129 = vector.load %arg8[%c2_186, %c0_187, %c0_188, %c28_189] : memref<4x8x8x36xf32, #tpu.memory_space<vmem>>, vector<1x8x8x4xf32>
    %130 = vector.shape_cast %129 : vector<1x8x8x4xf32> to vector<8x8x4xf32>
    %131 = vector.shape_cast %128 : vector<8x8x4xf32> to vector<1x8x8x4xf32>
    tpu.vector_store %arg8[%c2_186, %c0_187, %c0_188, %c28_189], %131 {strides = array<i32>} : memref<4x8x8x36xf32, #tpu.memory_space<vmem>>, vector<1x8x8x4xf32>,
    %c3_190 = arith.constant 3 : index
    %c0_191 = arith.constant 0 : index
    %c0_192 = arith.constant 0 : index
    %c24_193 = arith.constant 24 : index
    %132 = vector.load %arg8[%c3_190, %c0_191, %c0_192, %c24_193] : memref<4x8x8x36xf32, #tpu.memory_space<vmem>>, vector<1x8x8x4xf32>
    %133 = vector.shape_cast %132 : vector<1x8x8x4xf32> to vector<8x8x4xf32>
    %134 = vector.shape_cast %128 : vector<8x8x4xf32> to vector<1x8x8x4xf32>
    tpu.vector_store %arg8[%c3_190, %c0_191, %c0_192, %c24_193], %134 {strides = array<i32>} : memref<4x8x8x36xf32, #tpu.memory_space<vmem>>, vector<1x8x8x4xf32>,
    %c2_194 = arith.constant 2 : index
    %c1_195 = arith.constant 1 : index
    %c1_196 = arith.constant 1 : index
    %c0_197 = arith.constant 0 : index
    %135 = vector.load %arg7[%c2_194, %c1_195, %c1_196, %c0_197] : memref<4x9x9x4xf32, #tpu.memory_space<vmem>>, vector<1x8x8x4xf32>
    %136 = vector.shape_cast %135 : vector<1x8x8x4xf32> to vector<8x8x4xf32>
    %c2_198 = arith.constant 2 : index
    %c0_199 = arith.constant 0 : index
    %c0_200 = arith.constant 0 : index
    %c32_201 = arith.constant 32 : index
    %137 = vector.load %arg8[%c2_198, %c0_199, %c0_200, %c32_201] : memref<4x8x8x36xf32, #tpu.memory_space<vmem>>, vector<1x8x8x4xf32>
    %138 = vector.shape_cast %137 : vector<1x8x8x4xf32> to vector<8x8x4xf32>
    %139 = vector.shape_cast %136 : vector<8x8x4xf32> to vector<1x8x8x4xf32>
    tpu.vector_store %arg8[%c2_198, %c0_199, %c0_200, %c32_201], %139 {strides = array<i32>} : memref<4x8x8x36xf32, #tpu.memory_space<vmem>>, vector<1x8x8x4xf32>,
    %c3_202 = arith.constant 3 : index
    %c0_203 = arith.constant 0 : index
    %c0_204 = arith.constant 0 : index
    %c28_205 = arith.constant 28 : index
    %140 = vector.load %arg8[%c3_202, %c0_203, %c0_204, %c28_205] : memref<4x8x8x36xf32, #tpu.memory_space<vmem>>, vector<1x8x8x4xf32>
    %141 = vector.shape_cast %140 : vector<1x8x8x4xf32> to vector<8x8x4xf32>
    %142 = vector.shape_cast %136 : vector<8x8x4xf32> to vector<1x8x8x4xf32>
    tpu.vector_store %arg8[%c3_202, %c0_203, %c0_204, %c28_205], %142 {strides = array<i32>} : memref<4x8x8x36xf32, #tpu.memory_space<vmem>>, vector<1x8x8x4xf32>,
    %c3_206 = arith.constant 3 : index
    %c1_207 = arith.constant 1 : index
    %c1_208 = arith.constant 1 : index
    %c0_209 = arith.constant 0 : index
    %143 = vector.load %arg7[%c3_206, %c1_207, %c1_208, %c0_209] : memref<4x9x9x4xf32, #tpu.memory_space<vmem>>, vector<1x8x8x4xf32>
    %144 = vector.shape_cast %143 : vector<1x8x8x4xf32> to vector<8x8x4xf32>
    %c3_210 = arith.constant 3 : index
    %c0_211 = arith.constant 0 : index
    %c0_212 = arith.constant 0 : index
    %c32_213 = arith.constant 32 : index
    %145 = vector.load %arg8[%c3_210, %c0_211, %c0_212, %c32_213] : memref<4x8x8x36xf32, #tpu.memory_space<vmem>>, vector<1x8x8x4xf32>
    %146 = vector.shape_cast %145 : vector<1x8x8x4xf32> to vector<8x8x4xf32>
    %147 = vector.shape_cast %144 : vector<8x8x4xf32> to vector<1x8x8x4xf32>
    tpu.vector_store %arg8[%c3_210, %c0_211, %c0_212, %c32_213], %147 {strides = array<i32>} : memref<4x8x8x36xf32, #tpu.memory_space<vmem>>, vector<1x8x8x4xf32>,
    %c0_214 = arith.constant 0 : index
    %c0_215 = arith.constant 0 : index
    %c0_216 = arith.constant 0 : index
    %c0_217 = arith.constant 0 : index
    %148 = vector.load %arg8[%c0_214, %c0_215, %c0_216, %c0_217] : memref<4x8x8x36xf32, #tpu.memory_space<vmem>>, vector<4x8x8x36xf32>
    %149 = vector.shape_cast %148 : vector<4x8x8x36xf32> to vector<256x36xf32>
    %c0_218 = arith.constant 0 : index
    %c0_219 = arith.constant 0 : index
    %150 = vector.load %arg4[%c0_218, %c0_219] : memref<36x128xf32, #tpu.memory_space<vmem>>, vector<36x128xf32>
    %cst = arith.constant dense<0.000000e+00> : vector<256x128xf32>
    %151 = tpu.matmul %149, %150, %cst {dimension_numbers = #tpu.dot_dimension_numbers<[1], [0], [0], [1], [0, 0, 1, 1], [], []>} : vector<256x36xf32>, vector<36x128xf32>, vector<256x128xf32> -> vector<256x128xf32>
    %152 = vector.shape_cast %151 : vector<256x128xf32> to vector<4x64x128xf32>
    %cst_220 = arith.constant dense<0xFF800000> : vector<64x128xf32>
    %153 = vector.multi_reduction <maximumf>, %152, %cst_220 [0] : vector<4x64x128xf32> to vector<64x128xf32>
    %c0_221 = arith.constant 0 : index
    %c0_222 = arith.constant 0 : index
    %154 = vector.load %arg5[%c0_221, %c0_222] : memref<1x128xf32, #tpu.memory_space<vmem>>, vector<1x128xf32>
    %155 = vector.broadcast %154 : vector<1x128xf32> to vector<64x128xf32>
    %156 = arith.addf %153, %155 : vector<64x128xf32>
    %cst_223 = arith.constant 0.000000e+00 : f32
    %157 = vector.broadcast %cst_223 : f32 to vector<64x128xf32>
    %158 = arith.maximumf %156, %157 : vector<64x128xf32>
    %c0_224 = arith.constant 0 : index
    %c0_225 = arith.constant 0 : index
    %c0_226 = arith.constant 0 : index
    %c0_227 = arith.constant 0 : index
    %159 = vector.load %arg6[%c0_224, %c0_225, %c0_226, %c0_227] : memref<1x1x64x128xf32, #tpu.memory_space<vmem>>, vector<1x1x64x128xf32>
    %160 = vector.shape_cast %159 : vector<1x1x64x128xf32> to vector<64x128xf32>
    %161 = vector.shape_cast %158 : vector<64x128xf32> to vector<1x1x64x128xf32>
    tpu.vector_store %arg6[%c0_224, %c0_225, %c0_226, %c0_227], %161 {strides = array<i32>} : memref<1x1x64x128xf32, #tpu.memory_space<vmem>>, vector<1x1x64x128xf32>,
    return
  }
  func.func @transform_0(%arg0: i32, %arg1: i32) -> (i32, i32, i32, i32, i32) {
    %c0_i32 = arith.constant 0 : i32
    %c0_i32_0 = arith.constant 0 : i32
    %c0_i32_1 = arith.constant 0 : i32
    %c0_i32_2 = arith.constant 0 : i32
    return %arg0, %c0_i32, %arg1, %c0_i32_0, %c0_i32_1 : i32, i32, i32, i32, i32
  }
  func.func @transform_1(%arg0: i32, %arg1: i32) -> (i32, i32, i32, i32, i32) {
    %c0_i32 = arith.constant 0 : i32
    %c0_i32_0 = arith.constant 0 : i32
    %c0_i32_1 = arith.constant 0 : i32
    %c0_i32_2 = arith.constant 0 : i32
    return %arg0, %arg1, %c0_i32, %c0_i32_0, %c0_i32_1 : i32, i32, i32, i32, i32
  }
  func.func @transform_2(%arg0: i32, %arg1: i32) -> (i32, i32) {
    %c0_i32 = arith.constant 0 : i32
    %c0_i32_0 = arith.constant 0 : i32
    %c0_i32_1 = arith.constant 0 : i32
    return %c0_i32, %c0_i32_0 : i32, i32
  }
  func.func @transform_3(%arg0: i32, %arg1: i32) -> (i32, i32) {
    %c0_i32 = arith.constant 0 : i32
    %c0_i32_0 = arith.constant 0 : i32
    %c0_i32_1 = arith.constant 0 : i32
    return %c0_i32, %c0_i32_0 : i32, i32
  }
  func.func @transform_4(%arg0: i32, %arg1: i32) -> (i32, i32, i32, i32) {
    %c0_i32 = arith.constant 0 : i32
    %c0_i32_0 = arith.constant 0 : i32
    %c0_i32_1 = arith.constant 0 : i32
    return %arg0, %arg1, %c0_i32, %c0_i32_0 : i32, i32, i32, i32
  }
}

</mosaic_0001>

<llo_original>
// kernel: tpu_custom_call.1
$region0: #{tpu_custom_call.1}
  #allocation0 [shape = 'u32[]', space=smem, size = 0x4, offset = 0x4, fixed_abs, tag = 'smem constant byte address 0x4 - core index']
  #allocation1 [shape = 'u32[144,128]{1,0:T(1,128)}', space=vmem, size = 0x12000, scoped, tag = 'internal scratch']
  #allocation2 [shape = 'f32[4,9,9,4]{3,2,1,0:T(8,128)}', space=vmem, size = 0x48000, scoped, tag = 'scratch operand']
  #allocation3 [shape = 'f32[4,8,8,36]{3,2,1,0:T(8,128)}', space=vmem, size = 0x20000, scoped, tag = 'scratch operand']
  %s0 = inlined_call_operand.vmem [shape: f32[2,4,9,9,4], index: 0, kind: input, shape index: {}]
  %s1 = inlined_call_operand.vmem [shape: f32[2,1,4,9,4], index: 1, kind: input, shape index: {}]
  %s2 = inlined_call_operand.vmem [shape: f32[36,128], index: 2, kind: input, shape index: {}]
  %s3 = inlined_call_operand.vmem [shape: f32[1,128], index: 3, kind: input, shape index: {}]
  %s4 = inlined_call_operand.hbm [shape: f32[2,1,64,128], index: 4, kind: output, shape index: {}]
  %s5 = sld [smem:[#allocation0]]
  $region101: #{tpu_custom_call.1} parent=0
    _
  %s7 = ssub.s32 1, %s5
  %s8 = scalar_select 0, %s7, %s5
  $region1: #{tpu_custom_call.1} parent=0
    #allocation4 [shape = 'u8[524288]{0}', space=vmem, size = 0x80000, scoped, tag = 'input window, operand 0']
    #allocation5 [shape = 'u8[65536]{0}', space=vmem, size = 0x10000, scoped, tag = 'output window, operand 0']
    #allocation6 [shape = 's32[2]{0}', space=sflag, size = 0x8, scoped, tag = 'scoped memory for tpu_custom_call.1']
    %9 = vsyncpa [#allocation6], 0
    %s10 = scalar_lea.sflag [#allocation6], 1
    %11 = vsyncpa %s10, 0
    loop: start=0, step=1, limit=4
    $region2: #{tpu_custom_call.1} parent=1 // loop_pre_header
      _
    $region3: #{tpu_custom_call.1} parent=1 // loop_header
      %s13 = sphi 0, %s17
      %p14 = scmp.ge.s32.totalorder %s13, 4
      %s20 = sphi 0, %s32
      %s21 = sphi 0, %s28
      %s22 = sphi 0, %s20
      %s23 = sphi 0, %s21
      %s24 = sphi 0, %s22
      %s25 = sphi 0, %s23
      %s37 = sphi 0, %s39
      %s40 = sphi 0, %s37
      %s41 = sphi 0, %s40
      %s57 = sphi 0, %s41
      %s65 = sphi 0, %s67
      %s68 = sphi 0, %s65
      %s69 = sphi 0, %s68
      %s85 = sphi 0, %s69
      %s89 = sphi 0, %s89
      %s91 = sphi 0, %s89
      %s92 = sphi 0, %s91
      %s106 = sphi 0, %s92
      %s110 = sphi 0, %s110
      %s112 = sphi 0, %s110
      %s113 = sphi 0, %s112
      %s127 = sphi 0, %s113
      %s135 = sphi 0, %s137
      %s138 = sphi 0, %s135
      %s139 = sphi 0, %s138
      %s155 = sphi 0, %s139
    $region4: #{tpu_custom_call.1} parent=1 // loop_header_branch
      %16 = sbr.rel (%p14) target = $region8
    $region5: #{tpu_custom_call.1} parent=1 // loop_body
      %s18 = ssub.s32 %s13, 1
      %s19 = ssub.s32 %s13, 2
      %s26 = sadd.s32 1, %s21
      %p27 = scmp.ge.s32.totalorder %s26, 1
      %s28 = scalar_select %p27, 0, %s26
      %s29 = sadd.s32 1, %s20
      %s30 = scalar_select %p27, %s29, %s20
      %p31 = scmp.ge.s32.totalorder %s30, 2
      %s32 = scalar_select %p31, 0, %s30
      %s33 = ssub.s32 %s20, %s32
      %s34 = ssub.s32 %s21, %s28
      %s35 = sor.u32 %s33, %s34
      %p36 = scmp.eq.s32.totalorder %s35, 0
      %s38 = sadd.s32 %s37, 1
      %s39 = scalar_select %p36, %s37, %s38
      %p42 = pneg %p36
      %p43 = scmp.eq.s32.totalorder %s13, 1
      %p44 = por %p42, %p43
      %p45 = scmp.ne.s32.totalorder %s37, %s40
      %p46 = scmp.eq.s32.totalorder %s13, 0
      %p47 = por %p45, %p46
      %p48 = scmp.ne.s32.totalorder %s37, %s40
      %p49 = scmp.eq.s32.totalorder %s18, 1
      %p50 = por %p48, %p49
      %p51 = scmp.ne.s32.totalorder %s40, %s41
      %p52 = scmp.eq.s32.totalorder %s18, 0
      %p53 = por %p51, %p52
      %p54 = scmp.ne.s32.totalorder %s40, %s41
      %p55 = scmp.eq.s32.totalorder %s19, 1
      %p56 = por %p54, %p55
      %p58 = scmp.ne.s32.totalorder %s41, %s57
      %p59 = scmp.eq.s32.totalorder %s19, 0
      %p60 = por %p58, %p59
      %s61 = ssub.s32 %s20, %s32
      %s62 = ssub.s32 %s21, %s28
      %s63 = sor.u32 %s61, %s62
      %p64 = scmp.eq.s32.totalorder %s63, 0
      %s66 = sadd.s32 %s65, 1
      %s67 = scalar_select %p64, %s65, %s66
      %p70 = pneg %p64
      %p71 = scmp.eq.s32.totalorder %s13, 1
      %p72 = por %p70, %p71
      %p73 = scmp.ne.s32.totalorder %s65, %s68
      %p74 = scmp.eq.s32.totalorder %s13, 0
      %p75 = por %p73, %p74
      %p76 = scmp.ne.s32.totalorder %s65, %s68
      %p77 = scmp.eq.s32.totalorder %s18, 1
      %p78 = por %p76, %p77
      %p79 = scmp.ne.s32.totalorder %s68, %s69
      %p80 = scmp.eq.s32.totalorder %s18, 0
      %p81 = por %p79, %p80
      %p82 = scmp.ne.s32.totalorder %s68, %s69
      %p83 = scmp.eq.s32.totalorder %s19, 1
      %p84 = por %p82, %p83
      %p86 = scmp.ne.s32.totalorder %s69, %s85
      %p87 = scmp.eq.s32.totalorder %s19, 0
      %p88 = por %p86, %p87
      %s90 = sadd.s32 %s89, 1
      %p93 = scmp.eq.s32.totalorder %s13, 1
      %p94 = scmp.ne.s32.totalorder %s89, %s91
      %p95 = scmp.eq.s32.totalorder %s13, 0
      %p96 = por %p94, %p95
      %p97 = scmp.ne.s32.totalorder %s89, %s91
      %p98 = scmp.eq.s32.totalorder %s18, 1
      %p99 = por %p97, %p98
      %p100 = scmp.ne.s32.totalorder %s91, %s92
      %p101 = scmp.eq.s32.totalorder %s18, 0
      %p102 = por %p100, %p101
      %p103 = scmp.ne.s32.totalorder %s91, %s92
      %p104 = scmp.eq.s32.totalorder %s19, 1
      %p105 = por %p103, %p104
      %p107 = scmp.ne.s32.totalorder %s92, %s106
      %p108 = scmp.eq.s32.totalorder %s19, 0
      %p109 = por %p107, %p108
      %s111 = sadd.s32 %s110, 1
      %p114 = scmp.eq.s32.totalorder %s13, 1
      %p115 = scmp.ne.s32.totalorder %s110, %s112
      %p116 = scmp.eq.s32.totalorder %s13, 0
      %p117 = por %p115, %p116
      %p118 = scmp.ne.s32.totalorder %s110, %s112
      %p119 = scmp.eq.s32.totalorder %s18, 1
      %p120 = por %p118, %p119
      %p121 = scmp.ne.s32.totalorder %s112, %s113
      %p122 = scmp.eq.s32.totalorder %s18, 0
      %p123 = por %p121, %p122
      %p124 = scmp.ne.s32.totalorder %s112, %s113
      %p125 = scmp.eq.s32.totalorder %s19, 1
      %p126 = por %p124, %p125
      %p128 = scmp.ne.s32.totalorder %s113, %s127
      %p129 = scmp.eq.s32.totalorder %s19, 0
      %p130 = por %p128, %p129
      %s131 = ssub.s32 %s20, %s32
      %s132 = ssub.s32 %s21, %s28
      %s133 = sor.u32 %s131, %s132
      %p134 = scmp.eq.s32.totalorder %s133, 0
      %s136 = sadd.s32 %s135, 1
      %s137 = scalar_select %p134, %s135, %s136
      %p140 = pneg %p134
      %p141 = scmp.eq.s32.totalorder %s13, 1
      %p142 = por %p140, %p141
      %p143 = scmp.ne.s32.totalorder %s135, %s138
      %p144 = scmp.eq.s32.totalorder %s13, 0
      %p145 = por %p143, %p144
      %p146 = scmp.ne.s32.totalorder %s135, %s138
      %p147 = scmp.eq.s32.totalorder %s18, 1
      %p148 = por %p146, %p147
      %p149 = scmp.ne.s32.totalorder %s138, %s139
      %p150 = scmp.eq.s32.totalorder %s18, 0
      %p151 = por %p149, %p150
      %p152 = scmp.ne.s32.totalorder %s138, %s139
      %p153 = scmp.eq.s32.totalorder %s19, 1
      %p154 = por %p152, %p153
      %p156 = scmp.ne.s32.totalorder %s139, %s155
      %p157 = scmp.eq.s32.totalorder %s19, 0
      %p158 = por %p156, %p157
      %p159 = scmp.le.s32.totalorder 1, %s13
      %p160 = scmp.lt.s32.totalorder %s13, 3
      %p161 = pnand %p159, %p160
      %p162 = pneg %p161
      // Predicated region
      $region9: #{tpu_custom_call.1} parent=5 // pred_check
        _
      $region10: #{tpu_custom_call.1} parent=5 // pred_check_branch
        %164 = sbr.rel (%p161) target = $region12
      $region11: #{tpu_custom_call.1} parent=5 // pred_region
        %s165 = ssub.s32 %s13, 1
        // Predicated region
        $region13: #{tpu_custom_call.1} parent=11 // pred_check
          %p166 = pneg %p102
        $region14: #{tpu_custom_call.1} parent=11 // pred_check_branch
          %168 = sbr.rel (%p166) target = $region16
        $region15: #{tpu_custom_call.1} parent=11 // pred_region
          _
        $region16: #{tpu_custom_call.1} parent=11 // pred_fallthru
          _
        // Predicated region
        $region17: #{tpu_custom_call.1} parent=11 // pred_check
          %p169 = pneg %p123
        $region18: #{tpu_custom_call.1} parent=11 // pred_check_branch
          %171 = sbr.rel (%p169) target = $region20
        $region19: #{tpu_custom_call.1} parent=11 // pred_region
          _
        $region20: #{tpu_custom_call.1} parent=11 // pred_fallthru
          _
      $region12: #{tpu_custom_call.1} parent=5 // pred_fallthru
        _
      %p172 = scmp.lt.s32.totalorder %s13, 2
      // Predicated region
      $region21: #{tpu_custom_call.1} parent=5 // pred_check
        %p173 = pneg %p172
      $region22: #{tpu_custom_call.1} parent=5 // pred_check_branch
        %175 = sbr.rel (%p173) target = $region24
      $region23: #{tpu_custom_call.1} parent=5 // pred_region
        // Predicated region
        $region25: #{tpu_custom_call.1} parent=23 // pred_check
          %p176 = pneg %p47
        $region26: #{tpu_custom_call.1} parent=23 // pred_check_branch
          %178 = sbr.rel (%p176) target = $region28
        $region27: #{tpu_custom_call.1} parent=23 // pred_region
          %s179 = sand.u32 %s37, 1
          %s180 = sand.u32 %s37, 1
          %s181 = smul.addr %s180, 512
          %s182 = scalar_lea.vmem [#allocation4], %s181
          %s183 = smul.u32 8, %s21
          %s184 = ssub.s32 9, %s183
          %p185 = scmp.lt.s32.totalorder %s184, 8
          %s186 = scalar_select %p185, %s184, 8
          %s187 = smul.u32 512, %s186
          %s188 = smul.u32 %s187, 2
          %p189 = scmp.ne.s32.totalorder 0, %s188
          %s190 = smul.addr %s183, 2
          %s191 = smul.addr %s20, 72
          %s192 = sadd.s32 %s190, %s191
          %s193 = smul.addr %s192, 8
          %s194 = scalar_lea.vmem %s0, %s193
          %s195 = smul.u32 %s186, 2
          // Predicated region
          $region29: #{tpu_custom_call.1} parent=27 // pred_check
            %p196 = pneg %p189
          $region30: #{tpu_custom_call.1} parent=27 // pred_check_branch
            %198 = sbr.rel (%p196) target = $region32
          $region31: #{tpu_custom_call.1} parent=27 // pred_region
            // Predicated region
            $region33: #{tpu_custom_call.1} parent=31 // pred_check
              _
            $region34: #{tpu_custom_call.1} parent=31 // pred_check_branch
              %200 = sbr.rel (0) target = $region36
            $region35: #{tpu_custom_call.1} parent=31 // pred_region
              // Predicated region
              $region55: #{tpu_custom_call.1} parent=35 // pred_check
                _
              $region56: #{tpu_custom_call.1} parent=35 // pred_check_branch
                %381 = sbr.rel (0) target = $region58
              $region57: #{tpu_custom_call.1} parent=35 // pred_region
                %s382 = sshrl.u32 %s195, 4
                // While loop
                $region59: #{tpu_custom_call.1} parent=57 // loop_pre_header
                  _
                $region60: #{tpu_custom_call.1} parent=57 // loop_header
                  %s384 = sphi 0, %s386
                  %p385 = scmp.ge.s32.totalorder %s384, %s382
                  %s389 = sphi 0, %s522
                  %s390 = sphi %s194, %s525
                  %s391 = sphi %s182, %s526
                $region61: #{tpu_custom_call.1} parent=57 // loop_header_branch
                  %388 = sbr.rel (%p385) target = $region65
                $region62: #{tpu_custom_call.1} parent=57 // loop_body
                  %v392 = vld [vmem:[%s390] sm:$0xff]
                  %393 = vst [vmem:[%s391] sm:$0xff] %v392
                  %v394 = vld [vmem:[%s390 + $0x8] sm:$0xff]
                  %395 = vst [vmem:[%s391 + $0x8] sm:$0xff] %v394
                  %v396 = vld [vmem:[%s390 + $0x10] sm:$0xff]
                  %397 = vst [vmem:[%s391 + $0x10] sm:$0xff] %v396
                  %v398 = vld [vmem:[%s390 + $0x18] sm:$0xff]
                  %399 = vst [vmem:[%s391 + $0x18] sm:$0xff] %v398
                  %v400 = vld [vmem:[%s390 + $0x20] sm:$0xff]
                  %401 = vst [vmem:[%s391 + $0x20] sm:$0xff] %v400
                  %v402 = vld [vmem:[%s390 + $0x28] sm:$0xff]
                  %403 = vst [vmem:[%s391 + $0x28] sm:$0xff] %v402
                  %v404 = vld [vmem:[%s390 + $0x30] sm:$0xff]
                  %405 = vst [vmem:[%s391 + $0x30] sm:$0xff] %v404
                  %v406 = vld [vmem:[%s390 + $0x38] sm:$0xff]
                  %407 = vst [vmem:[%s391 + $0x38] sm:$0xff] %v406
                  %v408 = vld [vmem:[%s390 + $0x40] sm:$0xff]
                  %409 = vst [vmem:[%s391 + $0x40] sm:$0xff] %v408
                  %v410 = vld [vmem:[%s390 + $0x48] sm:$0xff]
                  %411 = vst [vmem:[%s391 + $0x48] sm:$0xff] %v410
                  %v412 = vld [vmem:[%s390 + $0x50] sm:$0xff]
                  %413 = vst [vmem:[%s391 + $0x50] sm:$0xff] %v412
                  %v414 = vld [vmem:[%s390 + $0x58] sm:$0xff]
                  %415 = vst [vmem:[%s391 + $0x58] sm:$0xff] %v414
                  %v416 = vld [vmem:[%s390 + $0x60] sm:$0xff]
                  %417 = vst [vmem:[%s391 + $0x60] sm:$0xff] %v416
                  %v418 = vld [vmem:[%s390 + $0x68] sm:$0xff]
                  %419 = vst [vmem:[%s391 + $0x68] sm:$0xff] %v418
                  %v420 = vld [vmem:[%s390 + $0x70] sm:$0xff]
                  %421 = vst [vmem:[%s391 + $0x70] sm:$0xff] %v420
                  %v422 = vld [vmem:[%s390 + $0x78] sm:$0xff]
                  %423 = vst [vmem:[%s391 + $0x78] sm:$0xff] %v422
                  %v424 = vld [vmem:[%s390 + $0x90] sm:$0xff]
                  %425 = vst [vmem:[%s391 + $0x80] sm:$0xff] %v424
                  %v426 = vld [vmem:[%s390 + $0x98] sm:$0xff]
                  %427 = vst [vmem:[%s391 + $0x88] sm:$0xff] %v426
                  %v428 = vld [vmem:[%s390 + $0xa0] sm:$0xff]
                  %429 = vst [vmem:[%s391 + $0x90] sm:$0xff] %v428
                  %v430 = vld [vmem:[%s390 + $0xa8] sm:$0xff]
                  %431 = vst [vmem:[%s391 + $0x98] sm:$0xff] %v430
                  %v432 = vld [vmem:[%s390 + $0xb0] sm:$0xff]
                  %433 = vst [vmem:[%s391 + $0xa0] sm:$0xff] %v432
                  %v434 = vld [vmem:[%s390 + $0xb8] sm:$0xff]
                  %435 = vst [vmem:[%s391 + $0xa8] sm:$0xff] %v434
                  %v436 = vld [vmem:[%s390 + $0xc0] sm:$0xff]
                  %437 = vst [vmem:[%s391 + $0xb0] sm:$0xff] %v436
                  %v438 = vld [vmem:[%s390 + $0xc8] sm:$0xff]
                  %439 = vst [vmem:[%s391 + $0xb8] sm:$0xff] %v438
                  %v440 = vld [vmem:[%s390 + $0xd0] sm:$0xff]
                  %441 = vst [vmem:[%s391 + $0xc0] sm:$0xff] %v440
                  %v442 = vld [vmem:[%s390 + $0xd8] sm:$0xff]
                  %443 = vst [vmem:[%s391 + $0xc8] sm:$0xff] %v442
                  %v444 = vld [vmem:[%s390 + $0xe0] sm:$0xff]
                  %445 = vst [vmem:[%s391 + $0xd0] sm:$0xff] %v444
                  %v446 = vld [vmem:[%s390 + $0xe8] sm:$0xff]
                  %447 = vst [vmem:[%s391 + $0xd8] sm:$0xff] %v446
                  %v448 = vld [vmem:[%s390 + $0xf0] sm:$0xff]
                  %449 = vst [vmem:[%s391 + $0xe0] sm:$0xff] %v448
                  %v450 = vld [vmem:[%s390 + $0xf8] sm:$0xff]
                  %451 = vst [vmem:[%s391 + $0xe8] sm:$0xff] %v450
                  %v452 = vld [vmem:[%s390 + $0x100] sm:$0xff]
                  %453 = vst [vmem:[%s391 + $0xf0] sm:$0xff] %v452
                  %v454 = vld [vmem:[%s390 + $0x108] sm:$0xff]
                  %455 = vst [vmem:[%s391 + $0xf8] sm:$0xff] %v454
                  %v456 = vld [vmem:[%s390 + $0x120] sm:$0xff]
                  %457 = vst [vmem:[%s391 + $0x100] sm:$0xff] %v456
                  %v458 = vld [vmem:[%s390 + $0x128] sm:$0xff]
                  %459 = vst [vmem:[%s391 + $0x108] sm:$0xff] %v458
                  %v460 = vld [vmem:[%s390 + $0x130] sm:$0xff]
                  %461 = vst [vmem:[%s391 + $0x110] sm:$0xff] %v460
                  %v462 = vld [vmem:[%s390 + $0x138] sm:$0xff]
                  %463 = vst [vmem:[%s391 + $0x118] sm:$0xff] %v462
                  %v464 = vld [vmem:[%s390 + $0x140] sm:$0xff]
                  %465 = vst [vmem:[%s391 + $0x120] sm:$0xff] %v464
                  %v466 = vld [vmem:[%s390 + $0x148] sm:$0xff]
                  %467 = vst [vmem:[%s391 + $0x128] sm:$0xff] %v466
                  %v468 = vld [vmem:[%s390 + $0x150] sm:$0xff]
                  %469 = vst [vmem:[%s391 + $0x130] sm:$0xff] %v468
                  %v470 = vld [vmem:[%s390 + $0x158] sm:$0xff]
                  %471 = vst [vmem:[%s391 + $0x138] sm:$0xff] %v470
                  %v472 = vld [vmem:[%s390 + $0x160] sm:$0xff]
                  %473 = vst [vmem:[%s391 + $0x140] sm:$0xff] %v472
                  %v474 = vld [vmem:[%s390 + $0x168] sm:$0xff]
                  %475 = vst [vmem:[%s391 + $0x148] sm:$0xff] %v474
                  %v476 = vld [vmem:[%s390 + $0x170] sm:$0xff]
                  %477 = vst [vmem:[%s391 + $0x150] sm:$0xff] %v476
                  %v478 = vld [vmem:[%s390 + $0x178] sm:$0xff]
                  %479 = vst [vmem:[%s391 + $0x158] sm:$0xff] %v478
                  %v480 = vld [vmem:[%s390 + $0x180] sm:$0xff]
                  %481 = vst [vmem:[%s391 + $0x160] sm:$0xff] %v480
                  %v482 = vld [vmem:[%s390 + $0x188] sm:$0xff]
                  %483 = vst [vmem:[%s391 + $0x168] sm:$0xff] %v482
                  %v484 = vld [vmem:[%s390 + $0x190] sm:$0xff]
                  %485 = vst [vmem:[%s391 + $0x170] sm:$0xff] %v484
                  %v486 = vld [vmem:[%s390 + $0x198] sm:$0xff]
                  %487 = vst [vmem:[%s391 + $0x178] sm:$0xff] %v486
                  %v488 = vld [vmem:[%s390 + $0x1b0] sm:$0xff]
                  %489 = vst [vmem:[%s391 + $0x180] sm:$0xff] %v488
                  %v490 = vld [vmem:[%s390 + $0x1b8] sm:$0xff]
                  %491 = vst [vmem:[%s391 + $0x188] sm:$0xff] %v490
                  %v492 = vld [vmem:[%s390 + $0x1c0] sm:$0xff]
                  %493 = vst [vmem:[%s391 + $0x190] sm:$0xff] %v492
                  %v494 = vld [vmem:[%s390 + $0x1c8] sm:$0xff]
                  %495 = vst [vmem:[%s391 + $0x198] sm:$0xff] %v494
                  %v496 = vld [vmem:[%s390 + $0x1d0] sm:$0xff]
                  %497 = vst [vmem:[%s391 + $0x1a0] sm:$0xff] %v496
                  %v498 = vld [vmem:[%s390 + $0x1d8] sm:$0xff]
                  %499 = vst [vmem:[%s391 + $0x1a8] sm:$0xff] %v498
                  %v500 = vld [vmem:[%s390 + $0x1e0] sm:$0xff]
                  %501 = vst [vmem:[%s391 + $0x1b0] sm:$0xff] %v500
                  %v502 = vld [vmem:[%s390 + $0x1e8] sm:$0xff]
                  %503 = vst [vmem:[%s391 + $0x1b8] sm:$0xff] %v502
                  %v504 = vld [vmem:[%s390 + $0x1f0] sm:$0xff]
                  %505 = vst [vmem:[%s391 + $0x1c0] sm:$0xff] %v504
                  %v506 = vld [vmem:[%s390 + $0x1f8] sm:$0xff]
                  %507 = vst [vmem:[%s391 + $0x1c8] sm:$0xff] %v506
                  %v508 = vld [vmem:[%s390 + $0x200] sm:$0xff]
                  %509 = vst [vmem:[%s391 + $0x1d0] sm:$0xff] %v508
                  %v510 = vld [vmem:[%s390 + $0x208] sm:$0xff]
                  %511 = vst [vmem:[%s391 + $0x1d8] sm:$0xff] %v510
                  %v512 = vld [vmem:[%s390 + $0x210] sm:$0xff]
                  %513 = vst [vmem:[%s391 + $0x1e0] sm:$0xff] %v512
                  %v514 = vld [vmem:[%s390 + $0x218] sm:$0xff]
                  %515 = vst [vmem:[%s391 + $0x1e8] sm:$0xff] %v514
                  %v516 = vld [vmem:[%s390 + $0x220] sm:$0xff]
                  %517 = vst [vmem:[%s391 + $0x1f0] sm:$0xff] %v516
                  %v518 = vld [vmem:[%s390 + $0x228] sm:$0xff]
                  %519 = vst [vmem:[%s391 + $0x1f8] sm:$0xff] %v518
                  %s520 = sadd.s32 1, %s389
                  %p521 = scmp.ge.s32.totalorder %s520, %s382
                  %s522 = scalar_select %p521, 0, %s520
                  %s523 = smul.u32 %s522, 128
                  %s524 = smul.u32 %s522, 128
                  %s525 = scalar_lea.vmem %s194, %s523
                  %s526 = scalar_lea.vmem %s182, %s524 [#allocation4]
                $region63: #{tpu_custom_call.1} parent=57 // loop_footer
                  %s386 = sadd.s32 %s384, 1
                $region64: #{tpu_custom_call.1} parent=57 // loop_footer_branch
                  %383 = sbr.rel target = $region60
                $region65: #{tpu_custom_call.1} parent=57 // loop_exit
                  _
                %s527 = sshrl.u32 %s195, 4
                %s528 = sand.u32 %s195, 15
                %s529 = smul.u32 %s527, 16
                %s530 = smul.u32 8, %s529
                %s531 = scalar_lea.vmem %s194, %s530
                %s532 = smul.u32 8, %s529
                %s533 = scalar_lea.vmem %s182, %s532 [#allocation4]
                // While loop
                $region66: #{tpu_custom_call.1} parent=57 // loop_pre_header
                  _
                $region67: #{tpu_custom_call.1} parent=57 // loop_header
                  %s535 = sphi 0, %s537
                  %p536 = scmp.ge.s32.totalorder %s535, %s528
                  %s540 = sphi 0, %s553
                  %s541 = sphi %s531, %s556
                  %s542 = sphi %s533, %s557
                $region68: #{tpu_custom_call.1} parent=57 // loop_header_branch
                  %539 = sbr.rel (%p536) target = $region72
                $region69: #{tpu_custom_call.1} parent=57 // loop_body
                  %v543 = vld [vmem:[%s541] sm:$0xff]
                  %544 = vst [vmem:[%s542] sm:$0xff] %v543
                  %v545 = vld [vmem:[%s541 + $0x90] sm:$0xff]
                  %546 = vst [vmem:[%s542 + $0x80] sm:$0xff] %v545
                  %v547 = vld [vmem:[%s541 + $0x120] sm:$0xff]
                  %548 = vst [vmem:[%s542 + $0x100] sm:$0xff] %v547
                  %v549 = vld [vmem:[%s541 + $0x1b0] sm:$0xff]
                  %550 = vst [vmem:[%s542 + $0x180] sm:$0xff] %v549
                  %s551 = sadd.s32 1, %s540
                  %p552 = scmp.ge.s32.totalorder %s551, %s528
                  %s553 = scalar_select %p552, 0, %s551
                  %s554 = smul.u32 %s553, 8
                  %s555 = smul.u32 %s553, 8
                  %s556 = scalar_lea.vmem %s531, %s554
                  %s557 = scalar_lea.vmem %s533, %s555 [#allocation4]
                $region70: #{tpu_custom_call.1} parent=57 // loop_footer
                  %s537 = sadd.s32 %s535, 1
                $region71: #{tpu_custom_call.1} parent=57 // loop_footer_branch
                  %534 = sbr.rel target = $region67
                $region72: #{tpu_custom_call.1} parent=57 // loop_exit
                  _
              $region58: #{tpu_custom_call.1} parent=35 // pred_fallthru
                _
              // Predicated region
              $region73: #{tpu_custom_call.1} parent=35 // pred_check
                _
              $region74: #{tpu_custom_call.1} parent=35 // pred_check_branch
                %559 = sbr.rel target = $region76
              $region75: #{tpu_custom_call.1} parent=35 // pred_region
                _
              $region76: #{tpu_custom_call.1} parent=35 // pred_fallthru
                _
            $region36: #{tpu_custom_call.1} parent=31 // pred_fallthru
              _
            // Predicated region
            $region37: #{tpu_custom_call.1} parent=31 // pred_check
              _
            $region38: #{tpu_custom_call.1} parent=31 // pred_check_branch
              %202 = sbr.rel target = $region40
            $region39: #{tpu_custom_call.1} parent=31 // pred_region
              %s204 = sshrl.u32 %s195, 4
              // While loop
              $region41: #{tpu_custom_call.1} parent=39 // loop_pre_header
                _
              $region42: #{tpu_custom_call.1} parent=39 // loop_header
                %s206 = sphi 0, %s208
                %p207 = scmp.ge.s32.totalorder %s206, %s204
                %s211 = sphi 0, %s344
                %s212 = sphi %s194, %s347
                %s213 = sphi %s182, %s348
              $region43: #{tpu_custom_call.1} parent=39 // loop_header_branch
                %210 = sbr.rel (%p207) target = $region47
              $region44: #{tpu_custom_call.1} parent=39 // loop_body
                %v214 = vld [vmem:[%s212] sm:$0xff]
                %215 = vst [vmem:[%s213] sm:$0xff] %v214
                %v216 = vld [vmem:[%s212 + $0x8] sm:$0xff]
                %217 = vst [vmem:[%s213 + $0x8] sm:$0xff] %v216
                %v218 = vld [vmem:[%s212 + $0x10] sm:$0xff]
                %219 = vst [vmem:[%s213 + $0x10] sm:$0xff] %v218
                %v220 = vld [vmem:[%s212 + $0x18] sm:$0xff]
                %221 = vst [vmem:[%s213 + $0x18] sm:$0xff] %v220
                %v222 = vld [vmem:[%s212 + $0x20] sm:$0xff]
                %223 = vst [vmem:[%s213 + $0x20] sm:$0xff] %v222
                %v224 = vld [vmem:[%s212 + $0x28] sm:$0xff]
                %225 = vst [vmem:[%s213 + $0x28] sm:$0xff] %v224
                %v226 = vld [vmem:[%s212 + $0x30] sm:$0xff]
                %227 = vst [vmem:[%s213 + $0x30] sm:$0xff] %v226
                %v228 = vld [vmem:[%s212 + $0x38] sm:$0xff]
                %229 = vst [vmem:[%s213 + $0x38] sm:$0xff] %v228
                %v230 = vld [vmem:[%s212 + $0x40] sm:$0xff]
                %231 = vst [vmem:[%s213 + $0x40] sm:$0xff] %v230
                %v232 = vld [vmem:[%s212 + $0x48] sm:$0xff]
                %233 = vst [vmem:[%s213 + $0x48] sm:$0xff] %v232
                %v234 = vld [vmem:[%s212 + $0x50] sm:$0xff]
                %235 = vst [vmem:[%s213 + $0x50] sm:$0xff] %v234
                %v236 = vld [vmem:[%s212 + $0x58] sm:$0xff]
                %237 = vst [vmem:[%s213 + $0x58] sm:$0xff] %v236
                %v238 = vld [vmem:[%s212 + $0x60] sm:$0xff]
                %239 = vst [vmem:[%s213 + $0x60] sm:$0xff] %v238
                %v240 = vld [vmem:[%s212 + $0x68] sm:$0xff]
                %241 = vst [vmem:[%s213 + $0x68] sm:$0xff] %v240
                %v242 = vld [vmem:[%s212 + $0x70] sm:$0xff]
                %243 = vst [vmem:[%s213 + $0x70] sm:$0xff] %v242
                %v244 = vld [vmem:[%s212 + $0x78] sm:$0xff]
                %245 = vst [vmem:[%s213 + $0x78] sm:$0xff] %v244
                %v246 = vld [vmem:[%s212 + $0x90] sm:$0xff]
                %247 = vst [vmem:[%s213 + $0x80] sm:$0xff] %v246
                %v248 = vld [vmem:[%s212 + $0x98] sm:$0xff]
                %249 = vst [vmem:[%s213 + $0x88] sm:$0xff] %v248
                %v250 = vld [vmem:[%s212 + $0xa0] sm:$0xff]
                %251 = vst [vmem:[%s213 + $0x90] sm:$0xff] %v250
                %v252 = vld [vmem:[%s212 + $0xa8] sm:$0xff]
                %253 = vst [vmem:[%s213 + $0x98] sm:$0xff] %v252
                %v254 = vld [vmem:[%s212 + $0xb0] sm:$0xff]
                %255 = vst [vmem:[%s213 + $0xa0] sm:$0xff] %v254
                %v256 = vld [vmem:[%s212 + $0xb8] sm:$0xff]
                %257 = vst [vmem:[%s213 + $0xa8] sm:$0xff] %v256
                %v258 = vld [vmem:[%s212 + $0xc0] sm:$0xff]
                %259 = vst [vmem:[%s213 + $0xb0] sm:$0xff] %v258
                %v260 = vld [vmem:[%s212 + $0xc8] sm:$0xff]
                %261 = vst [vmem:[%s213 + $0xb8] sm:$0xff] %v260
                %v262 = vld [vmem:[%s212 + $0xd0] sm:$0xff]
                %263 = vst [vmem:[%s213 + $0xc0] sm:$0xff] %v262
                %v264 = vld [vmem:[%s212 + $0xd8] sm:$0xff]
                %265 = vst [vmem:[%s213 + $0xc8] sm:$0xff] %v264
                %v266 = vld [vmem:[%s212 + $0xe0] sm:$0xff]
                %267 = vst [vmem:[%s213 + $0xd0] sm:$0xff] %v266
                %v268 = vld [vmem:[%s212 + $0xe8] sm:$0xff]
                %269 = vst [vmem:[%s213 + $0xd8] sm:$0xff] %v268
                %v270 = vld [vmem:[%s212 + $0xf0] sm:$0xff]
                %271 = vst [vmem:[%s213 + $0xe0] sm:$0xff] %v270
                %v272 = vld [vmem:[%s212 + $0xf8] sm:$0xff]
                %273 = vst [vmem:[%s213 + $0xe8] sm:$0xff] %v272
                %v274 = vld [vmem:[%s212 + $0x100] sm:$0xff]
                %275 = vst [vmem:[%s213 + $0xf0] sm:$0xff] %v274
                %v276 = vld [vmem:[%s212 + $0x108] sm:$0xff]
                %277 = vst [vmem:[%s213 + $0xf8] sm:$0xff] %v276
                %v278 = vld [vmem:[%s212 + $0x120] sm:$0xff]
                %279 = vst [vmem:[%s213 + $0x100] sm:$0xff] %v278
                %v280 = vld [vmem:[%s212 + $0x128] sm:$0xff]
                %281 = vst [vmem:[%s213 + $0x108] sm:$0xff] %v280
                %v282 = vld [vmem:[%s212 + $0x130] sm:$0xff]
                %283 = vst [vmem:[%s213 + $0x110] sm:$0xff] %v282
                %v284 = vld [vmem:[%s212 + $0x138] sm:$0xff]
                %285 = vst [vmem:[%s213 + $0x118] sm:$0xff] %v284
                %v286 = vld [vmem:[%s212 + $0x140] sm:$0xff]
                %287 = vst [vmem:[%s213 + $0x120] sm:$0xff] %v286
                %v288 = vld [vmem:[%s212 + $0x148] sm:$0xff]
                %289 = vst [vmem:[%s213 + $0x128] sm:$0xff] %v288
                %v290 = vld [vmem:[%s212 + $0x150] sm:$0xff]
                %291 = vst [vmem:[%s213 + $0x130] sm:$0xff] %v290
                %v292 = vld [vmem:[%s212 + $0x158] sm:$0xff]
                %293 = vst [vmem:[%s213 + $0x138] sm:$0xff] %v292
                %v294 = vld [vmem:[%s212 + $0x160] sm:$0xff]
                %295 = vst [vmem:[%s213 + $0x140] sm:$0xff] %v294
                %v296 = vld [vmem:[%s212 + $0x168] sm:$0xff]
                %297 = vst [vmem:[%s213 + $0x148] sm:$0xff] %v296
                %v298 = vld [vmem:[%s212 + $0x170] sm:$0xff]
                %299 = vst [vmem:[%s213 + $0x150] sm:$0xff] %v298
                %v300 = vld [vmem:[%s212 + $0x178] sm:$0xff]
                %301 = vst [vmem:[%s213 + $0x158] sm:$0xff] %v300
                %v302 = vld [vmem:[%s212 + $0x180] sm:$0xff]
                %303 = vst [vmem:[%s213 + $0x160] sm:$0xff] %v302
                %v304 = vld [vmem:[%s212 + $0x188] sm:$0xff]
                %305 = vst [vmem:[%s213 + $0x168] sm:$0xff] %v304
                %v306 = vld [vmem:[%s212 + $0x190] sm:$0xff]
                %307 = vst [vmem:[%s213 + $0x170] sm:$0xff] %v306
                %v308 = vld [vmem:[%s212 + $0x198] sm:$0xff]
                %309 = vst [vmem:[%s213 + $0x178] sm:$0xff] %v308
                %v310 = vld [vmem:[%s212 + $0x1b0] sm:$0xff]
                %311 = vst [vmem:[%s213 + $0x180] sm:$0xff] %v310
                %v312 = vld [vmem:[%s212 + $0x1b8] sm:$0xff]
                %313 = vst [vmem:[%s213 + $0x188] sm:$0xff] %v312
                %v314 = vld [vmem:[%s212 + $0x1c0] sm:$0xff]
                %315 = vst [vmem:[%s213 + $0x190] sm:$0xff] %v314
                %v316 = vld [vmem:[%s212 + $0x1c8] sm:$0xff]
                %317 = vst [vmem:[%s213 + $0x198] sm:$0xff] %v316
                %v318 = vld [vmem:[%s212 + $0x1d0] sm:$0xff]
                %319 = vst [vmem:[%s213 + $0x1a0] sm:$0xff] %v318
                %v320 = vld [vmem:[%s212 + $0x1d8] sm:$0xff]
                %321 = vst [vmem:[%s213 + $0x1a8] sm:$0xff] %v320
                %v322 = vld [vmem:[%s212 + $0x1e0] sm:$0xff]
                %323 = vst [vmem:[%s213 + $0x1b0] sm:$0xff] %v322
                %v324 = vld [vmem:[%s212 + $0x1e8] sm:$0xff]
                %325 = vst [vmem:[%s213 + $0x1b8] sm:$0xff] %v324
                %v326 = vld [vmem:[%s212 + $0x1f0] sm:$0xff]
                %327 = vst [vmem:[%s213 + $0x1c0] sm:$0xff] %v326
                %v328 = vld [vmem:[%s212 + $0x1f8] sm:$0xff]
                %329 = vst [vmem:[%s213 + $0x1c8] sm:$0xff] %v328
                %v330 = vld [vmem:[%s212 + $0x200] sm:$0xff]
                %331 = vst [vmem:[%s213 + $0x1d0] sm:$0xff] %v330
                %v332 = vld [vmem:[%s212 + $0x208] sm:$0xff]
                %333 = vst [vmem:[%s213 + $0x1d8] sm:$0xff] %v332
                %v334 = vld [vmem:[%s212 + $0x210] sm:$0xff]
                %335 = vst [vmem:[%s213 + $0x1e0] sm:$0xff] %v334
                %v336 = vld [vmem:[%s212 + $0x218] sm:$0xff]
                %337 = vst [vmem:[%s213 + $0x1e8] sm:$0xff] %v336
                %v338 = vld [vmem:[%s212 + $0x220] sm:$0xff]
                %339 = vst [vmem:[%s213 + $0x1f0] sm:$0xff] %v338
                %v340 = vld [vmem:[%s212 + $0x228] sm:$0xff]
                %341 = vst [vmem:[%s213 + $0x1f8] sm:$0xff] %v340
                %s342 = sadd.s32 1, %s211
                %p343 = scmp.ge.s32.totalorder %s342, %s204
                %s344 = scalar_select %p343, 0, %s342
                %s345 = smul.u32 %s344, 128
                %s346 = smul.u32 %s344, 128
                %s347 = scalar_lea.vmem %s194, %s345
                %s348 = scalar_lea.vmem %s182, %s346 [#allocation4]
              $region45: #{tpu_custom_call.1} parent=39 // loop_footer
                %s208 = sadd.s32 %s206, 1
              $region46: #{tpu_custom_call.1} parent=39 // loop_footer_branch
                %205 = sbr.rel target = $region42
              $region47: #{tpu_custom_call.1} parent=39 // loop_exit
                _
              %s349 = sshrl.u32 %s195, 4
              %s350 = sand.u32 %s195, 15
              %s351 = smul.u32 %s349, 16
              %s352 = smul.u32 8, %s351
              %s353 = scalar_lea.vmem %s194, %s352
              %s354 = smul.u32 8, %s351
              %s355 = scalar_lea.vmem %s182, %s354 [#allocation4]
              // While loop
              $region48: #{tpu_custom_call.1} parent=39 // loop_pre_header
                _
              $region49: #{tpu_custom_call.1} parent=39 // loop_header
                %s357 = sphi 0, %s359
                %p358 = scmp.ge.s32.totalorder %s357, %s350
                %s362 = sphi 0, %s375
                %s363 = sphi %s353, %s378
                %s364 = sphi %s355, %s379
              $region50: #{tpu_custom_call.1} parent=39 // loop_header_branch
                %361 = sbr.rel (%p358) target = $region54
              $region51: #{tpu_custom_call.1} parent=39 // loop_body
                %v365 = vld [vmem:[%s363] sm:$0xff]
                %366 = vst [vmem:[%s364] sm:$0xff] %v365
                %v367 = vld [vmem:[%s363 + $0x90] sm:$0xff]
                %368 = vst [vmem:[%s364 + $0x80] sm:$0xff] %v367
                %v369 = vld [vmem:[%s363 + $0x120] sm:$0xff]
                %370 = vst [vmem:[%s364 + $0x100] sm:$0xff] %v369
                %v371 = vld [vmem:[%s363 + $0x1b0] sm:$0xff]
                %372 = vst [vmem:[%s364 + $0x180] sm:$0xff] %v371
                %s373 = sadd.s32 1, %s362
                %p374 = scmp.ge.s32.totalorder %s373, %s350
                %s375 = scalar_select %p374, 0, %s373
                %s376 = smul.u32 %s375, 8
                %s377 = smul.u32 %s375, 8
                %s378 = scalar_lea.vmem %s353, %s376
                %s379 = scalar_lea.vmem %s355, %s377 [#allocation4]
              $region52: #{tpu_custom_call.1} parent=39 // loop_footer
                %s359 = sadd.s32 %s357, 1
              $region53: #{tpu_custom_call.1} parent=39 // loop_footer_branch
                %356 = sbr.rel target = $region49
              $region54: #{tpu_custom_call.1} parent=39 // loop_exit
                _
            $region40: #{tpu_custom_call.1} parent=31 // pred_fallthru
              _
          $region32: #{tpu_custom_call.1} parent=27 // pred_fallthru
            _
          %560 = vnop
        $region28: #{tpu_custom_call.1} parent=23 // pred_fallthru
          _
        // Predicated region
        $region77: #{tpu_custom_call.1} parent=23 // pred_check
          %p561 = pneg %p75
        $region78: #{tpu_custom_call.1} parent=23 // pred_check_branch
          %563 = sbr.rel (%p561) target = $region80
        $region79: #{tpu_custom_call.1} parent=23 // pred_region
          %p564 = scmp.lt.s32.totalorder %s20, 1
          %s565 = scalar_select %p564, %s20, 1
          %p566 = scmp.lt.s32.totalorder %s21, 0
          %s567 = scalar_select %p566, %s21, 0
          %s568 = smul.addr %s567, 8
          %s569 = smul.addr %s565, 8
          %s570 = sadd.s32 %s568, %s569
          %s571 = smul.addr %s570, 8
          %s572 = scalar_lea.vmem %s1, %s571
        $region80: #{tpu_custom_call.1} parent=23 // pred_fallthru
          _
      $region24: #{tpu_custom_call.1} parent=5 // pred_fallthru
        _
      %p573 = scmp.le.s32.totalorder 1, %s13
      %p574 = scmp.lt.s32.totalorder %s13, 3
      %p575 = pnand %p573, %p574
      %p576 = pneg %p575
      // Predicated region
      $region81: #{tpu_custom_call.1} parent=5 // pred_check
        _
      $region82: #{tpu_custom_call.1} parent=5 // pred_check_branch
        %578 = sbr.rel (%p575) target = $region84
      $region83: #{tpu_custom_call.1} parent=5 // pred_region
        %s579 = ssub.s32 %s13, 1
        %s580 = sand.u32 %s40, 1
        %s581 = sand.u32 %s40, 1
        %s582 = smul.addr %s581, 512
        %s583 = scalar_lea.vmem [#allocation4], %s582
        // Predicated region
        $region85: #{tpu_custom_call.1} parent=83 // pred_check
          %p584 = pneg %p53
        $region86: #{tpu_custom_call.1} parent=83 // pred_check_branch
          %586 = sbr.rel (%p584) target = $region88
        $region87: #{tpu_custom_call.1} parent=83 // pred_region
          _
        $region88: #{tpu_custom_call.1} parent=83 // pred_fallthru
          _
        %s587 = sand.u32 %s40, 1
        %s588 = sand.u32 %s40, 1
        %s589 = smul.addr %s588, 512
        %s590 = scalar_lea.vmem [#allocation4], %s589
        %p591 = pneg %p53
        %p592 = pneg %p50
        %p593 = scmp.lt.s32.totalorder %s22, 1
        %s594 = scalar_select %p593, %s22, 1
        %p595 = scmp.lt.s32.totalorder %s23, 0
        %s596 = scalar_select %p595, %s23, 0
        %s597 = smul.addr %s596, 8
        %s598 = smul.addr %s594, 8
        %s599 = sadd.s32 %s597, %s598
        %s600 = smul.addr %s599, 8
        %s601 = scalar_lea.vmem %s1, %s600
        %p602 = pneg %p81
        %p603 = pneg %p78
        %p604 = pneg %p102
        %p605 = pneg %p99
        %p606 = pneg %p123
        %p607 = pneg %p120
        %p608 = pneg %p151
        %p609 = pneg %p148
        %s610 = sand.u32 %s138, 1
        %s611 = scalar_lea.sflag [#allocation6], %s610
        %s612 = sand.u32 %s138, 1
        %s613 = smul.addr %s612, 64
        %s614 = scalar_lea.vmem [#allocation5], %s613
        %s615 = smul.u32 8, %s23
        %s616 = ssub.s32 9, %s615
        %p617 = scmp.lt.s32.totalorder %s616, 8
        %s618 = scalar_select %p617, %s616, 8
        %s619 = smul.u32 512, %s618
        %s620 = smul.u32 %s619, 2
        %p621 = scmp.lt.s32.totalorder %s22, 1
        %s622 = scalar_select %p621, %s22, 1
        %p623 = scmp.lt.s32.totalorder %s23, 0
        %s624 = scalar_select %p623, %s23, 0
        %s625 = smul.addr %s624, 8
        %s626 = smul.addr %s622, 8
        %s627 = sadd.s32 %s625, %s626
        %s628 = smul.addr %s627, 8
        %s629 = scalar_lea.vmem %s1, %s628
        %v630 = vld [vmem:[%s583] sm:$0xff]
        %v631 = vld [vmem:[%s583 + $0x8] sm:$0x1]
        %v632 = vld [vmem:[%s583 + $0x10] sm:$0xff]
        %v633 = vld [vmem:[%s583 + $0x18] sm:$0x1]
        %v634 = vld [vmem:[%s583 + $0x20] sm:$0xff]
        %v635 = vld [vmem:[%s583 + $0x28] sm:$0x1]
        %v636 = vld [vmem:[%s583 + $0x30] sm:$0xff]
        %v637 = vld [vmem:[%s583 + $0x38] sm:$0x1]
        %v638 = vld [vmem:[%s583 + $0x40] sm:$0xff]
        %v639 = vld [vmem:[%s583 + $0x48] sm:$0x1]
        %v640 = vld [vmem:[%s583 + $0x50] sm:$0xff]
        %v641 = vld [vmem:[%s583 + $0x58] sm:$0x1]
        %v642 = vld [vmem:[%s583 + $0x60] sm:$0xff]
        %v643 = vld [vmem:[%s583 + $0x68] sm:$0x1]
        %v644 = vld [vmem:[%s583 + $0x70] sm:$0xff]
        %v645 = vld [vmem:[%s583 + $0x78] sm:$0x1]
        %v646 = vld [vmem:[%s583 + $0x80] sm:$0xff]
        %v647 = vld [vmem:[%s583 + $0x88] sm:$0x1]
        %v648 = vld [vmem:[%s583 + $0x90] sm:$0xff]
        %v649 = vld [vmem:[%s583 + $0x98] sm:$0x1]
        %v650 = vld [vmem:[%s583 + $0xa0] sm:$0xff]
        %v651 = vld [vmem:[%s583 + $0xa8] sm:$0x1]
        %v652 = vld [vmem:[%s583 + $0xb0] sm:$0xff]
        %v653 = vld [vmem:[%s583 + $0xb8] sm:$0x1]
        %v654 = vld [vmem:[%s583 + $0xc0] sm:$0xff]
        %v655 = vld [vmem:[%s583 + $0xc8] sm:$0x1]
        %v656 = vld [vmem:[%s583 + $0xd0] sm:$0xff]
        %v657 = vld [vmem:[%s583 + $0xd8] sm:$0x1]
        %v658 = vld [vmem:[%s583 + $0xe0] sm:$0xff]
        %v659 = vld [vmem:[%s583 + $0xe8] sm:$0x1]
        %v660 = vld [vmem:[%s583 + $0xf0] sm:$0xff]
        %v661 = vld [vmem:[%s583 + $0xf8] sm:$0x1]
        %v662 = vld [vmem:[%s583 + $0x100] sm:$0xff]
        %v663 = vld [vmem:[%s583 + $0x108] sm:$0x1]
        %v664 = vld [vmem:[%s583 + $0x110] sm:$0xff]
        %v665 = vld [vmem:[%s583 + $0x118] sm:$0x1]
        %v666 = vld [vmem:[%s583 + $0x120] sm:$0xff]
        %v667 = vld [vmem:[%s583 + $0x128] sm:$0x1]
        %v668 = vld [vmem:[%s583 + $0x130] sm:$0xff]
        %v669 = vld [vmem:[%s583 + $0x138] sm:$0x1]
        %v670 = vld [vmem:[%s583 + $0x140] sm:$0xff]
        %v671 = vld [vmem:[%s583 + $0x148] sm:$0x1]
        %v672 = vld [vmem:[%s583 + $0x150] sm:$0xff]
        %v673 = vld [vmem:[%s583 + $0x158] sm:$0x1]
        %v674 = vld [vmem:[%s583 + $0x160] sm:$0xff]
        %v675 = vld [vmem:[%s583 + $0x168] sm:$0x1]
        %v676 = vld [vmem:[%s583 + $0x170] sm:$0xff]
        %v677 = vld [vmem:[%s583 + $0x178] sm:$0x1]
        %v678 = vld [vmem:[%s583 + $0x180] sm:$0xff]
        %v679 = vld [vmem:[%s583 + $0x188] sm:$0x1]
        %v680 = vld [vmem:[%s583 + $0x190] sm:$0xff]
        %v681 = vld [vmem:[%s583 + $0x198] sm:$0x1]
        %v682 = vld [vmem:[%s583 + $0x1a0] sm:$0xff]
        %v683 = vld [vmem:[%s583 + $0x1a8] sm:$0x1]
        %v684 = vld [vmem:[%s583 + $0x1b0] sm:$0xff]
        %v685 = vld [vmem:[%s583 + $0x1b8] sm:$0x1]
        %v686 = vld [vmem:[%s583 + $0x1c0] sm:$0xff]
        %v687 = vld [vmem:[%s583 + $0x1c8] sm:$0x1]
        %v688 = vld [vmem:[%s583 + $0x1d0] sm:$0xff]
        %v689 = vld [vmem:[%s583 + $0x1d8] sm:$0x1]
        %v690 = vld [vmem:[%s583 + $0x1e0] sm:$0xff]
        %v691 = vld [vmem:[%s583 + $0x1e8] sm:$0x1]
        %v692 = vld [vmem:[%s583 + $0x1f0] sm:$0xff]
        %v693 = vld [vmem:[%s583 + $0x1f8] sm:$0x1]
        %vm694 = vcmask 31744
        %695 = vst.msk [vmem:[#allocation2] sm:$0xff] %vm694, %v630
        %vm696 = vcmask 24576
        %697 = vst.msk [vmem:[#allocation2 + $0x8] sm:$0x1] %vm696, %v631
        %698 = vst.msk [vmem:[#allocation2 + $0x10] sm:$0xff] %vm694, %v632
        %699 = vst.msk [vmem:[#allocation2 + $0x18] sm:$0x1] %vm696, %v633
        %700 = vst.msk [vmem:[#allocation2 + $0x20] sm:$0xff] %vm694, %v634
        %701 = vst.msk [vmem:[#allocation2 + $0x28] sm:$0x1] %vm696, %v635
        %702 = vst.msk [vmem:[#allocation2 + $0x30] sm:$0xff] %vm694, %v636
        %703 = vst.msk [vmem:[#allocation2 + $0x38] sm:$0x1] %vm696, %v637
        %704 = vst.msk [vmem:[#allocation2 + $0x40] sm:$0xff] %vm694, %v638
        %705 = vst.msk [vmem:[#allocation2 + $0x48] sm:$0x1] %vm696, %v639
        %706 = vst.msk [vmem:[#allocation2 + $0x50] sm:$0xff] %vm694, %v640
        %707 = vst.msk [vmem:[#allocation2 + $0x58] sm:$0x1] %vm696, %v641
        %708 = vst.msk [vmem:[#allocation2 + $0x60] sm:$0xff] %vm694, %v642
        %709 = vst.msk [vmem:[#allocation2 + $0x68] sm:$0x1] %vm696, %v643
        %710 = vst.msk [vmem:[#allocation2 + $0x70] sm:$0xff] %vm694, %v644
        %711 = vst.msk [vmem:[#allocation2 + $0x78] sm:$0x1] %vm696, %v645
        %712 = vst.msk [vmem:[#allocation2 + $0x90] sm:$0xff] %vm694, %v646
        %713 = vst.msk [vmem:[#allocation2 + $0x98] sm:$0x1] %vm696, %v647
        %714 = vst.msk [vmem:[#allocation2 + $0xa0] sm:$0xff] %vm694, %v648
        %715 = vst.msk [vmem:[#allocation2 + $0xa8] sm:$0x1] %vm696, %v649
        %716 = vst.msk [vmem:[#allocation2 + $0xb0] sm:$0xff] %vm694, %v650
        %717 = vst.msk [vmem:[#allocation2 + $0xb8] sm:$0x1] %vm696, %v651
        %718 = vst.msk [vmem:[#allocation2 + $0xc0] sm:$0xff] %vm694, %v652
        %719 = vst.msk [vmem:[#allocation2 + $0xc8] sm:$0x1] %vm696, %v653
        %720 = vst.msk [vmem:[#allocation2 + $0xd0] sm:$0xff] %vm694, %v654
        %721 = vst.msk [vmem:[#allocation2 + $0xd8] sm:$0x1] %vm696, %v655
        %722 = vst.msk [vmem:[#allocation2 + $0xe0] sm:$0xff] %vm694, %v656
        %723 = vst.msk [vmem:[#allocation2 + $0xe8] sm:$0x1] %vm696, %v657
        %724 = vst.msk [vmem:[#allocation2 + $0xf0] sm:$0xff] %vm694, %v658
        %725 = vst.msk [vmem:[#allocation2 + $0xf8] sm:$0x1] %vm696, %v659
        %726 = vst.msk [vmem:[#allocation2 + $0x100] sm:$0xff] %vm694, %v660
        %727 = vst.msk [vmem:[#allocation2 + $0x108] sm:$0x1] %vm696, %v661
        %728 = vst.msk [vmem:[#allocation2 + $0x120] sm:$0xff] %vm694, %v662
        %729 = vst.msk [vmem:[#allocation2 + $0x128] sm:$0x1] %vm696, %v663
        %730 = vst.msk [vmem:[#allocation2 + $0x130] sm:$0xff] %vm694, %v664
        %731 = vst.msk [vmem:[#allocation2 + $0x138] sm:$0x1] %vm696, %v665
        %732 = vst.msk [vmem:[#allocation2 + $0x140] sm:$0xff] %vm694, %v666
        %733 = vst.msk [vmem:[#allocation2 + $0x148] sm:$0x1] %vm696, %v667
        %734 = vst.msk [vmem:[#allocation2 + $0x150] sm:$0xff] %vm694, %v668
        %735 = vst.msk [vmem:[#allocation2 + $0x158] sm:$0x1] %vm696, %v669
        %736 = vst.msk [vmem:[#allocation2 + $0x160] sm:$0xff] %vm694, %v670
        %737 = vst.msk [vmem:[#allocation2 + $0x168] sm:$0x1] %vm696, %v671
        %738 = vst.msk [vmem:[#allocation2 + $0x170] sm:$0xff] %vm694, %v672
        %739 = vst.msk [vmem:[#allocation2 + $0x178] sm:$0x1] %vm696, %v673
        %740 = vst.msk [vmem:[#allocation2 + $0x180] sm:$0xff] %vm694, %v674
        %741 = vst.msk [vmem:[#allocation2 + $0x188] sm:$0x1] %vm696, %v675
        %742 = vst.msk [vmem:[#allocation2 + $0x190] sm:$0xff] %vm694, %v676
        %743 = vst.msk [vmem:[#allocation2 + $0x198] sm:$0x1] %vm696, %v677
        %744 = vst.msk [vmem:[#allocation2 + $0x1b0] sm:$0xff] %vm694, %v678
        %745 = vst.msk [vmem:[#allocation2 + $0x1b8] sm:$0x1] %vm696, %v679
        %746 = vst.msk [vmem:[#allocation2 + $0x1c0] sm:$0xff] %vm694, %v680
        %747 = vst.msk [vmem:[#allocation2 + $0x1c8] sm:$0x1] %vm696, %v681
        %748 = vst.msk [vmem:[#allocation2 + $0x1d0] sm:$0xff] %vm694, %v682
        %749 = vst.msk [vmem:[#allocation2 + $0x1d8] sm:$0x1] %vm696, %v683
        %750 = vst.msk [vmem:[#allocation2 + $0x1e0] sm:$0xff] %vm694, %v684
        %751 = vst.msk [vmem:[#allocation2 + $0x1e8] sm:$0x1] %vm696, %v685
        %752 = vst.msk [vmem:[#allocation2 + $0x1f0] sm:$0xff] %vm694, %v686
        %753 = vst.msk [vmem:[#allocation2 + $0x1f8] sm:$0x1] %vm696, %v687
        %754 = vst.msk [vmem:[#allocation2 + $0x200] sm:$0xff] %vm694, %v688
        %755 = vst.msk [vmem:[#allocation2 + $0x208] sm:$0x1] %vm696, %v689
        %756 = vst.msk [vmem:[#allocation2 + $0x210] sm:$0xff] %vm694, %v690
        %757 = vst.msk [vmem:[#allocation2 + $0x218] sm:$0x1] %vm696, %v691
        %758 = vst.msk [vmem:[#allocation2 + $0x220] sm:$0xff] %vm694, %v692
        %759 = vst.msk [vmem:[#allocation2 + $0x228] sm:$0x1] %vm696, %v693
        %v760 = vld [vmem:[%s629] sm:$0xff]
        %v761 = vld [vmem:[%s629 + $0x8] sm:$0x1]
        %v762 = vld [vmem:[%s629 + $0x10] sm:$0xff]
        %v763 = vld [vmem:[%s629 + $0x18] sm:$0x1]
        %v764 = vld [vmem:[%s629 + $0x20] sm:$0xff]
        %v765 = vld [vmem:[%s629 + $0x28] sm:$0x1]
        %v766 = vld [vmem:[%s629 + $0x30] sm:$0xff]
        %v767 = vld [vmem:[%s629 + $0x38] sm:$0x1]
        %s768 = scalar_lea.vmem [#allocation2], 128
        %769 = vst.msk [vmem:[%s768] sm:$0xff] %vm694, %v760
        %770 = vst.msk [vmem:[%s768 + $0x8] sm:$0x1] %vm696, %v761
        %771 = vst.msk [vmem:[%s768 + $0x90] sm:$0xff] %vm694, %v762
        %772 = vst.msk [vmem:[%s768 + $0x98] sm:$0x1] %vm696, %v763
        %773 = vst.msk [vmem:[%s768 + $0x120] sm:$0xff] %vm694, %v764
        %774 = vst.msk [vmem:[%s768 + $0x128] sm:$0x1] %vm696, %v765
        %775 = vst.msk [vmem:[%s768 + $0x1b0] sm:$0xff] %vm694, %v766
        %776 = vst.msk [vmem:[%s768 + $0x1b8] sm:$0x1] %vm696, %v767
        %v777 = vld [vmem:[#allocation2] sm:$0xff]
        %v778 = vld [vmem:[#allocation2 + $0x10] sm:$0xff]
        %v779 = vld [vmem:[#allocation2 + $0x20] sm:$0xff]
        %v780 = vld [vmem:[#allocation2 + $0x30] sm:$0xff]
        %v781 = vld [vmem:[#allocation2 + $0x40] sm:$0xff]
        %v782 = vld [vmem:[#allocation2 + $0x50] sm:$0xff]
        %v783 = vld [vmem:[#allocation2 + $0x60] sm:$0xff]
        %v784 = vld [vmem:[#allocation2 + $0x70] sm:$0xff]
        %785 = vst.msk [vmem:[#allocation3] sm:$0xff] %vm694, %v777
        %786 = vst.msk [vmem:[#allocation3 + $0x8] sm:$0xff] %vm694, %v778
        %787 = vst.msk [vmem:[#allocation3 + $0x10] sm:$0xff] %vm694, %v779
        %788 = vst.msk [vmem:[#allocation3 + $0x18] sm:$0xff] %vm694, %v780
        %789 = vst.msk [vmem:[#allocation3 + $0x20] sm:$0xff] %vm694, %v781
        %790 = vst.msk [vmem:[#allocation3 + $0x28] sm:$0xff] %vm694, %v782
        %791 = vst.msk [vmem:[#allocation3 + $0x30] sm:$0xff] %vm694, %v783
        %792 = vst.msk [vmem:[#allocation3 + $0x38] sm:$0xff] %vm694, %v784
        %s793 = scalar_lea.vmem [#allocation2], 144
        %v794 = vld [vmem:[%s793] sm:$0xff]
        %v795 = vld [vmem:[%s793 + $0x10] sm:$0xff]
        %v796 = vld [vmem:[%s793 + $0x20] sm:$0xff]
        %v797 = vld [vmem:[%s793 + $0x30] sm:$0xff]
        %v798 = vld [vmem:[%s793 + $0x40] sm:$0xff]
        %v799 = vld [vmem:[%s793 + $0x50] sm:$0xff]
        %v800 = vld [vmem:[%s793 + $0x60] sm:$0xff]
        %v801 = vld [vmem:[%s793 + $0x70] sm:$0xff]
        %810 = vrot.lane.b32.xlu0 %v794, 4
        %v811 = vpop.permute.xlu0 %810
        %812 = vrot.lane.b32.xlu0 %v795, 4
        %v813 = vpop.permute.xlu0 %812
        %814 = vrot.lane.b32.xlu0 %v796, 4
        %v815 = vpop.permute.xlu0 %814
        %816 = vrot.lane.b32.xlu0 %v797, 4
        %v817 = vpop.permute.xlu0 %816
        %818 = vrot.lane.b32.xlu0 %v798, 4
        %v819 = vpop.permute.xlu0 %818
        %820 = vrot.lane.b32.xlu0 %v799, 4
        %v821 = vpop.permute.xlu0 %820
        %822 = vrot.lane.b32.xlu0 %v800, 4
        %v823 = vpop.permute.xlu0 %822
        %824 = vrot.lane.b32.xlu0 %v801, 4
        %v825 = vpop.permute.xlu0 %824
        %vm834 = vcmask 64544
        %835 = vst.msk [vmem:[#allocation3] sm:$0xff] %vm834, %v811
        %836 = vst.msk [vmem:[#allocation3 + $0x8] sm:$0xff] %vm834, %v813
        %837 = vst.msk [vmem:[#allocation3 + $0x10] sm:$0xff] %vm834, %v815
        %838 = vst.msk [vmem:[#allocation3 + $0x18] sm:$0xff] %vm834, %v817
        %839 = vst.msk [vmem:[#allocation3 + $0x20] sm:$0xff] %vm834, %v819
        %840 = vst.msk [vmem:[#allocation3 + $0x28] sm:$0xff] %vm834, %v821
        %841 = vst.msk [vmem:[#allocation3 + $0x30] sm:$0xff] %vm834, %v823
        %842 = vst.msk [vmem:[#allocation3 + $0x38] sm:$0xff] %vm834, %v825
        %s843 = scalar_lea.vmem [#allocation3], 64
        %844 = vst.msk [vmem:[%s843] sm:$0xff] %vm694, %v794
        %845 = vst.msk [vmem:[%s843 + $0x8] sm:$0xff] %vm694, %v795
        %846 = vst.msk [vmem:[%s843 + $0x10] sm:$0xff] %vm694, %v796
        %847 = vst.msk [vmem:[%s843 + $0x18] sm:$0xff] %vm694, %v797
        %848 = vst.msk [vmem:[%s843 + $0x20] sm:$0xff] %vm694, %v798
        %849 = vst.msk [vmem:[%s843 + $0x28] sm:$0xff] %vm694, %v799
        %850 = vst.msk [vmem:[%s843 + $0x30] sm:$0xff] %vm694, %v800
        %851 = vst.msk [vmem:[%s843 + $0x38] sm:$0xff] %vm694, %v801
        %v852 = vld [vmem:[#allocation2 + $0x1] sm:$0xff]
        %v853 = vld [vmem:[#allocation2 + $0x11] sm:$0xff]
        %v854 = vld [vmem:[#allocation2 + $0x21] sm:$0xff]
        %v855 = vld [vmem:[#allocation2 + $0x31] sm:$0xff]
        %v856 = vld [vmem:[#allocation2 + $0x41] sm:$0xff]
        %v857 = vld [vmem:[#allocation2 + $0x51] sm:$0xff]
        %v858 = vld [vmem:[#allocation2 + $0x61] sm:$0xff]
        %v859 = vld [vmem:[#allocation2 + $0x71] sm:$0xff]
        %868 = vrot.lane.b32.xlu0 %v852, 8
        %v869 = vpop.permute.xlu0 %868
        %870 = vrot.lane.b32.xlu0 %v853, 8
        %v871 = vpop.permute.xlu0 %870
        %872 = vrot.lane.b32.xlu0 %v854, 8
        %v873 = vpop.permute.xlu0 %872
        %874 = vrot.lane.b32.xlu0 %v855, 8
        %v875 = vpop.permute.xlu0 %874
        %876 = vrot.lane.b32.xlu0 %v856, 8
        %v877 = vpop.permute.xlu0 %876
        %878 = vrot.lane.b32.xlu0 %v857, 8
        %v879 = vpop.permute.xlu0 %878
        %880 = vrot.lane.b32.xlu0 %v858, 8
        %v881 = vpop.permute.xlu0 %880
        %882 = vrot.lane.b32.xlu0 %v859, 8
        %v883 = vpop.permute.xlu0 %882
        %vm892 = vcmask 97344
        %893 = vst.msk [vmem:[#allocation3] sm:$0xff] %vm892, %v869
        %894 = vst.msk [vmem:[#allocation3 + $0x8] sm:$0xff] %vm892, %v871
        %895 = vst.msk [vmem:[#allocation3 + $0x10] sm:$0xff] %vm892, %v873
        %896 = vst.msk [vmem:[#allocation3 + $0x18] sm:$0xff] %vm892, %v875
        %897 = vst.msk [vmem:[#allocation3 + $0x20] sm:$0xff] %vm892, %v877
        %898 = vst.msk [vmem:[#allocation3 + $0x28] sm:$0xff] %vm892, %v879
        %899 = vst.msk [vmem:[#allocation3 + $0x30] sm:$0xff] %vm892, %v881
        %900 = vst.msk [vmem:[#allocation3 + $0x38] sm:$0xff] %vm892, %v883
        %901 = vrot.lane.b32.xlu0 %v852, 4
        %v902 = vpop.permute.xlu0 %901
        %903 = vrot.lane.b32.xlu0 %v853, 4
        %v904 = vpop.permute.xlu0 %903
        %905 = vrot.lane.b32.xlu0 %v854, 4
        %v906 = vpop.permute.xlu0 %905
        %907 = vrot.lane.b32.xlu0 %v855, 4
        %v908 = vpop.permute.xlu0 %907
        %909 = vrot.lane.b32.xlu0 %v856, 4
        %v910 = vpop.permute.xlu0 %909
        %911 = vrot.lane.b32.xlu0 %v857, 4
        %v912 = vpop.permute.xlu0 %911
        %913 = vrot.lane.b32.xlu0 %v858, 4
        %v914 = vpop.permute.xlu0 %913
        %915 = vrot.lane.b32.xlu0 %v859, 4
        %v916 = vpop.permute.xlu0 %915
        %925 = vst.msk [vmem:[%s843] sm:$0xff] %vm834, %v902
        %926 = vst.msk [vmem:[%s843 + $0x8] sm:$0xff] %vm834, %v904
        %927 = vst.msk [vmem:[%s843 + $0x10] sm:$0xff] %vm834, %v906
        %928 = vst.msk [vmem:[%s843 + $0x18] sm:$0xff] %vm834, %v908
        %929 = vst.msk [vmem:[%s843 + $0x20] sm:$0xff] %vm834, %v910
        %930 = vst.msk [vmem:[%s843 + $0x28] sm:$0xff] %vm834, %v912
        %931 = vst.msk [vmem:[%s843 + $0x30] sm:$0xff] %vm834, %v914
        %932 = vst.msk [vmem:[%s843 + $0x38] sm:$0xff] %vm834, %v916
        %s933 = scalar_lea.vmem [#allocation2], 288
        %v934 = vld [vmem:[%s933] sm:$0xff]
        %v935 = vld [vmem:[%s933 + $0x10] sm:$0xff]
        %v936 = vld [vmem:[%s933 + $0x20] sm:$0xff]
        %v937 = vld [vmem:[%s933 + $0x30] sm:$0xff]
        %v938 = vld [vmem:[%s933 + $0x40] sm:$0xff]
        %v939 = vld [vmem:[%s933 + $0x50] sm:$0xff]
        %v940 = vld [vmem:[%s933 + $0x60] sm:$0xff]
        %v941 = vld [vmem:[%s933 + $0x70] sm:$0xff]
        %950 = vrot.lane.b32.xlu0 %v934, 12
        %v951 = vpop.permute.xlu0 %950
        %952 = vrot.lane.b32.xlu0 %v935, 12
        %v953 = vpop.permute.xlu0 %952
        %954 = vrot.lane.b32.xlu0 %v936, 12
        %v955 = vpop.permute.xlu0 %954
        %956 = vrot.lane.b32.xlu0 %v937, 12
        %v957 = vpop.permute.xlu0 %956
        %958 = vrot.lane.b32.xlu0 %v938, 12
        %v959 = vpop.permute.xlu0 %958
        %960 = vrot.lane.b32.xlu0 %v939, 12
        %v961 = vpop.permute.xlu0 %960
        %962 = vrot.lane.b32.xlu0 %v940, 12
        %v963 = vpop.permute.xlu0 %962
        %964 = vrot.lane.b32.xlu0 %v941, 12
        %v965 = vpop.permute.xlu0 %964
        %vm974 = vcmask 130144
        %975 = vst.msk [vmem:[#allocation3] sm:$0xff] %vm974, %v951
        %976 = vst.msk [vmem:[#allocation3 + $0x8] sm:$0xff] %vm974, %v953
        %977 = vst.msk [vmem:[#allocation3 + $0x10] sm:$0xff] %vm974, %v955
        %978 = vst.msk [vmem:[#allocation3 + $0x18] sm:$0xff] %vm974, %v957
        %979 = vst.msk [vmem:[#allocation3 + $0x20] sm:$0xff] %vm974, %v959
        %980 = vst.msk [vmem:[#allocation3 + $0x28] sm:$0xff] %vm974, %v961
        %981 = vst.msk [vmem:[#allocation3 + $0x30] sm:$0xff] %vm974, %v963
        %982 = vst.msk [vmem:[#allocation3 + $0x38] sm:$0xff] %vm974, %v965
        %s983 = scalar_lea.vmem [#allocation3], 128
        %984 = vst.msk [vmem:[%s983] sm:$0xff] %vm694, %v934
        %985 = vst.msk [vmem:[%s983 + $0x8] sm:$0xff] %vm694, %v935
        %986 = vst.msk [vmem:[%s983 + $0x10] sm:$0xff] %vm694, %v936
        %987 = vst.msk [vmem:[%s983 + $0x18] sm:$0xff] %vm694, %v937
        %988 = vst.msk [vmem:[%s983 + $0x20] sm:$0xff] %vm694, %v938
        %989 = vst.msk [vmem:[%s983 + $0x28] sm:$0xff] %vm694, %v939
        %990 = vst.msk [vmem:[%s983 + $0x30] sm:$0xff] %vm694, %v940
        %991 = vst.msk [vmem:[%s983 + $0x38] sm:$0xff] %vm694, %v941
        %s992 = scalar_lea.vmem [#allocation2], 432
        %v993 = vld [vmem:[%s992] sm:$0xff]
        %v994 = vld [vmem:[%s992 + $0x10] sm:$0xff]
        %v995 = vld [vmem:[%s992 + $0x20] sm:$0xff]
        %v996 = vld [vmem:[%s992 + $0x30] sm:$0xff]
        %v997 = vld [vmem:[%s992 + $0x40] sm:$0xff]
        %v998 = vld [vmem:[%s992 + $0x50] sm:$0xff]
        %v999 = vld [vmem:[%s992 + $0x60] sm:$0xff]
        %v1000 = vld [vmem:[%s992 + $0x70] sm:$0xff]
        %1009 = vrot.lane.b32.xlu0 %v993, 16
        %v1010 = vpop.permute.xlu0 %1009
        %1011 = vrot.lane.b32.xlu0 %v994, 16
        %v1012 = vpop.permute.xlu0 %1011
        %1013 = vrot.lane.b32.xlu0 %v995, 16
        %v1014 = vpop.permute.xlu0 %1013
        %1015 = vrot.lane.b32.xlu0 %v996, 16
        %v1016 = vpop.permute.xlu0 %1015
        %1017 = vrot.lane.b32.xlu0 %v997, 16
        %v1018 = vpop.permute.xlu0 %1017
        %1019 = vrot.lane.b32.xlu0 %v998, 16
        %v1020 = vpop.permute.xlu0 %1019
        %1021 = vrot.lane.b32.xlu0 %v999, 16
        %v1022 = vpop.permute.xlu0 %1021
        %1023 = vrot.lane.b32.xlu0 %v1000, 16
        %v1024 = vpop.permute.xlu0 %1023
        %vm1033 = vcmask 162944
        %1034 = vst.msk [vmem:[#allocation3] sm:$0xff] %vm1033, %v1010
        %1035 = vst.msk [vmem:[#allocation3 + $0x8] sm:$0xff] %vm1033, %v1012
        %1036 = vst.msk [vmem:[#allocation3 + $0x10] sm:$0xff] %vm1033, %v1014
        %1037 = vst.msk [vmem:[#allocation3 + $0x18] sm:$0xff] %vm1033, %v1016
        %1038 = vst.msk [vmem:[#allocation3 + $0x20] sm:$0xff] %vm1033, %v1018
        %1039 = vst.msk [vmem:[#allocation3 + $0x28] sm:$0xff] %vm1033, %v1020
        %1040 = vst.msk [vmem:[#allocation3 + $0x30] sm:$0xff] %vm1033, %v1022
        %1041 = vst.msk [vmem:[#allocation3 + $0x38] sm:$0xff] %vm1033, %v1024
        %1042 = vrot.lane.b32.xlu0 %v993, 12
        %v1043 = vpop.permute.xlu0 %1042
        %1044 = vrot.lane.b32.xlu0 %v994, 12
        %v1045 = vpop.permute.xlu0 %1044
        %1046 = vrot.lane.b32.xlu0 %v995, 12
        %v1047 = vpop.permute.xlu0 %1046
        %1048 = vrot.lane.b32.xlu0 %v996, 12
        %v1049 = vpop.permute.xlu0 %1048
        %1050 = vrot.lane.b32.xlu0 %v997, 12
        %v1051 = vpop.permute.xlu0 %1050
        %1052 = vrot.lane.b32.xlu0 %v998, 12
        %v1053 = vpop.permute.xlu0 %1052
        %1054 = vrot.lane.b32.xlu0 %v999, 12
        %v1055 = vpop.permute.xlu0 %1054
        %1056 = vrot.lane.b32.xlu0 %v1000, 12
        %v1057 = vpop.permute.xlu0 %1056
        %1066 = vst.msk [vmem:[%s843] sm:$0xff] %vm974, %v1043
        %1067 = vst.msk [vmem:[%s843 + $0x8] sm:$0xff] %vm974, %v1045
        %1068 = vst.msk [vmem:[%s843 + $0x10] sm:$0xff] %vm974, %v1047
        %1069 = vst.msk [vmem:[%s843 + $0x18] sm:$0xff] %vm974, %v1049
        %1070 = vst.msk [vmem:[%s843 + $0x20] sm:$0xff] %vm974, %v1051
        %1071 = vst.msk [vmem:[%s843 + $0x28] sm:$0xff] %vm974, %v1053
        %1072 = vst.msk [vmem:[%s843 + $0x30] sm:$0xff] %vm974, %v1055
        %1073 = vst.msk [vmem:[%s843 + $0x38] sm:$0xff] %vm974, %v1057
        %1074 = vrot.lane.b32.xlu0 %v993, 4
        %v1075 = vpop.permute.xlu0 %1074
        %1076 = vrot.lane.b32.xlu0 %v994, 4
        %v1077 = vpop.permute.xlu0 %1076
        %1078 = vrot.lane.b32.xlu0 %v995, 4
        %v1079 = vpop.permute.xlu0 %1078
        %1080 = vrot.lane.b32.xlu0 %v996, 4
        %v1081 = vpop.permute.xlu0 %1080
        %1082 = vrot.lane.b32.xlu0 %v997, 4
        %v1083 = vpop.permute.xlu0 %1082
        %1084 = vrot.lane.b32.xlu0 %v998, 4
        %v1085 = vpop.permute.xlu0 %1084
        %1086 = vrot.lane.b32.xlu0 %v999, 4
        %v1087 = vpop.permute.xlu0 %1086
        %1088 = vrot.lane.b32.xlu0 %v1000, 4
        %v1089 = vpop.permute.xlu0 %1088
        %1098 = vst.msk [vmem:[%s983] sm:$0xff] %vm834, %v1075
        %1099 = vst.msk [vmem:[%s983 + $0x8] sm:$0xff] %vm834, %v1077
        %1100 = vst.msk [vmem:[%s983 + $0x10] sm:$0xff] %vm834, %v1079
        %1101 = vst.msk [vmem:[%s983 + $0x18] sm:$0xff] %vm834, %v1081
        %1102 = vst.msk [vmem:[%s983 + $0x20] sm:$0xff] %vm834, %v1083
        %1103 = vst.msk [vmem:[%s983 + $0x28] sm:$0xff] %vm834, %v1085
        %1104 = vst.msk [vmem:[%s983 + $0x30] sm:$0xff] %vm834, %v1087
        %1105 = vst.msk [vmem:[%s983 + $0x38] sm:$0xff] %vm834, %v1089
        %s1106 = scalar_lea.vmem [#allocation3], 192
        %1107 = vst.msk [vmem:[%s1106] sm:$0xff] %vm694, %v993
        %1108 = vst.msk [vmem:[%s1106 + $0x8] sm:$0xff] %vm694, %v994
        %1109 = vst.msk [vmem:[%s1106 + $0x10] sm:$0xff] %vm694, %v995
        %1110 = vst.msk [vmem:[%s1106 + $0x18] sm:$0xff] %vm694, %v996
        %1111 = vst.msk [vmem:[%s1106 + $0x20] sm:$0xff] %vm694, %v997
        %1112 = vst.msk [vmem:[%s1106 + $0x28] sm:$0xff] %vm694, %v998
        %1113 = vst.msk [vmem:[%s1106 + $0x30] sm:$0xff] %vm694, %v999
        %1114 = vst.msk [vmem:[%s1106 + $0x38] sm:$0xff] %vm694, %v1000
        %v1115 = vld [vmem:[%s933 + $0x1] sm:$0xff]
        %v1116 = vld [vmem:[%s933 + $0x11] sm:$0xff]
        %v1117 = vld [vmem:[%s933 + $0x21] sm:$0xff]
        %v1118 = vld [vmem:[%s933 + $0x31] sm:$0xff]
        %v1119 = vld [vmem:[%s933 + $0x41] sm:$0xff]
        %v1120 = vld [vmem:[%s933 + $0x51] sm:$0xff]
        %v1121 = vld [vmem:[%s933 + $0x61] sm:$0xff]
        %v1122 = vld [vmem:[%s933 + $0x71] sm:$0xff]
        %1131 = vrot.lane.b32.xlu0 %v1115, 20
        %v1132 = vpop.permute.xlu0 %1131
        %1133 = vrot.lane.b32.xlu0 %v1116, 20
        %v1134 = vpop.permute.xlu0 %1133
        %1135 = vrot.lane.b32.xlu0 %v1117, 20
        %v1136 = vpop.permute.xlu0 %1135
        %1137 = vrot.lane.b32.xlu0 %v1118, 20
        %v1138 = vpop.permute.xlu0 %1137
        %1139 = vrot.lane.b32.xlu0 %v1119, 20
        %v1140 = vpop.permute.xlu0 %1139
        %1141 = vrot.lane.b32.xlu0 %v1120, 20
        %v1142 = vpop.permute.xlu0 %1141
        %1143 = vrot.lane.b32.xlu0 %v1121, 20
        %v1144 = vpop.permute.xlu0 %1143
        %1145 = vrot.lane.b32.xlu0 %v1122, 20
        %v1146 = vpop.permute.xlu0 %1145
        %vm1155 = vcmask 195744
        %1156 = vst.msk [vmem:[#allocation3] sm:$0xff] %vm1155, %v1132
        %1157 = vst.msk [vmem:[#allocation3 + $0x8] sm:$0xff] %vm1155, %v1134
        %1158 = vst.msk [vmem:[#allocation3 + $0x10] sm:$0xff] %vm1155, %v1136
        %1159 = vst.msk [vmem:[#allocation3 + $0x18] sm:$0xff] %vm1155, %v1138
        %1160 = vst.msk [vmem:[#allocation3 + $0x20] sm:$0xff] %vm1155, %v1140
        %1161 = vst.msk [vmem:[#allocation3 + $0x28] sm:$0xff] %vm1155, %v1142
        %1162 = vst.msk [vmem:[#allocation3 + $0x30] sm:$0xff] %vm1155, %v1144
        %1163 = vst.msk [vmem:[#allocation3 + $0x38] sm:$0xff] %vm1155, %v1146
        %1164 = vrot.lane.b32.xlu0 %v1115, 16
        %v1165 = vpop.permute.xlu0 %1164
        %1166 = vrot.lane.b32.xlu0 %v1116, 16
        %v1167 = vpop.permute.xlu0 %1166
        %1168 = vrot.lane.b32.xlu0 %v1117, 16
        %v1169 = vpop.permute.xlu0 %1168
        %1170 = vrot.lane.b32.xlu0 %v1118, 16
        %v1171 = vpop.permute.xlu0 %1170
        %1172 = vrot.lane.b32.xlu0 %v1119, 16
        %v1173 = vpop.permute.xlu0 %1172
        %1174 = vrot.lane.b32.xlu0 %v1120, 16
        %v1175 = vpop.permute.xlu0 %1174
        %1176 = vrot.lane.b32.xlu0 %v1121, 16
        %v1177 = vpop.permute.xlu0 %1176
        %1178 = vrot.lane.b32.xlu0 %v1122, 16
        %v1179 = vpop.permute.xlu0 %1178
        %1188 = vst.msk [vmem:[%s843] sm:$0xff] %vm1033, %v1165
        %1189 = vst.msk [vmem:[%s843 + $0x8] sm:$0xff] %vm1033, %v1167
        %1190 = vst.msk [vmem:[%s843 + $0x10] sm:$0xff] %vm1033, %v1169
        %1191 = vst.msk [vmem:[%s843 + $0x18] sm:$0xff] %vm1033, %v1171
        %1192 = vst.msk [vmem:[%s843 + $0x20] sm:$0xff] %vm1033, %v1173
        %1193 = vst.msk [vmem:[%s843 + $0x28] sm:$0xff] %vm1033, %v1175
        %1194 = vst.msk [vmem:[%s843 + $0x30] sm:$0xff] %vm1033, %v1177
        %1195 = vst.msk [vmem:[%s843 + $0x38] sm:$0xff] %vm1033, %v1179
        %1196 = vrot.lane.b32.xlu0 %v1115, 8
        %v1197 = vpop.permute.xlu0 %1196
        %1198 = vrot.lane.b32.xlu0 %v1116, 8
        %v1199 = vpop.permute.xlu0 %1198
        %1200 = vrot.lane.b32.xlu0 %v1117, 8
        %v1201 = vpop.permute.xlu0 %1200
        %1202 = vrot.lane.b32.xlu0 %v1118, 8
        %v1203 = vpop.permute.xlu0 %1202
        %1204 = vrot.lane.b32.xlu0 %v1119, 8
        %v1205 = vpop.permute.xlu0 %1204
        %1206 = vrot.lane.b32.xlu0 %v1120, 8
        %v1207 = vpop.permute.xlu0 %1206
        %1208 = vrot.lane.b32.xlu0 %v1121, 8
        %v1209 = vpop.permute.xlu0 %1208
        %1210 = vrot.lane.b32.xlu0 %v1122, 8
        %v1211 = vpop.permute.xlu0 %1210
        %1220 = vst.msk [vmem:[%s983] sm:$0xff] %vm892, %v1197
        %1221 = vst.msk [vmem:[%s983 + $0x8] sm:$0xff] %vm892, %v1199
        %1222 = vst.msk [vmem:[%s983 + $0x10] sm:$0xff] %vm892, %v1201
        %1223 = vst.msk [vmem:[%s983 + $0x18] sm:$0xff] %vm892, %v1203
        %1224 = vst.msk [vmem:[%s983 + $0x20] sm:$0xff] %vm892, %v1205
        %1225 = vst.msk [vmem:[%s983 + $0x28] sm:$0xff] %vm892, %v1207
        %1226 = vst.msk [vmem:[%s983 + $0x30] sm:$0xff] %vm892, %v1209
        %1227 = vst.msk [vmem:[%s983 + $0x38] sm:$0xff] %vm892, %v1211
        %1228 = vrot.lane.b32.xlu0 %v1115, 4
        %v1229 = vpop.permute.xlu0 %1228
        %1230 = vrot.lane.b32.xlu0 %v1116, 4
        %v1231 = vpop.permute.xlu0 %1230
        %1232 = vrot.lane.b32.xlu0 %v1117, 4
        %v1233 = vpop.permute.xlu0 %1232
        %1234 = vrot.lane.b32.xlu0 %v1118, 4
        %v1235 = vpop.permute.xlu0 %1234
        %1236 = vrot.lane.b32.xlu0 %v1119, 4
        %v1237 = vpop.permute.xlu0 %1236
        %1238 = vrot.lane.b32.xlu0 %v1120, 4
        %v1239 = vpop.permute.xlu0 %1238
        %1240 = vrot.lane.b32.xlu0 %v1121, 4
        %v1241 = vpop.permute.xlu0 %1240
        %1242 = vrot.lane.b32.xlu0 %v1122, 4
        %v1243 = vpop.permute.xlu0 %1242
        %1252 = vst.msk [vmem:[%s1106] sm:$0xff] %vm834, %v1229
        %1253 = vst.msk [vmem:[%s1106 + $0x8] sm:$0xff] %vm834, %v1231
        %1254 = vst.msk [vmem:[%s1106 + $0x10] sm:$0xff] %vm834, %v1233
        %1255 = vst.msk [vmem:[%s1106 + $0x18] sm:$0xff] %vm834, %v1235
        %1256 = vst.msk [vmem:[%s1106 + $0x20] sm:$0xff] %vm834, %v1237
        %1257 = vst.msk [vmem:[%s1106 + $0x28] sm:$0xff] %vm834, %v1239
        %1258 = vst.msk [vmem:[%s1106 + $0x30] sm:$0xff] %vm834, %v1241
        %1259 = vst.msk [vmem:[%s1106 + $0x38] sm:$0xff] %vm834, %v1243
        %s1260 = scalar_lea.vmem [#allocation2], 16
        %v1261 = vld [vmem:[%s1260] sm:$0xff]
        %v1262 = vld [vmem:[%s1260 + $0x10] sm:$0xff]
        %v1263 = vld [vmem:[%s1260 + $0x20] sm:$0xff]
        %v1264 = vld [vmem:[%s1260 + $0x30] sm:$0xff]
        %v1265 = vld [vmem:[%s1260 + $0x40] sm:$0xff]
        %v1266 = vld [vmem:[%s1260 + $0x50] sm:$0xff]
        %v1267 = vld [vmem:[%s1260 + $0x60] sm:$0xff]
        %v1268 = vld [vmem:[%s1260 + $0x70] sm:$0xff]
        %1277 = vrot.lane.b32.xlu0 %v1261, 24
        %v1278 = vpop.permute.xlu0 %1277
        %1279 = vrot.lane.b32.xlu0 %v1262, 24
        %v1280 = vpop.permute.xlu0 %1279
        %1281 = vrot.lane.b32.xlu0 %v1263, 24
        %v1282 = vpop.permute.xlu0 %1281
        %1283 = vrot.lane.b32.xlu0 %v1264, 24
        %v1284 = vpop.permute.xlu0 %1283
        %1285 = vrot.lane.b32.xlu0 %v1265, 24
        %v1286 = vpop.permute.xlu0 %1285
        %1287 = vrot.lane.b32.xlu0 %v1266, 24
        %v1288 = vpop.permute.xlu0 %1287
        %1289 = vrot.lane.b32.xlu0 %v1267, 24
        %v1290 = vpop.permute.xlu0 %1289
        %1291 = vrot.lane.b32.xlu0 %v1268, 24
        %v1292 = vpop.permute.xlu0 %1291
        %vm1301 = vcmask 228544
        %1302 = vst.msk [vmem:[#allocation3] sm:$0xff] %vm1301, %v1278
        %1303 = vst.msk [vmem:[#allocation3 + $0x8] sm:$0xff] %vm1301, %v1280
        %1304 = vst.msk [vmem:[#allocation3 + $0x10] sm:$0xff] %vm1301, %v1282
        %1305 = vst.msk [vmem:[#allocation3 + $0x18] sm:$0xff] %vm1301, %v1284
        %1306 = vst.msk [vmem:[#allocation3 + $0x20] sm:$0xff] %vm1301, %v1286
        %1307 = vst.msk [vmem:[#allocation3 + $0x28] sm:$0xff] %vm1301, %v1288
        %1308 = vst.msk [vmem:[#allocation3 + $0x30] sm:$0xff] %vm1301, %v1290
        %1309 = vst.msk [vmem:[#allocation3 + $0x38] sm:$0xff] %vm1301, %v1292
        %1310 = vrot.lane.b32.xlu0 %v1261, 12
        %v1311 = vpop.permute.xlu0 %1310
        %1312 = vrot.lane.b32.xlu0 %v1262, 12
        %v1313 = vpop.permute.xlu0 %1312
        %1314 = vrot.lane.b32.xlu0 %v1263, 12
        %v1315 = vpop.permute.xlu0 %1314
        %1316 = vrot.lane.b32.xlu0 %v1264, 12
        %v1317 = vpop.permute.xlu0 %1316
        %1318 = vrot.lane.b32.xlu0 %v1265, 12
        %v1319 = vpop.permute.xlu0 %1318
        %1320 = vrot.lane.b32.xlu0 %v1266, 12
        %v1321 = vpop.permute.xlu0 %1320
        %1322 = vrot.lane.b32.xlu0 %v1267, 12
        %v1323 = vpop.permute.xlu0 %1322
        %1324 = vrot.lane.b32.xlu0 %v1268, 12
        %v1325 = vpop.permute.xlu0 %1324
        %1334 = vst.msk [vmem:[%s983] sm:$0xff] %vm974, %v1311
        %1335 = vst.msk [vmem:[%s983 + $0x8] sm:$0xff] %vm974, %v1313
        %1336 = vst.msk [vmem:[%s983 + $0x10] sm:$0xff] %vm974, %v1315
        %1337 = vst.msk [vmem:[%s983 + $0x18] sm:$0xff] %vm974, %v1317
        %1338 = vst.msk [vmem:[%s983 + $0x20] sm:$0xff] %vm974, %v1319
        %1339 = vst.msk [vmem:[%s983 + $0x28] sm:$0xff] %vm974, %v1321
        %1340 = vst.msk [vmem:[%s983 + $0x30] sm:$0xff] %vm974, %v1323
        %1341 = vst.msk [vmem:[%s983 + $0x38] sm:$0xff] %vm974, %v1325
        %s1342 = scalar_lea.vmem [#allocation2], 160
        %v1343 = vld [vmem:[%s1342] sm:$0xff]
        %v1344 = vld [vmem:[%s1342 + $0x10] sm:$0xff]
        %v1345 = vld [vmem:[%s1342 + $0x20] sm:$0xff]
        %v1346 = vld [vmem:[%s1342 + $0x30] sm:$0xff]
        %v1347 = vld [vmem:[%s1342 + $0x40] sm:$0xff]
        %v1348 = vld [vmem:[%s1342 + $0x50] sm:$0xff]
        %v1349 = vld [vmem:[%s1342 + $0x60] sm:$0xff]
        %v1350 = vld [vmem:[%s1342 + $0x70] sm:$0xff]
        %1359 = vrot.lane.b32.xlu0 %v1343, 28
        %v1360 = vpop.permute.xlu0 %1359
        %1361 = vrot.lane.b32.xlu0 %v1344, 28
        %v1362 = vpop.permute.xlu0 %1361
        %1363 = vrot.lane.b32.xlu0 %v1345, 28
        %v1364 = vpop.permute.xlu0 %1363
        %1365 = vrot.lane.b32.xlu0 %v1346, 28
        %v1366 = vpop.permute.xlu0 %1365
        %1367 = vrot.lane.b32.xlu0 %v1347, 28
        %v1368 = vpop.permute.xlu0 %1367
        %1369 = vrot.lane.b32.xlu0 %v1348, 28
        %v1370 = vpop.permute.xlu0 %1369
        %1371 = vrot.lane.b32.xlu0 %v1349, 28
        %v1372 = vpop.permute.xlu0 %1371
        %1373 = vrot.lane.b32.xlu0 %v1350, 28
        %v1374 = vpop.permute.xlu0 %1373
        %vm1383 = vcmask 261344
        %1384 = vst.msk [vmem:[#allocation3] sm:$0xff] %vm1383, %v1360
        %1385 = vst.msk [vmem:[#allocation3 + $0x8] sm:$0xff] %vm1383, %v1362
        %1386 = vst.msk [vmem:[#allocation3 + $0x10] sm:$0xff] %vm1383, %v1364
        %1387 = vst.msk [vmem:[#allocation3 + $0x18] sm:$0xff] %vm1383, %v1366
        %1388 = vst.msk [vmem:[#allocation3 + $0x20] sm:$0xff] %vm1383, %v1368
        %1389 = vst.msk [vmem:[#allocation3 + $0x28] sm:$0xff] %vm1383, %v1370
        %1390 = vst.msk [vmem:[#allocation3 + $0x30] sm:$0xff] %vm1383, %v1372
        %1391 = vst.msk [vmem:[#allocation3 + $0x38] sm:$0xff] %vm1383, %v1374
        %1392 = vrot.lane.b32.xlu0 %v1343, 24
        %v1393 = vpop.permute.xlu0 %1392
        %1394 = vrot.lane.b32.xlu0 %v1344, 24
        %v1395 = vpop.permute.xlu0 %1394
        %1396 = vrot.lane.b32.xlu0 %v1345, 24
        %v1397 = vpop.permute.xlu0 %1396
        %1398 = vrot.lane.b32.xlu0 %v1346, 24
        %v1399 = vpop.permute.xlu0 %1398
        %1400 = vrot.lane.b32.xlu0 %v1347, 24
        %v1401 = vpop.permute.xlu0 %1400
        %1402 = vrot.lane.b32.xlu0 %v1348, 24
        %v1403 = vpop.permute.xlu0 %1402
        %1404 = vrot.lane.b32.xlu0 %v1349, 24
        %v1405 = vpop.permute.xlu0 %1404
        %1406 = vrot.lane.b32.xlu0 %v1350, 24
        %v1407 = vpop.permute.xlu0 %1406
        %1416 = vst.msk [vmem:[%s843] sm:$0xff] %vm1301, %v1393
        %1417 = vst.msk [vmem:[%s843 + $0x8] sm:$0xff] %vm1301, %v1395
        %1418 = vst.msk [vmem:[%s843 + $0x10] sm:$0xff] %vm1301, %v1397
        %1419 = vst.msk [vmem:[%s843 + $0x18] sm:$0xff] %vm1301, %v1399
        %1420 = vst.msk [vmem:[%s843 + $0x20] sm:$0xff] %vm1301, %v1401
        %1421 = vst.msk [vmem:[%s843 + $0x28] sm:$0xff] %vm1301, %v1403
        %1422 = vst.msk [vmem:[%s843 + $0x30] sm:$0xff] %vm1301, %v1405
        %1423 = vst.msk [vmem:[%s843 + $0x38] sm:$0xff] %vm1301, %v1407
        %1424 = vrot.lane.b32.xlu0 %v1343, 16
        %v1425 = vpop.permute.xlu0 %1424
        %1426 = vrot.lane.b32.xlu0 %v1344, 16
        %v1427 = vpop.permute.xlu0 %1426
        %1428 = vrot.lane.b32.xlu0 %v1345, 16
        %v1429 = vpop.permute.xlu0 %1428
        %1430 = vrot.lane.b32.xlu0 %v1346, 16
        %v1431 = vpop.permute.xlu0 %1430
        %1432 = vrot.lane.b32.xlu0 %v1347, 16
        %v1433 = vpop.permute.xlu0 %1432
        %1434 = vrot.lane.b32.xlu0 %v1348, 16
        %v1435 = vpop.permute.xlu0 %1434
        %1436 = vrot.lane.b32.xlu0 %v1349, 16
        %v1437 = vpop.permute.xlu0 %1436
        %1438 = vrot.lane.b32.xlu0 %v1350, 16
        %v1439 = vpop.permute.xlu0 %1438
        %1448 = vst.msk [vmem:[%s983] sm:$0xff] %vm1033, %v1425
        %1449 = vst.msk [vmem:[%s983 + $0x8] sm:$0xff] %vm1033, %v1427
        %1450 = vst.msk [vmem:[%s983 + $0x10] sm:$0xff] %vm1033, %v1429
        %1451 = vst.msk [vmem:[%s983 + $0x18] sm:$0xff] %vm1033, %v1431
        %1452 = vst.msk [vmem:[%s983 + $0x20] sm:$0xff] %vm1033, %v1433
        %1453 = vst.msk [vmem:[%s983 + $0x28] sm:$0xff] %vm1033, %v1435
        %1454 = vst.msk [vmem:[%s983 + $0x30] sm:$0xff] %vm1033, %v1437
        %1455 = vst.msk [vmem:[%s983 + $0x38] sm:$0xff] %vm1033, %v1439
        %1456 = vrot.lane.b32.xlu0 %v1343, 12
        %v1457 = vpop.permute.xlu0 %1456
        %1458 = vrot.lane.b32.xlu0 %v1344, 12
        %v1459 = vpop.permute.xlu0 %1458
        %1460 = vrot.lane.b32.xlu0 %v1345, 12
        %v1461 = vpop.permute.xlu0 %1460
        %1462 = vrot.lane.b32.xlu0 %v1346, 12
        %v1463 = vpop.permute.xlu0 %1462
        %1464 = vrot.lane.b32.xlu0 %v1347, 12
        %v1465 = vpop.permute.xlu0 %1464
        %1466 = vrot.lane.b32.xlu0 %v1348, 12
        %v1467 = vpop.permute.xlu0 %1466
        %1468 = vrot.lane.b32.xlu0 %v1349, 12
        %v1469 = vpop.permute.xlu0 %1468
        %1470 = vrot.lane.b32.xlu0 %v1350, 12
        %v1471 = vpop.permute.xlu0 %1470
        %1480 = vst.msk [vmem:[%s1106] sm:$0xff] %vm974, %v1457
        %1481 = vst.msk [vmem:[%s1106 + $0x8] sm:$0xff] %vm974, %v1459
        %1482 = vst.msk [vmem:[%s1106 + $0x10] sm:$0xff] %vm974, %v1461
        %1483 = vst.msk [vmem:[%s1106 + $0x18] sm:$0xff] %vm974, %v1463
        %1484 = vst.msk [vmem:[%s1106 + $0x20] sm:$0xff] %vm974, %v1465
        %1485 = vst.msk [vmem:[%s1106 + $0x28] sm:$0xff] %vm974, %v1467
        %1486 = vst.msk [vmem:[%s1106 + $0x30] sm:$0xff] %vm974, %v1469
        %1487 = vst.msk [vmem:[%s1106 + $0x38] sm:$0xff] %vm974, %v1471
        %v1488 = vld [vmem:[%s1260 + $0x1] sm:$0xff]
        %v1489 = vld [vmem:[%s1260 + $0x11] sm:$0xff]
        %v1490 = vld [vmem:[%s1260 + $0x21] sm:$0xff]
        %v1491 = vld [vmem:[%s1260 + $0x31] sm:$0xff]
        %v1492 = vld [vmem:[%s1260 + $0x41] sm:$0xff]
        %v1493 = vld [vmem:[%s1260 + $0x51] sm:$0xff]
        %v1494 = vld [vmem:[%s1260 + $0x61] sm:$0xff]
        %v1495 = vld [vmem:[%s1260 + $0x71] sm:$0xff]
        %1504 = vrot.lane.b32.xlu0 %v1488, 32
        %v1505 = vpop.permute.xlu0 %1504
        %1506 = vrot.lane.b32.xlu0 %v1489, 32
        %v1507 = vpop.permute.xlu0 %1506
        %1508 = vrot.lane.b32.xlu0 %v1490, 32
        %v1509 = vpop.permute.xlu0 %1508
        %1510 = vrot.lane.b32.xlu0 %v1491, 32
        %v1511 = vpop.permute.xlu0 %1510
        %1512 = vrot.lane.b32.xlu0 %v1492, 32
        %v1513 = vpop.permute.xlu0 %1512
        %1514 = vrot.lane.b32.xlu0 %v1493, 32
        %v1515 = vpop.permute.xlu0 %1514
        %1516 = vrot.lane.b32.xlu0 %v1494, 32
        %v1517 = vpop.permute.xlu0 %1516
        %1518 = vrot.lane.b32.xlu0 %v1495, 32
        %v1519 = vpop.permute.xlu0 %1518
        %vm1528 = vcmask 294144
        %1529 = vst.msk [vmem:[#allocation3] sm:$0xff] %vm1528, %v1505
        %1530 = vst.msk [vmem:[#allocation3 + $0x8] sm:$0xff] %vm1528, %v1507
        %1531 = vst.msk [vmem:[#allocation3 + $0x10] sm:$0xff] %vm1528, %v1509
        %1532 = vst.msk [vmem:[#allocation3 + $0x18] sm:$0xff] %vm1528, %v1511
        %1533 = vst.msk [vmem:[#allocation3 + $0x20] sm:$0xff] %vm1528, %v1513
        %1534 = vst.msk [vmem:[#allocation3 + $0x28] sm:$0xff] %vm1528, %v1515
        %1535 = vst.msk [vmem:[#allocation3 + $0x30] sm:$0xff] %vm1528, %v1517
        %1536 = vst.msk [vmem:[#allocation3 + $0x38] sm:$0xff] %vm1528, %v1519
        %1537 = vrot.lane.b32.xlu0 %v1488, 28
        %v1538 = vpop.permute.xlu0 %1537
        %1539 = vrot.lane.b32.xlu0 %v1489, 28
        %v1540 = vpop.permute.xlu0 %1539
        %1541 = vrot.lane.b32.xlu0 %v1490, 28
        %v1542 = vpop.permute.xlu0 %1541
        %1543 = vrot.lane.b32.xlu0 %v1491, 28
        %v1544 = vpop.permute.xlu0 %1543
        %1545 = vrot.lane.b32.xlu0 %v1492, 28
        %v1546 = vpop.permute.xlu0 %1545
        %1547 = vrot.lane.b32.xlu0 %v1493, 28
        %v1548 = vpop.permute.xlu0 %1547
        %1549 = vrot.lane.b32.xlu0 %v1494, 28
        %v1550 = vpop.permute.xlu0 %1549
        %1551 = vrot.lane.b32.xlu0 %v1495, 28
        %v1552 = vpop.permute.xlu0 %1551
        %1561 = vst.msk [vmem:[%s843] sm:$0xff] %vm1383, %v1538
        %1562 = vst.msk [vmem:[%s843 + $0x8] sm:$0xff] %vm1383, %v1540
        %1563 = vst.msk [vmem:[%s843 + $0x10] sm:$0xff] %vm1383, %v1542
        %1564 = vst.msk [vmem:[%s843 + $0x18] sm:$0xff] %vm1383, %v1544
        %1565 = vst.msk [vmem:[%s843 + $0x20] sm:$0xff] %vm1383, %v1546
        %1566 = vst.msk [vmem:[%s843 + $0x28] sm:$0xff] %vm1383, %v1548
        %1567 = vst.msk [vmem:[%s843 + $0x30] sm:$0xff] %vm1383, %v1550
        %1568 = vst.msk [vmem:[%s843 + $0x38] sm:$0xff] %vm1383, %v1552
        %1569 = vrot.lane.b32.xlu0 %v1488, 20
        %v1570 = vpop.permute.xlu0 %1569
        %1571 = vrot.lane.b32.xlu0 %v1489, 20
        %v1572 = vpop.permute.xlu0 %1571
        %1573 = vrot.lane.b32.xlu0 %v1490, 20
        %v1574 = vpop.permute.xlu0 %1573
        %1575 = vrot.lane.b32.xlu0 %v1491, 20
        %v1576 = vpop.permute.xlu0 %1575
        %1577 = vrot.lane.b32.xlu0 %v1492, 20
        %v1578 = vpop.permute.xlu0 %1577
        %1579 = vrot.lane.b32.xlu0 %v1493, 20
        %v1580 = vpop.permute.xlu0 %1579
        %1581 = vrot.lane.b32.xlu0 %v1494, 20
        %v1582 = vpop.permute.xlu0 %1581
        %1583 = vrot.lane.b32.xlu0 %v1495, 20
        %v1584 = vpop.permute.xlu0 %1583
        %1593 = vst.msk [vmem:[%s983] sm:$0xff] %vm1155, %v1570
        %1594 = vst.msk [vmem:[%s983 + $0x8] sm:$0xff] %vm1155, %v1572
        %1595 = vst.msk [vmem:[%s983 + $0x10] sm:$0xff] %vm1155, %v1574
        %1596 = vst.msk [vmem:[%s983 + $0x18] sm:$0xff] %vm1155, %v1576
        %1597 = vst.msk [vmem:[%s983 + $0x20] sm:$0xff] %vm1155, %v1578
        %1598 = vst.msk [vmem:[%s983 + $0x28] sm:$0xff] %vm1155, %v1580
        %1599 = vst.msk [vmem:[%s983 + $0x30] sm:$0xff] %vm1155, %v1582
        %1600 = vst.msk [vmem:[%s983 + $0x38] sm:$0xff] %vm1155, %v1584
        %1601 = vrot.lane.b32.xlu0 %v1488, 16
        %v1602 = vpop.permute.xlu0 %1601
        %1603 = vrot.lane.b32.xlu0 %v1489, 16
        %v1604 = vpop.permute.xlu0 %1603
        %1605 = vrot.lane.b32.xlu0 %v1490, 16
        %v1606 = vpop.permute.xlu0 %1605
        %1607 = vrot.lane.b32.xlu0 %v1491, 16
        %v1608 = vpop.permute.xlu0 %1607
        %1609 = vrot.lane.b32.xlu0 %v1492, 16
        %v1610 = vpop.permute.xlu0 %1609
        %1611 = vrot.lane.b32.xlu0 %v1493, 16
        %v1612 = vpop.permute.xlu0 %1611
        %1613 = vrot.lane.b32.xlu0 %v1494, 16
        %v1614 = vpop.permute.xlu0 %1613
        %1615 = vrot.lane.b32.xlu0 %v1495, 16
        %v1616 = vpop.permute.xlu0 %1615
        %1625 = vst.msk [vmem:[%s1106] sm:$0xff] %vm1033, %v1602
        %1626 = vst.msk [vmem:[%s1106 + $0x8] sm:$0xff] %vm1033, %v1604
        %1627 = vst.msk [vmem:[%s1106 + $0x10] sm:$0xff] %vm1033, %v1606
        %1628 = vst.msk [vmem:[%s1106 + $0x18] sm:$0xff] %vm1033, %v1608
        %1629 = vst.msk [vmem:[%s1106 + $0x20] sm:$0xff] %vm1033, %v1610
        %1630 = vst.msk [vmem:[%s1106 + $0x28] sm:$0xff] %vm1033, %v1612
        %1631 = vst.msk [vmem:[%s1106 + $0x30] sm:$0xff] %vm1033, %v1614
        %1632 = vst.msk [vmem:[%s1106 + $0x38] sm:$0xff] %vm1033, %v1616
        %v1633 = vld [vmem:[%s793 + $0x1] sm:$0xff]
        %v1634 = vld [vmem:[%s793 + $0x11] sm:$0xff]
        %v1635 = vld [vmem:[%s793 + $0x21] sm:$0xff]
        %v1636 = vld [vmem:[%s793 + $0x31] sm:$0xff]
        %v1637 = vld [vmem:[%s793 + $0x41] sm:$0xff]
        %v1638 = vld [vmem:[%s793 + $0x51] sm:$0xff]
        %v1639 = vld [vmem:[%s793 + $0x61] sm:$0xff]
        %v1640 = vld [vmem:[%s793 + $0x71] sm:$0xff]
        %1649 = vrot.lane.b32.xlu0 %v1633, 8
        %v1650 = vpop.permute.xlu0 %1649
        %1651 = vrot.lane.b32.xlu0 %v1634, 8
        %v1652 = vpop.permute.xlu0 %1651
        %1653 = vrot.lane.b32.xlu0 %v1635, 8
        %v1654 = vpop.permute.xlu0 %1653
        %1655 = vrot.lane.b32.xlu0 %v1636, 8
        %v1656 = vpop.permute.xlu0 %1655
        %1657 = vrot.lane.b32.xlu0 %v1637, 8
        %v1658 = vpop.permute.xlu0 %1657
        %1659 = vrot.lane.b32.xlu0 %v1638, 8
        %v1660 = vpop.permute.xlu0 %1659
        %1661 = vrot.lane.b32.xlu0 %v1639, 8
        %v1662 = vpop.permute.xlu0 %1661
        %1663 = vrot.lane.b32.xlu0 %v1640, 8
        %v1664 = vpop.permute.xlu0 %1663
        %1673 = vst.msk [vmem:[%s843] sm:$0xff] %vm892, %v1650
        %1674 = vst.msk [vmem:[%s843 + $0x8] sm:$0xff] %vm892, %v1652
        %1675 = vst.msk [vmem:[%s843 + $0x10] sm:$0xff] %vm892, %v1654
        %1676 = vst.msk [vmem:[%s843 + $0x18] sm:$0xff] %vm892, %v1656
        %1677 = vst.msk [vmem:[%s843 + $0x20] sm:$0xff] %vm892, %v1658
        %1678 = vst.msk [vmem:[%s843 + $0x28] sm:$0xff] %vm892, %v1660
        %1679 = vst.msk [vmem:[%s843 + $0x30] sm:$0xff] %vm892, %v1662
        %1680 = vst.msk [vmem:[%s843 + $0x38] sm:$0xff] %vm892, %v1664
        %v1681 = vld [vmem:[%s992 + $0x1] sm:$0xff]
        %v1682 = vld [vmem:[%s992 + $0x11] sm:$0xff]
        %v1683 = vld [vmem:[%s992 + $0x21] sm:$0xff]
        %v1684 = vld [vmem:[%s992 + $0x31] sm:$0xff]
        %v1685 = vld [vmem:[%s992 + $0x41] sm:$0xff]
        %v1686 = vld [vmem:[%s992 + $0x51] sm:$0xff]
        %v1687 = vld [vmem:[%s992 + $0x61] sm:$0xff]
        %v1688 = vld [vmem:[%s992 + $0x71] sm:$0xff]
        %1697 = vrot.lane.b32.xlu0 %v1681, 20
        %v1698 = vpop.permute.xlu0 %1697
        %1699 = vrot.lane.b32.xlu0 %v1682, 20
        %v1700 = vpop.permute.xlu0 %1699
        %1701 = vrot.lane.b32.xlu0 %v1683, 20
        %v1702 = vpop.permute.xlu0 %1701
        %1703 = vrot.lane.b32.xlu0 %v1684, 20
        %v1704 = vpop.permute.xlu0 %1703
        %1705 = vrot.lane.b32.xlu0 %v1685, 20
        %v1706 = vpop.permute.xlu0 %1705
        %1707 = vrot.lane.b32.xlu0 %v1686, 20
        %v1708 = vpop.permute.xlu0 %1707
        %1709 = vrot.lane.b32.xlu0 %v1687, 20
        %v1710 = vpop.permute.xlu0 %1709
        %1711 = vrot.lane.b32.xlu0 %v1688, 20
        %v1712 = vpop.permute.xlu0 %1711
        %1721 = vst.msk [vmem:[%s843] sm:$0xff] %vm1155, %v1698
        %1722 = vst.msk [vmem:[%s843 + $0x8] sm:$0xff] %vm1155, %v1700
        %1723 = vst.msk [vmem:[%s843 + $0x10] sm:$0xff] %vm1155, %v1702
        %1724 = vst.msk [vmem:[%s843 + $0x18] sm:$0xff] %vm1155, %v1704
        %1725 = vst.msk [vmem:[%s843 + $0x20] sm:$0xff] %vm1155, %v1706
        %1726 = vst.msk [vmem:[%s843 + $0x28] sm:$0xff] %vm1155, %v1708
        %1727 = vst.msk [vmem:[%s843 + $0x30] sm:$0xff] %vm1155, %v1710
        %1728 = vst.msk [vmem:[%s843 + $0x38] sm:$0xff] %vm1155, %v1712
        %1729 = vrot.lane.b32.xlu0 %v1681, 8
        %v1730 = vpop.permute.xlu0 %1729
        %1731 = vrot.lane.b32.xlu0 %v1682, 8
        %v1732 = vpop.permute.xlu0 %1731
        %1733 = vrot.lane.b32.xlu0 %v1683, 8
        %v1734 = vpop.permute.xlu0 %1733
        %1735 = vrot.lane.b32.xlu0 %v1684, 8
        %v1736 = vpop.permute.xlu0 %1735
        %1737 = vrot.lane.b32.xlu0 %v1685, 8
        %v1738 = vpop.permute.xlu0 %1737
        %1739 = vrot.lane.b32.xlu0 %v1686, 8
        %v1740 = vpop.permute.xlu0 %1739
        %1741 = vrot.lane.b32.xlu0 %v1687, 8
        %v1742 = vpop.permute.xlu0 %1741
        %1743 = vrot.lane.b32.xlu0 %v1688, 8
        %v1744 = vpop.permute.xlu0 %1743
        %1753 = vst.msk [vmem:[%s1106] sm:$0xff] %vm892, %v1730
        %1754 = vst.msk [vmem:[%s1106 + $0x8] sm:$0xff] %vm892, %v1732
        %1755 = vst.msk [vmem:[%s1106 + $0x10] sm:$0xff] %vm892, %v1734
        %1756 = vst.msk [vmem:[%s1106 + $0x18] sm:$0xff] %vm892, %v1736
        %1757 = vst.msk [vmem:[%s1106 + $0x20] sm:$0xff] %vm892, %v1738
        %1758 = vst.msk [vmem:[%s1106 + $0x28] sm:$0xff] %vm892, %v1740
        %1759 = vst.msk [vmem:[%s1106 + $0x30] sm:$0xff] %vm892, %v1742
        %1760 = vst.msk [vmem:[%s1106 + $0x38] sm:$0xff] %vm892, %v1744
        %v1761 = vld [vmem:[%s1342 + $0x1] sm:$0xff]
        %v1762 = vld [vmem:[%s1342 + $0x11] sm:$0xff]
        %v1763 = vld [vmem:[%s1342 + $0x21] sm:$0xff]
        %v1764 = vld [vmem:[%s1342 + $0x31] sm:$0xff]
        %v1765 = vld [vmem:[%s1342 + $0x41] sm:$0xff]
        %v1766 = vld [vmem:[%s1342 + $0x51] sm:$0xff]
        %v1767 = vld [vmem:[%s1342 + $0x61] sm:$0xff]
        %v1768 = vld [vmem:[%s1342 + $0x71] sm:$0xff]
        %1777 = vrot.lane.b32.xlu0 %v1761, 32
        %v1778 = vpop.permute.xlu0 %1777
        %1779 = vrot.lane.b32.xlu0 %v1762, 32
        %v1780 = vpop.permute.xlu0 %1779
        %1781 = vrot.lane.b32.xlu0 %v1763, 32
        %v1782 = vpop.permute.xlu0 %1781
        %1783 = vrot.lane.b32.xlu0 %v1764, 32
        %v1784 = vpop.permute.xlu0 %1783
        %1785 = vrot.lane.b32.xlu0 %v1765, 32
        %v1786 = vpop.permute.xlu0 %1785
        %1787 = vrot.lane.b32.xlu0 %v1766, 32
        %v1788 = vpop.permute.xlu0 %1787
        %1789 = vrot.lane.b32.xlu0 %v1767, 32
        %v1790 = vpop.permute.xlu0 %1789
        %1791 = vrot.lane.b32.xlu0 %v1768, 32
        %v1792 = vpop.permute.xlu0 %1791
        %1801 = vst.msk [vmem:[%s843] sm:$0xff] %vm1528, %v1778
        %1802 = vst.msk [vmem:[%s843 + $0x8] sm:$0xff] %vm1528, %v1780
        %1803 = vst.msk [vmem:[%s843 + $0x10] sm:$0xff] %vm1528, %v1782
        %1804 = vst.msk [vmem:[%s843 + $0x18] sm:$0xff] %vm1528, %v1784
        %1805 = vst.msk [vmem:[%s843 + $0x20] sm:$0xff] %vm1528, %v1786
        %1806 = vst.msk [vmem:[%s843 + $0x28] sm:$0xff] %vm1528, %v1788
        %1807 = vst.msk [vmem:[%s843 + $0x30] sm:$0xff] %vm1528, %v1790
        %1808 = vst.msk [vmem:[%s843 + $0x38] sm:$0xff] %vm1528, %v1792
        %1809 = vrot.lane.b32.xlu0 %v1761, 20
        %v1810 = vpop.permute.xlu0 %1809
        %1811 = vrot.lane.b32.xlu0 %v1762, 20
        %v1812 = vpop.permute.xlu0 %1811
        %1813 = vrot.lane.b32.xlu0 %v1763, 20
        %v1814 = vpop.permute.xlu0 %1813
        %1815 = vrot.lane.b32.xlu0 %v1764, 20
        %v1816 = vpop.permute.xlu0 %1815
        %1817 = vrot.lane.b32.xlu0 %v1765, 20
        %v1818 = vpop.permute.xlu0 %1817
        %1819 = vrot.lane.b32.xlu0 %v1766, 20
        %v1820 = vpop.permute.xlu0 %1819
        %1821 = vrot.lane.b32.xlu0 %v1767, 20
        %v1822 = vpop.permute.xlu0 %1821
        %1823 = vrot.lane.b32.xlu0 %v1768, 20
        %v1824 = vpop.permute.xlu0 %1823
        %1833 = vst.msk [vmem:[%s1106] sm:$0xff] %vm1155, %v1810
        %1834 = vst.msk [vmem:[%s1106 + $0x8] sm:$0xff] %vm1155, %v1812
        %1835 = vst.msk [vmem:[%s1106 + $0x10] sm:$0xff] %vm1155, %v1814
        %1836 = vst.msk [vmem:[%s1106 + $0x18] sm:$0xff] %vm1155, %v1816
        %1837 = vst.msk [vmem:[%s1106 + $0x20] sm:$0xff] %vm1155, %v1818
        %1838 = vst.msk [vmem:[%s1106 + $0x28] sm:$0xff] %vm1155, %v1820
        %1839 = vst.msk [vmem:[%s1106 + $0x30] sm:$0xff] %vm1155, %v1822
        %1840 = vst.msk [vmem:[%s1106 + $0x38] sm:$0xff] %vm1155, %v1824
        %s1841 = scalar_lea.vmem [#allocation2], 304
        %v1842 = vld [vmem:[%s1841] sm:$0xff]
        %v1843 = vld [vmem:[%s1841 + $0x10] sm:$0xff]
        %v1844 = vld [vmem:[%s1841 + $0x20] sm:$0xff]
        %v1845 = vld [vmem:[%s1841 + $0x30] sm:$0xff]
        %v1846 = vld [vmem:[%s1841 + $0x40] sm:$0xff]
        %v1847 = vld [vmem:[%s1841 + $0x50] sm:$0xff]
        %v1848 = vld [vmem:[%s1841 + $0x60] sm:$0xff]
        %v1849 = vld [vmem:[%s1841 + $0x70] sm:$0xff]
        %1858 = vrot.lane.b32.xlu0 %v1842, 24
        %v1859 = vpop.permute.xlu0 %1858
        %1860 = vrot.lane.b32.xlu0 %v1843, 24
        %v1861 = vpop.permute.xlu0 %1860
        %1862 = vrot.lane.b32.xlu0 %v1844, 24
        %v1863 = vpop.permute.xlu0 %1862
        %1864 = vrot.lane.b32.xlu0 %v1845, 24
        %v1865 = vpop.permute.xlu0 %1864
        %1866 = vrot.lane.b32.xlu0 %v1846, 24
        %v1867 = vpop.permute.xlu0 %1866
        %1868 = vrot.lane.b32.xlu0 %v1847, 24
        %v1869 = vpop.permute.xlu0 %1868
        %1870 = vrot.lane.b32.xlu0 %v1848, 24
        %v1871 = vpop.permute.xlu0 %1870
        %1872 = vrot.lane.b32.xlu0 %v1849, 24
        %v1873 = vpop.permute.xlu0 %1872
        %1882 = vst.msk [vmem:[%s983] sm:$0xff] %vm1301, %v1859
        %1883 = vst.msk [vmem:[%s983 + $0x8] sm:$0xff] %vm1301, %v1861
        %1884 = vst.msk [vmem:[%s983 + $0x10] sm:$0xff] %vm1301, %v1863
        %1885 = vst.msk [vmem:[%s983 + $0x18] sm:$0xff] %vm1301, %v1865
        %1886 = vst.msk [vmem:[%s983 + $0x20] sm:$0xff] %vm1301, %v1867
        %1887 = vst.msk [vmem:[%s983 + $0x28] sm:$0xff] %vm1301, %v1869
        %1888 = vst.msk [vmem:[%s983 + $0x30] sm:$0xff] %vm1301, %v1871
        %1889 = vst.msk [vmem:[%s983 + $0x38] sm:$0xff] %vm1301, %v1873
        %s1890 = scalar_lea.vmem [#allocation2], 448
        %v1891 = vld [vmem:[%s1890] sm:$0xff]
        %v1892 = vld [vmem:[%s1890 + $0x10] sm:$0xff]
        %v1893 = vld [vmem:[%s1890 + $0x20] sm:$0xff]
        %v1894 = vld [vmem:[%s1890 + $0x30] sm:$0xff]
        %v1895 = vld [vmem:[%s1890 + $0x40] sm:$0xff]
        %v1896 = vld [vmem:[%s1890 + $0x50] sm:$0xff]
        %v1897 = vld [vmem:[%s1890 + $0x60] sm:$0xff]
        %v1898 = vld [vmem:[%s1890 + $0x70] sm:$0xff]
        %1907 = vrot.lane.b32.xlu0 %v1891, 28
        %v1908 = vpop.permute.xlu0 %1907
        %1909 = vrot.lane.b32.xlu0 %v1892, 28
        %v1910 = vpop.permute.xlu0 %1909
        %1911 = vrot.lane.b32.xlu0 %v1893, 28
        %v1912 = vpop.permute.xlu0 %1911
        %1913 = vrot.lane.b32.xlu0 %v1894, 28
        %v1914 = vpop.permute.xlu0 %1913
        %1915 = vrot.lane.b32.xlu0 %v1895, 28
        %v1916 = vpop.permute.xlu0 %1915
        %1917 = vrot.lane.b32.xlu0 %v1896, 28
        %v1918 = vpop.permute.xlu0 %1917
        %1919 = vrot.lane.b32.xlu0 %v1897, 28
        %v1920 = vpop.permute.xlu0 %1919
        %1921 = vrot.lane.b32.xlu0 %v1898, 28
        %v1922 = vpop.permute.xlu0 %1921
        %1931 = vst.msk [vmem:[%s983] sm:$0xff] %vm1383, %v1908
        %1932 = vst.msk [vmem:[%s983 + $0x8] sm:$0xff] %vm1383, %v1910
        %1933 = vst.msk [vmem:[%s983 + $0x10] sm:$0xff] %vm1383, %v1912
        %1934 = vst.msk [vmem:[%s983 + $0x18] sm:$0xff] %vm1383, %v1914
        %1935 = vst.msk [vmem:[%s983 + $0x20] sm:$0xff] %vm1383, %v1916
        %1936 = vst.msk [vmem:[%s983 + $0x28] sm:$0xff] %vm1383, %v1918
        %1937 = vst.msk [vmem:[%s983 + $0x30] sm:$0xff] %vm1383, %v1920
        %1938 = vst.msk [vmem:[%s983 + $0x38] sm:$0xff] %vm1383, %v1922
        %1939 = vrot.lane.b32.xlu0 %v1891, 24
        %v1940 = vpop.permute.xlu0 %1939
        %1941 = vrot.lane.b32.xlu0 %v1892, 24
        %v1942 = vpop.permute.xlu0 %1941
        %1943 = vrot.lane.b32.xlu0 %v1893, 24
        %v1944 = vpop.permute.xlu0 %1943
        %1945 = vrot.lane.b32.xlu0 %v1894, 24
        %v1946 = vpop.permute.xlu0 %1945
        %1947 = vrot.lane.b32.xlu0 %v1895, 24
        %v1948 = vpop.permute.xlu0 %1947
        %1949 = vrot.lane.b32.xlu0 %v1896, 24
        %v1950 = vpop.permute.xlu0 %1949
        %1951 = vrot.lane.b32.xlu0 %v1897, 24
        %v1952 = vpop.permute.xlu0 %1951
        %1953 = vrot.lane.b32.xlu0 %v1898, 24
        %v1954 = vpop.permute.xlu0 %1953
        %1963 = vst.msk [vmem:[%s1106] sm:$0xff] %vm1301, %v1940
        %1964 = vst.msk [vmem:[%s1106 + $0x8] sm:$0xff] %vm1301, %v1942
        %1965 = vst.msk [vmem:[%s1106 + $0x10] sm:$0xff] %vm1301, %v1944
        %1966 = vst.msk [vmem:[%s1106 + $0x18] sm:$0xff] %vm1301, %v1946
        %1967 = vst.msk [vmem:[%s1106 + $0x20] sm:$0xff] %vm1301, %v1948
        %1968 = vst.msk [vmem:[%s1106 + $0x28] sm:$0xff] %vm1301, %v1950
        %1969 = vst.msk [vmem:[%s1106 + $0x30] sm:$0xff] %vm1301, %v1952
        %1970 = vst.msk [vmem:[%s1106 + $0x38] sm:$0xff] %vm1301, %v1954
        %v1971 = vld [vmem:[%s1841 + $0x1] sm:$0xff]
        %v1972 = vld [vmem:[%s1841 + $0x11] sm:$0xff]
        %v1973 = vld [vmem:[%s1841 + $0x21] sm:$0xff]
        %v1974 = vld [vmem:[%s1841 + $0x31] sm:$0xff]
        %v1975 = vld [vmem:[%s1841 + $0x41] sm:$0xff]
        %v1976 = vld [vmem:[%s1841 + $0x51] sm:$0xff]
        %v1977 = vld [vmem:[%s1841 + $0x61] sm:$0xff]
        %v1978 = vld [vmem:[%s1841 + $0x71] sm:$0xff]
        %1987 = vrot.lane.b32.xlu0 %v1971, 32
        %v1988 = vpop.permute.xlu0 %1987
        %1989 = vrot.lane.b32.xlu0 %v1972, 32
        %v1990 = vpop.permute.xlu0 %1989
        %1991 = vrot.lane.b32.xlu0 %v1973, 32
        %v1992 = vpop.permute.xlu0 %1991
        %1993 = vrot.lane.b32.xlu0 %v1974, 32
        %v1994 = vpop.permute.xlu0 %1993
        %1995 = vrot.lane.b32.xlu0 %v1975, 32
        %v1996 = vpop.permute.xlu0 %1995
        %1997 = vrot.lane.b32.xlu0 %v1976, 32
        %v1998 = vpop.permute.xlu0 %1997
        %1999 = vrot.lane.b32.xlu0 %v1977, 32
        %v2000 = vpop.permute.xlu0 %1999
        %2001 = vrot.lane.b32.xlu0 %v1978, 32
        %v2002 = vpop.permute.xlu0 %2001
        %2011 = vst.msk [vmem:[%s983] sm:$0xff] %vm1528, %v1988
        %2012 = vst.msk [vmem:[%s983 + $0x8] sm:$0xff] %vm1528, %v1990
        %2013 = vst.msk [vmem:[%s983 + $0x10] sm:$0xff] %vm1528, %v1992
        %2014 = vst.msk [vmem:[%s983 + $0x18] sm:$0xff] %vm1528, %v1994
        %2015 = vst.msk [vmem:[%s983 + $0x20] sm:$0xff] %vm1528, %v1996
        %2016 = vst.msk [vmem:[%s983 + $0x28] sm:$0xff] %vm1528, %v1998
        %2017 = vst.msk [vmem:[%s983 + $0x30] sm:$0xff] %vm1528, %v2000
        %2018 = vst.msk [vmem:[%s983 + $0x38] sm:$0xff] %vm1528, %v2002
        %2019 = vrot.lane.b32.xlu0 %v1971, 28
        %v2020 = vpop.permute.xlu0 %2019
        %2021 = vrot.lane.b32.xlu0 %v1972, 28
        %v2022 = vpop.permute.xlu0 %2021
        %2023 = vrot.lane.b32.xlu0 %v1973, 28
        %v2024 = vpop.permute.xlu0 %2023
        %2025 = vrot.lane.b32.xlu0 %v1974, 28
        %v2026 = vpop.permute.xlu0 %2025
        %2027 = vrot.lane.b32.xlu0 %v1975, 28
        %v2028 = vpop.permute.xlu0 %2027
        %2029 = vrot.lane.b32.xlu0 %v1976, 28
        %v2030 = vpop.permute.xlu0 %2029
        %2031 = vrot.lane.b32.xlu0 %v1977, 28
        %v2032 = vpop.permute.xlu0 %2031
        %2033 = vrot.lane.b32.xlu0 %v1978, 28
        %v2034 = vpop.permute.xlu0 %2033
        %2043 = vst.msk [vmem:[%s1106] sm:$0xff] %vm1383, %v2020
        %2044 = vst.msk [vmem:[%s1106 + $0x8] sm:$0xff] %vm1383, %v2022
        %2045 = vst.msk [vmem:[%s1106 + $0x10] sm:$0xff] %vm1383, %v2024
        %2046 = vst.msk [vmem:[%s1106 + $0x18] sm:$0xff] %vm1383, %v2026
        %2047 = vst.msk [vmem:[%s1106 + $0x20] sm:$0xff] %vm1383, %v2028
        %2048 = vst.msk [vmem:[%s1106 + $0x28] sm:$0xff] %vm1383, %v2030
        %2049 = vst.msk [vmem:[%s1106 + $0x30] sm:$0xff] %vm1383, %v2032
        %2050 = vst.msk [vmem:[%s1106 + $0x38] sm:$0xff] %vm1383, %v2034
        %v2051 = vld [vmem:[%s1890 + $0x1] sm:$0xff]
        %v2052 = vld [vmem:[%s1890 + $0x11] sm:$0xff]
        %v2053 = vld [vmem:[%s1890 + $0x21] sm:$0xff]
        %v2054 = vld [vmem:[%s1890 + $0x31] sm:$0xff]
        %v2055 = vld [vmem:[%s1890 + $0x41] sm:$0xff]
        %v2056 = vld [vmem:[%s1890 + $0x51] sm:$0xff]
        %v2057 = vld [vmem:[%s1890 + $0x61] sm:$0xff]
        %v2058 = vld [vmem:[%s1890 + $0x71] sm:$0xff]
        %2067 = vrot.lane.b32.xlu0 %v2051, 32
        %v2068 = vpop.permute.xlu0 %2067
        %2069 = vrot.lane.b32.xlu0 %v2052, 32
        %v2070 = vpop.permute.xlu0 %2069
        %2071 = vrot.lane.b32.xlu0 %v2053, 32
        %v2072 = vpop.permute.xlu0 %2071
        %2073 = vrot.lane.b32.xlu0 %v2054, 32
        %v2074 = vpop.permute.xlu0 %2073
        %2075 = vrot.lane.b32.xlu0 %v2055, 32
        %v2076 = vpop.permute.xlu0 %2075
        %2077 = vrot.lane.b32.xlu0 %v2056, 32
        %v2078 = vpop.permute.xlu0 %2077
        %2079 = vrot.lane.b32.xlu0 %v2057, 32
        %v2080 = vpop.permute.xlu0 %2079
        %2081 = vrot.lane.b32.xlu0 %v2058, 32
        %v2082 = vpop.permute.xlu0 %2081
        %2091 = vst.msk [vmem:[%s1106] sm:$0xff] %vm1528, %v2068
        %2092 = vst.msk [vmem:[%s1106 + $0x8] sm:$0xff] %vm1528, %v2070
        %2093 = vst.msk [vmem:[%s1106 + $0x10] sm:$0xff] %vm1528, %v2072
        %2094 = vst.msk [vmem:[%s1106 + $0x18] sm:$0xff] %vm1528, %v2074
        %2095 = vst.msk [vmem:[%s1106 + $0x20] sm:$0xff] %vm1528, %v2076
        %2096 = vst.msk [vmem:[%s1106 + $0x28] sm:$0xff] %vm1528, %v2078
        %2097 = vst.msk [vmem:[%s1106 + $0x30] sm:$0xff] %vm1528, %v2080
        %2098 = vst.msk [vmem:[%s1106 + $0x38] sm:$0xff] %vm1528, %v2082
        %v2099 = vld [vmem:[#allocation3] sm:$0xff]
        %v2100 = vld [vmem:[#allocation3 + $0x8] sm:$0xff]
        %v2101 = vld [vmem:[#allocation3 + $0x10] sm:$0xff]
        %v2102 = vld [vmem:[#allocation3 + $0x18] sm:$0xff]
        %v2103 = vld [vmem:[#allocation3 + $0x20] sm:$0xff]
        %v2104 = vld [vmem:[#allocation3 + $0x28] sm:$0xff]
        %v2105 = vld [vmem:[#allocation3 + $0x30] sm:$0xff]
        %v2106 = vld [vmem:[#allocation3 + $0x38] sm:$0xff]
        %v2107 = vld [vmem:[#allocation3 + $0x40] sm:$0xff]
        %v2108 = vld [vmem:[#allocation3 + $0x48] sm:$0xff]
        %v2109 = vld [vmem:[#allocation3 + $0x50] sm:$0xff]
        %v2110 = vld [vmem:[#allocation3 + $0x58] sm:$0xff]
        %v2111 = vld [vmem:[#allocation3 + $0x60] sm:$0xff]
        %v2112 = vld [vmem:[#allocation3 + $0x68] sm:$0xff]
        %v2113 = vld [vmem:[#allocation3 + $0x70] sm:$0xff]
        %v2114 = vld [vmem:[#allocation3 + $0x78] sm:$0xff]
        %v2115 = vld [vmem:[#allocation3 + $0x80] sm:$0xff]
        %v2116 = vld [vmem:[#allocation3 + $0x88] sm:$0xff]
        %v2117 = vld [vmem:[#allocation3 + $0x90] sm:$0xff]
        %v2118 = vld [vmem:[#allocation3 + $0x98] sm:$0xff]
        %v2119 = vld [vmem:[#allocation3 + $0xa0] sm:$0xff]
        %v2120 = vld [vmem:[#allocation3 + $0xa8] sm:$0xff]
        %v2121 = vld [vmem:[#allocation3 + $0xb0] sm:$0xff]
        %v2122 = vld [vmem:[#allocation3 + $0xb8] sm:$0xff]
        %v2123 = vld [vmem:[#allocation3 + $0xc0] sm:$0xff]
        %v2124 = vld [vmem:[#allocation3 + $0xc8] sm:$0xff]
        %v2125 = vld [vmem:[#allocation3 + $0xd0] sm:$0xff]
        %v2126 = vld [vmem:[#allocation3 + $0xd8] sm:$0xff]
        %v2127 = vld [vmem:[#allocation3 + $0xe0] sm:$0xff]
        %v2128 = vld [vmem:[#allocation3 + $0xe8] sm:$0xff]
        %v2129 = vld [vmem:[#allocation3 + $0xf0] sm:$0xff]
        %v2130 = vld [vmem:[#allocation3 + $0xf8] sm:$0xff]
        %v2131 = vld [vmem:[%s2] sm:$0xff]
        %v2132 = vld [vmem:[%s2 + $0x8] sm:$0xff]
        %v2133 = vld [vmem:[%s2 + $0x10] sm:$0xff]
        %v2134 = vld [vmem:[%s2 + $0x18] sm:$0xff]
        %v2135 = vld [vmem:[%s2 + $0x20] sm:$0xf]
        %vm2136 = vcmask 293888
        %v2138 = vsel %vm2136, %v2099, 0
        %v2141 = vsel %vm2136, %v2100, 0
        %v2144 = vsel %vm2136, %v2101, 0
        %v2147 = vsel %vm2136, %v2102, 0
        %v2150 = vsel %vm2136, %v2103, 0
        %v2153 = vsel %vm2136, %v2104, 0
        %v2156 = vsel %vm2136, %v2105, 0
        %v2159 = vsel %vm2136, %v2106, 0
        %v2162 = vsel %vm2136, %v2107, 0
        %v2165 = vsel %vm2136, %v2108, 0
        %v2168 = vsel %vm2136, %v2109, 0
        %v2171 = vsel %vm2136, %v2110, 0
        %v2174 = vsel %vm2136, %v2111, 0
        %v2177 = vsel %vm2136, %v2112, 0
        %v2180 = vsel %vm2136, %v2113, 0
        %v2183 = vsel %vm2136, %v2114, 0
        %v2186 = vsel %vm2136, %v2115, 0
        %v2189 = vsel %vm2136, %v2116, 0
        %v2192 = vsel %vm2136, %v2117, 0
        %v2195 = vsel %vm2136, %v2118, 0
        %v2198 = vsel %vm2136, %v2119, 0
        %v2201 = vsel %vm2136, %v2120, 0
        %v2204 = vsel %vm2136, %v2121, 0
        %v2207 = vsel %vm2136, %v2122, 0
        %v2210 = vsel %vm2136, %v2123, 0
        %v2213 = vsel %vm2136, %v2124, 0
        %v2216 = vsel %vm2136, %v2125, 0
        %v2219 = vsel %vm2136, %v2126, 0
        %v2222 = vsel %vm2136, %v2127, 0
        %v2225 = vsel %vm2136, %v2128, 0
        %v2228 = vsel %vm2136, %v2129, 0
        %v2231 = vsel %vm2136, %v2130, 0
        %vm2233 = vcmask 1043456
        %v2235 = vsel %vm2233, %v2135, 0
        %2237 = vmatprep.subr.mxu0 0.0
        %2238 = vmatpush1.msra.mxu0 %v2131
        %2239 = vmatprep.subr.mxu0 0.0
        %2240 = vmatpush1.msra.mxu0 %v2132
        %2241 = vmatprep.subr.mxu0 0.0
        %2242 = vmatpush1.msra.mxu0 %v2133
        %2243 = vmatprep.subr.mxu0 0.0
        %2244 = vmatpush1.msra.mxu0 %v2134
        %2245 = vmatprep.subr.mxu0 0.0
        %2246 = vmatpush1.msra.mxu0 %v2235
        %2247 = vmatprep.subr.mxu0 0.0
        %2248 = vmatpush1.msra.mxu0 0.0
        %2249 = vmatprep.subr.mxu0 0.0
        %2250 = vmatpush1.msra.mxu0 0.0
        %2251 = vmatprep.subr.mxu0 0.0
        %2252 = vmatpush1.msra.mxu0 0.0
        %2253 = vmatprep.subr.mxu0 0.0
        %2254 = vmatpush1.msra.mxu0 0.0
        %2255 = vmatprep.subr.mxu0 0.0
        %2256 = vmatpush1.msra.mxu0 0.0
        %2257 = vmatprep.subr.mxu0 0.0
        %2258 = vmatpush1.msra.mxu0 0.0
        %2259 = vmatprep.subr.mxu0 0.0
        %2260 = vmatpush1.msra.mxu0 0.0
        %2261 = vmatprep.subr.mxu0 0.0
        %2262 = vmatpush1.msra.mxu0 0.0
        %2263 = vmatprep.subr.mxu0 0.0
        %2264 = vmatpush1.msra.mxu0 0.0
        %2265 = vmatprep.subr.mxu0 0.0
        %2266 = vmatpush1.msra.mxu0 0.0
        %2267 = vmatprep.subr.mxu0 0.0
        %2268 = vmatpush1.msra.mxu0 0.0
        %2269 = vmatprep.subr.mxu0 0.0
        %2270 = vmatpush1.msra.mxu0 0.0
        %2271 = vmatprep.subr.mxu0 0.0
        %2272 = vmatpush1.msra.mxu0 0.0
        %2273 = vmatprep.subr.mxu0 0.0
        %2274 = vmatpush1.msra.mxu0 0.0
        %2275 = vmatprep.subr.mxu0 0.0
        %2276 = vmatpush1.msra.mxu0 0.0
        %2277 = vmatprep.subr.mxu0 0.0
        %2278 = vmatpush1.msra.mxu0 0.0
        %2279 = vmatprep.subr.mxu0 0.0
        %2280 = vmatpush1.msra.mxu0 0.0
        %2281 = vmatprep.subr.mxu0 0.0
        %2282 = vmatpush1.msra.mxu0 0.0
        %2283 = vmatprep.subr.mxu0 0.0
        %2284 = vmatpush1.msra.mxu0 0.0
        %2285 = vmatprep.subr.mxu0 0.0
        %2286 = vmatpush1.msra.mxu0 0.0
        %2287 = vmatprep.subr.mxu0 0.0
        %2288 = vmatpush1.msra.mxu0 0.0
        %2289 = vmatprep.subr.mxu0 0.0
        %2290 = vmatpush1.msra.mxu0 0.0
        %2291 = vmatprep.subr.mxu0 0.0
        %2292 = vmatpush1.msra.mxu0 0.0
        %2293 = vmatprep.subr.mxu0 0.0
        %2294 = vmatpush1.msra.mxu0 0.0
        %2295 = vmatprep.subr.mxu0 0.0
        %2296 = vmatpush1.msra.mxu0 0.0
        %2297 = vmatprep.subr.mxu0 0.0
        %2298 = vmatpush1.msra.mxu0 0.0
        %2299 = vmatprep.subr.mxu0 0.0
        %2300 = vmatpush1.msra.mxu0 0.0
        %2301 = vmatprep.mubr.f32.mxu0 0.0
        %2302 = vmatmul.mubr.f32.gmra.mrb[0].mxu0 %v2138
        %v2303 = vpop.f32.mrb[0].mxu0
        %v2304 = vadd.f32 0.0, %v2303
        %v2305 = vpop.f32.mrb[0].mxu0
        %2306 = vmatprep.mubr.f32.mxu0 0.0
        %2307 = vmatmul.mubr.f32.gmra.mrb[0].mxu0 %v2141
        %v2308 = vpop.f32.mrb[0].mxu0
        %v2309 = vadd.f32 0.0, %v2308
        %v2310 = vpop.f32.mrb[0].mxu0
        %2311 = vmatprep.mubr.f32.mxu0 0.0
        %2312 = vmatmul.mubr.f32.gmra.mrb[0].mxu0 %v2144
        %v2313 = vpop.f32.mrb[0].mxu0
        %v2314 = vadd.f32 0.0, %v2313
        %v2315 = vpop.f32.mrb[0].mxu0
        %2316 = vmatprep.mubr.f32.mxu0 0.0
        %2317 = vmatmul.mubr.f32.gmra.mrb[0].mxu0 %v2147
        %v2318 = vpop.f32.mrb[0].mxu0
        %v2319 = vadd.f32 0.0, %v2318
        %v2320 = vpop.f32.mrb[0].mxu0
        %2321 = vmatprep.mubr.f32.mxu0 0.0
        %2322 = vmatmul.mubr.f32.gmra.mrb[0].mxu0 %v2150
        %v2323 = vpop.f32.mrb[0].mxu0
        %v2324 = vadd.f32 0.0, %v2323
        %v2325 = vpop.f32.mrb[0].mxu0
        %2326 = vmatprep.mubr.f32.mxu0 0.0
        %2327 = vmatmul.mubr.f32.gmra.mrb[0].mxu0 %v2153
        %v2328 = vpop.f32.mrb[0].mxu0
        %v2329 = vadd.f32 0.0, %v2328
        %v2330 = vpop.f32.mrb[0].mxu0
        %2331 = vmatprep.mubr.f32.mxu0 0.0
        %2332 = vmatmul.mubr.f32.gmra.mrb[0].mxu0 %v2156
        %v2333 = vpop.f32.mrb[0].mxu0
        %v2334 = vadd.f32 0.0, %v2333
        %v2335 = vpop.f32.mrb[0].mxu0
        %2336 = vmatprep.mubr.f32.mxu0 0.0
        %2337 = vmatmul.mubr.f32.gmra.mrb[0].mxu0 %v2159
        %v2338 = vpop.f32.mrb[0].mxu0
        %v2339 = vadd.f32 0.0, %v2338
        %v2340 = vpop.f32.mrb[0].mxu0
        %2341 = vmatprep.mubr.f32.mxu0 0.0
        %2342 = vmatmul.mubr.f32.gmra.mrb[0].mxu0 %v2162
        %v2343 = vpop.f32.mrb[0].mxu0
        %v2344 = vadd.f32 0.0, %v2343
        %v2345 = vpop.f32.mrb[0].mxu0
        %2346 = vmatprep.mubr.f32.mxu0 0.0
        %2347 = vmatmul.mubr.f32.gmra.mrb[0].mxu0 %v2165
        %v2348 = vpop.f32.mrb[0].mxu0
        %v2349 = vadd.f32 0.0, %v2348
        %v2350 = vpop.f32.mrb[0].mxu0
        %2351 = vmatprep.mubr.f32.mxu0 0.0
        %2352 = vmatmul.mubr.f32.gmra.mrb[0].mxu0 %v2168
        %v2353 = vpop.f32.mrb[0].mxu0
        %v2354 = vadd.f32 0.0, %v2353
        %v2355 = vpop.f32.mrb[0].mxu0
        %2356 = vmatprep.mubr.f32.mxu0 0.0
        %2357 = vmatmul.mubr.f32.gmra.mrb[0].mxu0 %v2171
        %v2358 = vpop.f32.mrb[0].mxu0
        %v2359 = vadd.f32 0.0, %v2358
        %v2360 = vpop.f32.mrb[0].mxu0
        %2361 = vmatprep.mubr.f32.mxu0 0.0
        %2362 = vmatmul.mubr.f32.gmra.mrb[0].mxu0 %v2174
        %v2363 = vpop.f32.mrb[0].mxu0
        %v2364 = vadd.f32 0.0, %v2363
        %v2365 = vpop.f32.mrb[0].mxu0
        %2366 = vmatprep.mubr.f32.mxu0 0.0
        %2367 = vmatmul.mubr.f32.gmra.mrb[0].mxu0 %v2177
        %v2368 = vpop.f32.mrb[0].mxu0
        %v2369 = vadd.f32 0.0, %v2368
        %v2370 = vpop.f32.mrb[0].mxu0
        %2371 = vmatprep.mubr.f32.mxu0 0.0
        %2372 = vmatmul.mubr.f32.gmra.mrb[0].mxu0 %v2180
        %v2373 = vpop.f32.mrb[0].mxu0
        %v2374 = vadd.f32 0.0, %v2373
        %v2375 = vpop.f32.mrb[0].mxu0
        %2376 = vmatprep.mubr.f32.mxu0 0.0
        %2377 = vmatmul.mubr.f32.gmra.mrb[0].mxu0 %v2183
        %v2378 = vpop.f32.mrb[0].mxu0
        %v2379 = vadd.f32 0.0, %v2378
        %v2380 = vpop.f32.mrb[0].mxu0
        %2381 = vmatprep.mubr.f32.mxu0 0.0
        %2382 = vmatmul.mubr.f32.gmra.mrb[0].mxu0 %v2186
        %v2383 = vpop.f32.mrb[0].mxu0
        %v2384 = vadd.f32 0.0, %v2383
        %v2385 = vpop.f32.mrb[0].mxu0
        %2386 = vmatprep.mubr.f32.mxu0 0.0
        %2387 = vmatmul.mubr.f32.gmra.mrb[0].mxu0 %v2189
        %v2388 = vpop.f32.mrb[0].mxu0
        %v2389 = vadd.f32 0.0, %v2388
        %v2390 = vpop.f32.mrb[0].mxu0
        %2391 = vmatprep.mubr.f32.mxu0 0.0
        %2392 = vmatmul.mubr.f32.gmra.mrb[0].mxu0 %v2192
        %v2393 = vpop.f32.mrb[0].mxu0
        %v2394 = vadd.f32 0.0, %v2393
        %v2395 = vpop.f32.mrb[0].mxu0
        %2396 = vmatprep.mubr.f32.mxu0 0.0
        %2397 = vmatmul.mubr.f32.gmra.mrb[0].mxu0 %v2195
        %v2398 = vpop.f32.mrb[0].mxu0
        %v2399 = vadd.f32 0.0, %v2398
        %v2400 = vpop.f32.mrb[0].mxu0
        %2401 = vmatprep.mubr.f32.mxu0 0.0
        %2402 = vmatmul.mubr.f32.gmra.mrb[0].mxu0 %v2198
        %v2403 = vpop.f32.mrb[0].mxu0
        %v2404 = vadd.f32 0.0, %v2403
        %v2405 = vpop.f32.mrb[0].mxu0
        %2406 = vmatprep.mubr.f32.mxu0 0.0
        %2407 = vmatmul.mubr.f32.gmra.mrb[0].mxu0 %v2201
        %v2408 = vpop.f32.mrb[0].mxu0
        %v2409 = vadd.f32 0.0, %v2408
        %v2410 = vpop.f32.mrb[0].mxu0
        %2411 = vmatprep.mubr.f32.mxu0 0.0
        %2412 = vmatmul.mubr.f32.gmra.mrb[0].mxu0 %v2204
        %v2413 = vpop.f32.mrb[0].mxu0
        %v2414 = vadd.f32 0.0, %v2413
        %v2415 = vpop.f32.mrb[0].mxu0
        %2416 = vmatprep.mubr.f32.mxu0 0.0
        %2417 = vmatmul.mubr.f32.gmra.mrb[0].mxu0 %v2207
        %v2418 = vpop.f32.mrb[0].mxu0
        %v2419 = vadd.f32 0.0, %v2418
        %v2420 = vpop.f32.mrb[0].mxu0
        %2421 = vmatprep.mubr.f32.mxu0 0.0
        %2422 = vmatmul.mubr.f32.gmra.mrb[0].mxu0 %v2210
        %v2423 = vpop.f32.mrb[0].mxu0
        %v2424 = vadd.f32 0.0, %v2423
        %v2425 = vpop.f32.mrb[0].mxu0
        %2426 = vmatprep.mubr.f32.mxu0 0.0
        %2427 = vmatmul.mubr.f32.gmra.mrb[0].mxu0 %v2213
        %v2428 = vpop.f32.mrb[0].mxu0
        %v2429 = vadd.f32 0.0, %v2428
        %v2430 = vpop.f32.mrb[0].mxu0
        %2431 = vmatprep.mubr.f32.mxu0 0.0
        %2432 = vmatmul.mubr.f32.gmra.mrb[0].mxu0 %v2216
        %v2433 = vpop.f32.mrb[0].mxu0
        %v2434 = vadd.f32 0.0, %v2433
        %v2435 = vpop.f32.mrb[0].mxu0
        %2436 = vmatprep.mubr.f32.mxu0 0.0
        %2437 = vmatmul.mubr.f32.gmra.mrb[0].mxu0 %v2219
        %v2438 = vpop.f32.mrb[0].mxu0
        %v2439 = vadd.f32 0.0, %v2438
        %v2440 = vpop.f32.mrb[0].mxu0
        %2441 = vmatprep.mubr.f32.mxu0 0.0
        %2442 = vmatmul.mubr.f32.gmra.mrb[0].mxu0 %v2222
        %v2443 = vpop.f32.mrb[0].mxu0
        %v2444 = vadd.f32 0.0, %v2443
        %v2445 = vpop.f32.mrb[0].mxu0
        %2446 = vmatprep.mubr.f32.mxu0 0.0
        %2447 = vmatmul.mubr.f32.gmra.mrb[0].mxu0 %v2225
        %v2448 = vpop.f32.mrb[0].mxu0
        %v2449 = vadd.f32 0.0, %v2448
        %v2450 = vpop.f32.mrb[0].mxu0
        %2451 = vmatprep.mubr.f32.mxu0 0.0
        %2452 = vmatmul.mubr.f32.gmra.mrb[0].mxu0 %v2228
        %v2453 = vpop.f32.mrb[0].mxu0
        %v2454 = vadd.f32 0.0, %v2453
        %v2455 = vpop.f32.mrb[0].mxu0
        %2456 = vmatprep.mubr.f32.mxu0 0.0
        %2457 = vmatmul.mubr.f32.gmra.mrb[0].mxu0 %v2231
        %v2458 = vpop.f32.mrb[0].mxu0
        %v2459 = vadd.f32 0.0, %v2458
        %v2460 = vpop.f32.mrb[0].mxu0
        %2461 = vdwg.mxu0
        %v2462 = vmax.f32 %v2304, %v2344
        %v2463 = vmax.f32 %v2462, %v2384
        %v2464 = vmax.f32 %v2463, %v2424
        %v2465 = vmax.f32 %v2309, %v2349
        %v2466 = vmax.f32 %v2465, %v2389
        %v2467 = vmax.f32 %v2466, %v2429
        %v2468 = vmax.f32 %v2314, %v2354
        %v2469 = vmax.f32 %v2468, %v2394
        %v2470 = vmax.f32 %v2469, %v2434
        %v2471 = vmax.f32 %v2319, %v2359
        %v2472 = vmax.f32 %v2471, %v2399
        %v2473 = vmax.f32 %v2472, %v2439
        %v2474 = vmax.f32 %v2324, %v2364
        %v2475 = vmax.f32 %v2474, %v2404
        %v2476 = vmax.f32 %v2475, %v2444
        %v2477 = vmax.f32 %v2329, %v2369
        %v2478 = vmax.f32 %v2477, %v2409
        %v2479 = vmax.f32 %v2478, %v2449
        %v2480 = vmax.f32 %v2334, %v2374
        %v2481 = vmax.f32 %v2480, %v2414
        %v2482 = vmax.f32 %v2481, %v2454
        %v2483 = vmax.f32 %v2339, %v2379
        %v2484 = vmax.f32 %v2483, %v2419
        %v2485 = vmax.f32 %v2484, %v2459
        %v2486 = vld [vmem:[%s3] sm:$0x1]
        %v2488 = vlaneseq
        %v2489 = vshrl.u32 %v2488, 7
        %v2490 = vsub.s32 0, %v2489
        %v2491 = vrot.slane %v2486, %v2490
        %v2493 = vadd.f32 %v2464, %v2491
        %v2494 = vadd.f32 %v2467, %v2491
        %v2495 = vadd.f32 %v2470, %v2491
        %v2496 = vadd.f32 %v2473, %v2491
        %v2497 = vadd.f32 %v2476, %v2491
        %v2498 = vadd.f32 %v2479, %v2491
        %v2499 = vadd.f32 %v2482, %v2491
        %v2500 = vadd.f32 %v2485, %v2491
        %v2501 = vmax.f32 %v2493, 0.0
        %v2502 = vmax.f32 %v2494, 0.0
        %v2503 = vmax.f32 %v2495, 0.0
        %v2504 = vmax.f32 %v2496, 0.0
        %v2505 = vmax.f32 %v2497, 0.0
        %v2506 = vmax.f32 %v2498, 0.0
        %v2507 = vmax.f32 %v2499, 0.0
        %v2508 = vmax.f32 %v2500, 0.0
        %2509 = vst [vmem:[%s614] sm:$0xff] %v2501
        %2510 = vst [vmem:[%s614 + $0x8] sm:$0xff] %v2502
        %2511 = vst [vmem:[%s614 + $0x10] sm:$0xff] %v2503
        %2512 = vst [vmem:[%s614 + $0x18] sm:$0xff] %v2504
        %2513 = vst [vmem:[%s614 + $0x20] sm:$0xff] %v2505
        %2514 = vst [vmem:[%s614 + $0x28] sm:$0xff] %v2506
        %2515 = vst [vmem:[%s614 + $0x30] sm:$0xff] %v2507
        %2516 = vst [vmem:[%s614 + $0x38] sm:$0xff] %v2508
        %s2517 = sand.u32 %s138, 1
        %s2518 = scalar_lea.sflag [#allocation6], %s2517
        %s2519 = sand.u32 %s138, 1
        %s2520 = smul.addr %s2519, 64
        %s2521 = scalar_lea.vmem [#allocation5], %s2520
        // Predicated region
        $region89: #{tpu_custom_call.1} parent=83 // pred_check
          %p2522 = pneg %p148
        $region90: #{tpu_custom_call.1} parent=83 // pred_check_branch
          %2524 = sbr.rel (%p2522) target = $region92
        $region91: #{tpu_custom_call.1} parent=83 // pred_region
          %s2526 = ssub.s32 1024, 1024
          %2527 = vsyncadd %s2518, %s2526
          %s2528 = smul.addr %s23, 8
          %s2529 = smul.addr %s22, 8
          %s2530 = sadd.s32 %s2528, %s2529
          %s2531 = smul.addr %s2530, 128
          %s2532 = scalar_lea.hbm %s4, %s2531
          %s2533 = sshll.u32 %s2521, 4
          %s2534 = int_to_ptr.vmem [resolvable:$true] %s2533
          %2539 = dma.vmem_to_hbm [thread:$0]  %s2534, 1024, %s2532, %s2518, 128, 128, 8
        $region92: #{tpu_custom_call.1} parent=83 // pred_fallthru
          _
      $region84: #{tpu_custom_call.1} parent=5 // pred_fallthru
        _
      %p2540 = scmp.le.s32.totalorder 2, %s13
      // Predicated region
      $region93: #{tpu_custom_call.1} parent=5 // pred_check
        %p2541 = pneg %p2540
      $region94: #{tpu_custom_call.1} parent=5 // pred_check_branch
        %2543 = sbr.rel (%p2541) target = $region96
      $region95: #{tpu_custom_call.1} parent=5 // pred_region
        %s2544 = ssub.s32 %s13, 2
        // Predicated region
        $region97: #{tpu_custom_call.1} parent=95 // pred_check
          %p2545 = pneg %p154
        $region98: #{tpu_custom_call.1} parent=95 // pred_check_branch
          %2547 = sbr.rel (%p2545) target = $region100
        $region99: #{tpu_custom_call.1} parent=95 // pred_region
          %s2548 = sand.u32 %s139, 1
          %s2549 = scalar_lea.sflag [#allocation6], %s2548
          %s2550 = sand.u32 %s139, 1
          %s2551 = smul.addr %s2550, 64
          %s2552 = scalar_lea.vmem [#allocation5], %s2551
          %2553 = dma.done %s2549, 1024
        $region100: #{tpu_custom_call.1} parent=95 // pred_fallthru
          _
      $region96: #{tpu_custom_call.1} parent=5 // pred_fallthru
        _
    $region6: #{tpu_custom_call.1} parent=1 // loop_footer
      %s17 = sadd.s32 1, %s13
    $region7: #{tpu_custom_call.1} parent=1 // loop_footer_branch
      %12 = sbr.rel target = $region3
    $region8: #{tpu_custom_call.1} parent=1 // loop_exit
      _
    %2554 = vsyncpa [#allocation6], 1
    %s2555 = scalar_lea.sflag [#allocation6], 1
    %2556 = vsyncpa %s2555, 1

</llo_original>
